<compile_context>
chip_gen: v6e
topology: v6e:2x2x1
jax: 0.10.0
libtpu: 0.0.40
codegen_flags: <defaults>
</compile_context>

<pallas_src>
import functools
import math

import numpy as np
import jax
import jax.numpy as jnp
from jax.experimental import pallas as pl
from jax.experimental.pallas import tpu as pltpu


# ---------------------------------------------------------------------------
# host-side (init-time) helpers: relative-position index, shift mask, combined bias
# ---------------------------------------------------------------------------

def get_relative_position_index(win_h, win_w):
    coords = np.stack(np.meshgrid(np.arange(win_h), np.arange(win_w), indexing="ij"))
    coords_flatten = coords.reshape(2, -1)
    rel = coords_flatten[:, :, None] - coords_flatten[:, None, :]
    rel = rel.transpose(1, 2, 0).copy()
    rel[:, :, 0] += win_h - 1
    rel[:, :, 1] += win_w - 1
    rel[:, :, 0] *= 2 * win_w - 1
    return rel.sum(-1)  # (N, N) int


def make_shift_attn_mask(H, W, win, shift):
    # Identical construction to the reference SwinTransformerBlock (img_mask partitioned
    # WITHOUT rolling, as in timm / official Swin).
    img_mask = np.zeros((H, W), np.float32)
    cnt = 0
    for h in (slice(0, -win), slice(-win, -shift), slice(-shift, None)):
        for w in (slice(0, -win), slice(-win, -shift), slice(-shift, None)):
            img_mask[h, w] = cnt
            cnt += 1
    m = img_mask.reshape(H // win, win, W // win, win).transpose(0, 2, 1, 3)
    m = m.reshape(-1, win * win)                       # (nW, N)
    am = m[:, None, :] - m[:, :, None]
    return np.where(am != 0, -100.0, 0.0).astype(np.float32)  # (nW, N, N)


def compute_window_maps(H, W, win, shift):
    # For each original token (row-major over H, W): which shifted window does it land in,
    # and at which local position within that window (matching torch.roll(-shift) +
    # window_partition ordering).
    hh, ww = np.meshgrid(np.arange(H), np.arange(W), indexing="ij")
    hs = (hh - shift) % H
    wsft = (ww - shift) % W
    win_id = (hs // win) * (W // win) + (wsft // win)   # (H, W)
    local = (hs % win) * win + (wsft % win)             # (H, W)
    return win_id.reshape(-1), local.reshape(-1)        # (L,), (L,)


def build_combined_bias(rel_bias_hnn, H, W, win, shift):
    # rel_bias_hnn: (heads, N, N) relative-position bias for one block.
    # Returns (heads, L, L): rel bias + shift mask for same-(shifted)-window token pairs,
    # -1e9 for cross-window pairs (exp underflows to exactly 0 in f32 -> identical softmax
    # to the windowed reference).
    L = H * W
    win_id, local = compute_window_maps(H, W, win, shift)
    same = win_id[:, None] == win_id[None, :]                         # (L, L)
    rb = rel_bias_hnn[:, local][:, :, local]                          # (heads, L, L)
    if shift > 0:
        am = make_shift_attn_mask(H, W, win, shift)                   # (nW, N, N)
        sm = am[win_id[:, None], local[:, None], local[None, :]]      # (L, L)
    else:
        sm = np.zeros((L, L), np.float32)
    combined = np.where(same[None], rb + sm[None], np.float32(-1e9))
    return combined.astype(np.float32)                                # (heads, L, L)


# ---------------------------------------------------------------------------
# fused Pallas kernel: whole BasicLayer (depth blocks), one batch element per grid step
# ---------------------------------------------------------------------------

PARAM_ORDER = ("norm1_g", "norm1_b", "wqkv", "bqkv", "wproj", "bproj",
               "norm2_g", "norm2_b", "w1", "b1", "w2", "b2", "bias")


def _layer_norm_f32(x, g, b):
    mu = jnp.mean(x, axis=-1, keepdims=True)
    var = jnp.mean((x - mu) ** 2, axis=-1, keepdims=True)
    return (x - mu) * jax.lax.rsqrt(var + 1e-5) * g + b


def _gelu_exact(x):
    # exact (erf-based) GELU matching torch nn.GELU(); erf via Abramowitz & Stegun 7.1.26
    # polynomial (|err| < 1.5e-7) so only exp (EUP) + mul/add (VPU) are needed.
    a1, a2, a3, a4, a5 = 0.254829592, -0.284496736, 1.421413741, -1.453152027, 1.061405429
    p = 0.3275911
    z = x * 0.7071067811865476
    az = jnp.abs(z)
    t = 1.0 / (1.0 + p * az)
    poly = ((((a5 * t + a4) * t + a3) * t + a2) * t + a1) * t
    erf_abs = 1.0 - poly * jnp.exp(-az * az)
    erf = jnp.where(z >= 0, erf_abs, -erf_abs)
    return 0.5 * x * (1.0 + erf)


def _swin_layer_kernel(x_ref, n1g_ref, n1b_ref, wqkv_ref, bqkv_ref, wproj_ref, bproj_ref,
                       n2g_ref, n2b_ref, w1_ref, b1_ref, w2_ref, b2_ref, bias_ref,
                       o_ref, attn_scr, *, depth, num_heads, head_dim, scale):
    Ca = num_heads * head_dim
    x = x_ref[0].astype(jnp.float32)                    # (L, C) residual stream in f32

    for d in range(depth):                              # static unroll over blocks
        # ---- LN1 (f32, VPU) ----
        xn = _layer_norm_f32(x, n1g_ref[d], n1b_ref[d])

        # ---- fused QKV projection (bf16 MXU, f32 accumulate) ----
        qkv = jnp.dot(xn.astype(jnp.bfloat16), wqkv_ref[d],
                      preferred_element_type=jnp.float32) + bqkv_ref[d]   # (L, 3*Ca)

        # ---- attention over ALL tokens; window structure + cyclic shift live entirely
        #      in the additive bias, so no roll / partition / reverse data movement. ----
        for h in range(num_heads):                      # static; outputs go to scratch
            qs = slice(h * head_dim, (h + 1) * head_dim)
            ks = slice(Ca + h * head_dim, Ca + (h + 1) * head_dim)
            vs = slice(2 * Ca + h * head_dim, 2 * Ca + (h + 1) * head_dim)
            qh = qkv[:, qs].astype(jnp.bfloat16)                      # (L, hd)
            kh_t = qkv[:, ks].T.astype(jnp.bfloat16)                  # (hd, L)
            s = jnp.dot(qh, kh_t, preferred_element_type=jnp.float32) * scale
            s = s + bias_ref[d, h]                                    # (L, L) f32
            s = s - jnp.max(s, axis=-1, keepdims=True)
            e = jnp.exp(s)
            p = e * pl.reciprocal(jnp.sum(e, axis=-1, keepdims=True), approx=True)
            oh = jnp.dot(p.astype(jnp.bfloat16), qkv[:, vs].astype(jnp.bfloat16),
                         preferred_element_type=jnp.float32)          # (L, hd)
            attn_scr[:, qs] = oh                        # assemble heads in VMEM (no concat)

        attn = jnp.dot(attn_scr[...].astype(jnp.bfloat16), wproj_ref[d],
                       preferred_element_type=jnp.float32) + bproj_ref[d]
        x = x + attn                                    # residual 1

        # ---- LN2 + MLP (bf16 MXU matmuls, f32 GELU) ----
        xn2 = _layer_norm_f32(x, n2g_ref[d], n2b_ref[d])
        hh = jnp.dot(xn2.astype(jnp.bfloat16), w1_ref[d],
                     preferred_element_type=jnp.float32) + b1_ref[d]
        hh = _gelu_exact(hh)
        mm = jnp.dot(hh.astype(jnp.bfloat16), w2_ref[d],
                     preferred_element_type=jnp.float32) + b2_ref[d]
        x = x + mm                                      # residual 2

    o_ref[0] = x.astype(o_ref.dtype)                    # single (L, C) writeback


def _full_block(arr):
    nd = arr.ndim
    return pl.BlockSpec(arr.shape, lambda b, _n=nd: (0,) * _n)


def basic_layer_forward(x, params, *, num_heads, head_dim, depth):
    B, L, C = x.shape
    attn_dim = num_heads * head_dim
    scale = head_dim ** (-0.5)
    kernel = functools.partial(_swin_layer_kernel, depth=depth, num_heads=num_heads,
                               head_dim=head_dim, scale=scale)
    in_specs = [pl.BlockSpec((1, L, C), lambda b: (b, 0, 0))]
    in_specs += [_full_block(params[k]) for k in PARAM_ORDER]
    return pl.pallas_call(
        kernel,
        out_shape=jax.ShapeDtypeStruct((B, L, C), x.dtype),
        grid=(B,),
        in_specs=in_specs,
        out_specs=pl.BlockSpec((1, L, C), lambda b: (b, 0, 0)),
        scratch_shapes=[pltpu.VMEM((L, attn_dim), jnp.float32)],
        compiler_params=pltpu.CompilerParams(dimension_semantics=("parallel",)),
    )(x, *[params[k] for k in PARAM_ORDER])


# ---------------------------------------------------------------------------
# deterministic synthetic parameter init (shapes follow the nn.Module __init__)
# ---------------------------------------------------------------------------

def init_basic_layer_params(key, dim, input_resolution, depth, num_heads, window_size, mlp_ratio):
    head_dim = dim // num_heads
    attn_dim = head_dim * num_heads
    H, W = input_resolution
    N = window_size * window_size
    hidden = int(dim * mlp_ratio)
    rel_index = get_relative_position_index(window_size, window_size)     # (N, N)

    acc = {k: [] for k in PARAM_ORDER}
    rel_bias_blocks = []
    for i in range(depth):
        shift = 0 if i % 2 == 0 else window_size // 2
        keys = jax.random.split(jax.random.fold_in(key, i), 5)
        table = 0.02 * jax.random.truncated_normal(
            keys[0], -2.0, 2.0, ((2 * window_size - 1) ** 2, num_heads), jnp.float32)
        table_np = np.asarray(table)
        rel_bias = table_np[rel_index.reshape(-1)].reshape(N, N, num_heads).transpose(2, 0, 1)
        rel_bias_blocks.append(rel_bias.astype(np.float32))
        combined = build_combined_bias(rel_bias.astype(np.float32), H, W, window_size, shift)

        acc["norm1_g"].append(np.ones((1, dim), np.float32))
        acc["norm1_b"].append(np.zeros((1, dim), np.float32))
        acc["norm2_g"].append(np.ones((1, dim), np.float32))
        acc["norm2_b"].append(np.zeros((1, dim), np.float32))
        acc["wqkv"].append(np.asarray(0.02 * jax.random.normal(keys[1], (dim, 3 * attn_dim), jnp.float32)))
        acc["bqkv"].append(np.zeros((1, 3 * attn_dim), np.float32))
        acc["wproj"].append(np.asarray(0.02 * jax.random.normal(keys[2], (attn_dim, dim), jnp.float32)))
        acc["bproj"].append(np.zeros((1, dim), np.float32))
        acc["w1"].append(np.asarray(0.02 * jax.random.normal(keys[3], (dim, hidden), jnp.float32)))
        acc["b1"].append(np.zeros((1, hidden), np.float32))
        acc["w2"].append(np.asarray(0.02 * jax.random.normal(keys[4], (hidden, dim), jnp.float32)))
        acc["b2"].append(np.zeros((1, dim), np.float32))
        acc["bias"].append(combined)

    bf16_keys = {"wqkv", "wproj", "w1", "w2"}            # weight matrices stored bf16 for MXU
    params = {}
    for k, v in acc.items():
        arr = jnp.asarray(np.stack(v, axis=0))
        params[k] = arr.astype(jnp.bfloat16) if k in bf16_keys else arr
    return params, rel_bias_blocks, head_dim


# ---------------------------------------------------------------------------
# pure-numpy reference: direct port of the torch windowed forward (cross-check only)
# ---------------------------------------------------------------------------

_erf_vec = np.vectorize(math.erf)


def _np_gelu(x):
    return 0.5 * x * (1.0 + _erf_vec(x / math.sqrt(2.0)))


def reference_forward(x, params, rel_bias_blocks, *, input_resolution, window_size,
                      num_heads, head_dim, depth):
    H, W = input_resolution
    win = window_size
    B, L, C = x.shape
    nW = (H // win) * (W // win)
    N = win * win
    Ca = num_heads * head_dim
    scale = head_dim ** (-0.5)

    def f32(a):
        return np.asarray(jnp.asarray(a, jnp.float32))

    def ln(v, g, b):
        mu = v.mean(-1, keepdims=True)
        var = ((v - mu) ** 2).mean(-1, keepdims=True)
        return (v - mu) / np.sqrt(var + 1e-5) * g + b

    def softmax(a):
        a = a - a.max(-1, keepdims=True)
        e = np.exp(a)
        return e / e.sum(-1, keepdims=True)

    x = np.asarray(x, np.float32)
    for d in range(depth):
        shift = 0 if d % 2 == 0 else win // 2
        g1, be1 = f32(params["norm1_g"][d, 0]), f32(params["norm1_b"][d, 0])
        g2, be2 = f32(params["norm2_g"][d, 0]), f32(params["norm2_b"][d, 0])
        wqkv, bqkv = f32(params["wqkv"][d]), f32(params["bqkv"][d, 0])
        wproj, bproj = f32(params["wproj"][d]), f32(params["bproj"][d, 0])
        w1, b1 = f32(params["w1"][d]), f32(params["b1"][d, 0])
        w2, b2 = f32(params["w2"][d]), f32(params["b2"][d, 0])

        shortcut = x
        xn = ln(x, g1, be1).reshape(B, H, W, C)
        if shift > 0:
            xn = np.roll(xn, (-shift, -shift), axis=(1, 2))
        xw = xn.reshape(B, H // win, win, W // win, win, C).transpose(0, 1, 3, 2, 4, 5)
        xw = xw.reshape(B * nW, N, C)
        qkv = xw @ wqkv + bqkv
        q, k, v = qkv[..., :Ca], qkv[..., Ca:2 * Ca], qkv[..., 2 * Ca:]

        def to_heads(t):
            return t.reshape(B * nW, N, num_heads, head_dim).transpose(0, 2, 1, 3)

        qh, kh, vh = to_heads(q) * scale, to_heads(k), to_heads(v)
        attn = qh @ kh.transpose(0, 1, 3, 2) + rel_bias_blocks[d][None]
        if shift > 0:
            am = make_shift_attn_mask(H, W, win, shift)
            attn = attn.reshape(B, nW, num_heads, N, N) + am[None, :, None]
            attn = attn.reshape(B * nW, num_heads, N, N)
        attn = softmax(attn)
        o = (attn @ vh).transpose(0, 2, 1, 3).reshape(B * nW, N, Ca)
        o = o @ wproj + bproj
        o = o.reshape(B, H // win, W // win, win, win, C).transpose(0, 1, 3, 2, 4, 5)
        o = o.reshape(B, H, W, C)
        if shift > 0:
            o = np.roll(o, (shift, shift), axis=(1, 2))
        x = shortcut + o.reshape(B, L, C)
        xn2 = ln(x, g2, be2)
        hmid = _np_gelu(xn2 @ w1 + b1)
        x = x + (hmid @ w2 + b2)
    return x


# ---------------------------------------------------------------------------

if __name__ == "__main__":
    dim = 32
    input_resolution = (8, 8)
    depth = 2               # block 0: W-MSA (shift 0), block 1: SW-MSA (shift = window//2)
    num_heads = 4
    window_size = 4
    mlp_ratio = 4.0
    B = 2
    H, W = input_resolution

    key = jax.random.PRNGKey(0)
    kx, kp = jax.random.split(key)
    x = jax.random.normal(kx, (B, H * W, dim), jnp.float32)

    params, rel_bias_blocks, head_dim = init_basic_layer_params(
        kp, dim, input_resolution, depth, num_heads, window_size, mlp_ratio)

    fwd = jax.jit(functools.partial(
        basic_layer_forward, num_heads=num_heads, head_dim=head_dim, depth=depth))

    out = fwd(x, params)
    jax.block_until_ready(out)
    assert out.shape == (B, H * W, dim)

    out_np = np.asarray(out)
    assert np.isfinite(out_np).all()
    ref = reference_forward(np.asarray(x), params, rel_bias_blocks,
                            input_resolution=input_resolution, window_size=window_size,
                            num_heads=num_heads, head_dim=head_dim, depth=depth)
    max_err = float(np.max(np.abs(out_np - ref)))
    assert max_err < 3e-2, f"max abs err vs windowed reference: {max_err}"
    print("KERNEL_OK")
</pallas_src>

<mosaic_0001>
module attributes {stable_mosaic.version = 11 : i64} {
  func.func @_swin_layer_kernel(%arg0: i32, %arg1: memref<1x64x32xf32, #tpu.memory_space<vmem>>, %arg2: memref<2x1x32xf32, #tpu.memory_space<vmem>>, %arg3: memref<2x1x32xf32, #tpu.memory_space<vmem>>, %arg4: memref<2x32x96xbf16, #tpu.memory_space<vmem>>, %arg5: memref<2x1x96xf32, #tpu.memory_space<vmem>>, %arg6: memref<2x32x32xbf16, #tpu.memory_space<vmem>>, %arg7: memref<2x1x32xf32, #tpu.memory_space<vmem>>, %arg8: memref<2x1x32xf32, #tpu.memory_space<vmem>>, %arg9: memref<2x1x32xf32, #tpu.memory_space<vmem>>, %arg10: memref<2x32x128xbf16, #tpu.memory_space<vmem>>, %arg11: memref<2x1x128xf32, #tpu.memory_space<vmem>>, %arg12: memref<2x128x32xbf16, #tpu.memory_space<vmem>>, %arg13: memref<2x1x32xf32, #tpu.memory_space<vmem>>, %arg14: memref<2x4x64x64xf32, #tpu.memory_space<vmem>>, %arg15: memref<1x64x32xf32, #tpu.memory_space<vmem>>, %arg16: memref<64x32xf32, #tpu.memory_space<vmem>>) attributes {dimension_semantics = [#tpu.dimension_semantics<parallel>], iteration_bounds = array<i64: 2>, scalar_prefetch = 0 : i64, scratch_operands = 1 : i64, tpu.core_type = #tpu.core_type<tc>, window_params = [{transform_indices = @transform_0, window_bounds = array<i64: 1, 64, 32>}, {pipeline_mode = #tpu.pipeline_mode<synchronous>, transform_indices = @transform_1, window_bounds = array<i64: 2, 1, 32>}, {pipeline_mode = #tpu.pipeline_mode<synchronous>, transform_indices = @transform_2, window_bounds = array<i64: 2, 1, 32>}, {pipeline_mode = #tpu.pipeline_mode<synchronous>, transform_indices = @transform_3, window_bounds = array<i64: 2, 32, 96>}, {pipeline_mode = #tpu.pipeline_mode<synchronous>, transform_indices = @transform_4, window_bounds = array<i64: 2, 1, 96>}, {pipeline_mode = #tpu.pipeline_mode<synchronous>, transform_indices = @transform_5, window_bounds = array<i64: 2, 32, 32>}, {pipeline_mode = #tpu.pipeline_mode<synchronous>, transform_indices = @transform_6, window_bounds = array<i64: 2, 1, 32>}, {pipeline_mode = #tpu.pipeline_mode<synchronous>, transform_indices = @transform_7, window_bounds = array<i64: 2, 1, 32>}, {pipeline_mode = #tpu.pipeline_mode<synchronous>, transform_indices = @transform_8, window_bounds = array<i64: 2, 1, 32>}, {pipeline_mode = #tpu.pipeline_mode<synchronous>, transform_indices = @transform_9, window_bounds = array<i64: 2, 32, 128>}, {pipeline_mode = #tpu.pipeline_mode<synchronous>, transform_indices = @transform_10, window_bounds = array<i64: 2, 1, 128>}, {pipeline_mode = #tpu.pipeline_mode<synchronous>, transform_indices = @transform_11, window_bounds = array<i64: 2, 128, 32>}, {pipeline_mode = #tpu.pipeline_mode<synchronous>, transform_indices = @transform_12, window_bounds = array<i64: 2, 1, 32>}, {pipeline_mode = #tpu.pipeline_mode<synchronous>, transform_indices = @transform_13, window_bounds = array<i64: 2, 4, 64, 64>}, {transform_indices = @transform_14, window_bounds = array<i64: 1, 64, 32>}]} {
    %c0 = arith.constant 0 : index
    %c0_0 = arith.constant 0 : index
    %c0_1 = arith.constant 0 : index
    %0 = vector.load %arg1[%c0, %c0_0, %c0_1] : memref<1x64x32xf32, #tpu.memory_space<vmem>>, vector<1x64x32xf32>
    %1 = vector.shape_cast %0 : vector<1x64x32xf32> to vector<64x32xf32>
    %c0_2 = arith.constant 0 : index
    %c0_3 = arith.constant 0 : index
    %c0_4 = arith.constant 0 : index
    %2 = vector.load %arg2[%c0_2, %c0_3, %c0_4] : memref<2x1x32xf32, #tpu.memory_space<vmem>>, vector<1x1x32xf32>
    %3 = vector.shape_cast %2 : vector<1x1x32xf32> to vector<1x32xf32>
    %c0_5 = arith.constant 0 : index
    %c0_6 = arith.constant 0 : index
    %c0_7 = arith.constant 0 : index
    %4 = vector.load %arg3[%c0_5, %c0_6, %c0_7] : memref<2x1x32xf32, #tpu.memory_space<vmem>>, vector<1x1x32xf32>
    %5 = vector.shape_cast %4 : vector<1x1x32xf32> to vector<1x32xf32>
    %cst = arith.constant dense<0.000000e+00> : vector<64xf32>
    %6 = vector.multi_reduction <add>, %1, %cst [1] : vector<64x32xf32> to vector<64xf32>
    %7 = vector.shape_cast %6 : vector<64xf32> to vector<64x1xf32>
    %cst_8 = arith.constant 3.200000e+01 : f32
    %8 = vector.broadcast %cst_8 : f32 to vector<64x1xf32>
    %9 = arith.divf %7, %8 : vector<64x1xf32>
    %10 = vector.broadcast %9 : vector<64x1xf32> to vector<64x32xf32>
    %11 = arith.subf %1, %10 : vector<64x32xf32>
    %12 = arith.mulf %11, %11 : vector<64x32xf32>
    %cst_9 = arith.constant dense<0.000000e+00> : vector<64xf32>
    %13 = vector.multi_reduction <add>, %12, %cst_9 [1] : vector<64x32xf32> to vector<64xf32>
    %14 = vector.shape_cast %13 : vector<64xf32> to vector<64x1xf32>
    %cst_10 = arith.constant 3.200000e+01 : f32
    %15 = vector.broadcast %cst_10 : f32 to vector<64x1xf32>
    %16 = arith.divf %14, %15 : vector<64x1xf32>
    %17 = vector.broadcast %9 : vector<64x1xf32> to vector<64x32xf32>
    %18 = arith.subf %1, %17 : vector<64x32xf32>
    %cst_11 = arith.constant 9.99999974E-6 : f32
    %19 = vector.broadcast %cst_11 : f32 to vector<64x1xf32>
    %20 = arith.addf %16, %19 : vector<64x1xf32>
    %21 = math.rsqrt %20 : vector<64x1xf32>
    %22 = vector.broadcast %21 : vector<64x1xf32> to vector<64x32xf32>
    %23 = arith.mulf %18, %22 : vector<64x32xf32>
    %24 = vector.broadcast %3 : vector<1x32xf32> to vector<64x32xf32>
    %25 = arith.mulf %23, %24 : vector<64x32xf32>
    %26 = vector.broadcast %5 : vector<1x32xf32> to vector<64x32xf32>
    %27 = arith.addf %25, %26 : vector<64x32xf32>
    %28 = arith.truncf %27 : vector<64x32xf32> to vector<64x32xbf16>
    %c0_12 = arith.constant 0 : index
    %c0_13 = arith.constant 0 : index
    %c0_14 = arith.constant 0 : index
    %29 = vector.load %arg4[%c0_12, %c0_13, %c0_14] : memref<2x32x96xbf16, #tpu.memory_space<vmem>>, vector<1x32x96xbf16>
    %30 = vector.shape_cast %29 : vector<1x32x96xbf16> to vector<32x96xbf16>
    %cst_15 = arith.constant dense<0.000000e+00> : vector<64x96xf32>
    %31 = tpu.matmul %28, %30, %cst_15 {dimension_numbers = #tpu.dot_dimension_numbers<[1], [0], [0], [1], [0, 0, 1, 1], [], []>} : vector<64x32xbf16>, vector<32x96xbf16>, vector<64x96xf32> -> vector<64x96xf32>
    %c0_16 = arith.constant 0 : index
    %c0_17 = arith.constant 0 : index
    %c0_18 = arith.constant 0 : index
    %32 = vector.load %arg5[%c0_16, %c0_17, %c0_18] : memref<2x1x96xf32, #tpu.memory_space<vmem>>, vector<1x1x96xf32>
    %33 = vector.shape_cast %32 : vector<1x1x96xf32> to vector<1x96xf32>
    %34 = vector.broadcast %33 : vector<1x96xf32> to vector<64x96xf32>
    %35 = arith.addf %31, %34 : vector<64x96xf32>
    %36 = vector.extract_strided_slice %35 {offsets = [0, 0], sizes = [64, 8], strides = [1, 1]} : vector<64x96xf32> to vector<64x8xf32>
    %37 = arith.truncf %36 : vector<64x8xf32> to vector<64x8xbf16>
    %38 = vector.extract_strided_slice %35 {offsets = [0, 32], sizes = [64, 8], strides = [1, 1]} : vector<64x96xf32> to vector<64x8xf32>
    %39 = tpu.transpose %38, [1, 0] : vector<64x8xf32> -> vector<8x64xf32>
    %40 = arith.truncf %39 : vector<8x64xf32> to vector<8x64xbf16>
    %cst_19 = arith.constant dense<0.000000e+00> : vector<64x64xf32>
    %41 = tpu.matmul %37, %40, %cst_19 {dimension_numbers = #tpu.dot_dimension_numbers<[1], [0], [0], [1], [0, 0, 1, 1], [], []>} : vector<64x8xbf16>, vector<8x64xbf16>, vector<64x64xf32> -> vector<64x64xf32>
    %cst_20 = arith.constant 0.353553385 : f32
    %42 = vector.broadcast %cst_20 : f32 to vector<64x64xf32>
    %43 = arith.mulf %41, %42 : vector<64x64xf32>
    %c0_21 = arith.constant 0 : index
    %c0_22 = arith.constant 0 : index
    %c0_23 = arith.constant 0 : index
    %c0_24 = arith.constant 0 : index
    %44 = vector.load %arg14[%c0_21, %c0_22, %c0_23, %c0_24] : memref<2x4x64x64xf32, #tpu.memory_space<vmem>>, vector<1x1x64x64xf32>
    %45 = vector.shape_cast %44 : vector<1x1x64x64xf32> to vector<64x64xf32>
    %46 = arith.addf %43, %45 : vector<64x64xf32>
    %cst_25 = arith.constant dense<0xFF800000> : vector<64xf32>
    %47 = vector.multi_reduction <maximumf>, %46, %cst_25 [1] : vector<64x64xf32> to vector<64xf32>
    %48 = vector.shape_cast %47 : vector<64xf32> to vector<64x1xf32>
    %49 = vector.broadcast %48 : vector<64x1xf32> to vector<64x64xf32>
    %50 = arith.subf %46, %49 : vector<64x64xf32>
    %51 = math.exp %50 : vector<64x64xf32>
    %cst_26 = arith.constant dense<0.000000e+00> : vector<64xf32>
    %52 = vector.multi_reduction <add>, %51, %cst_26 [1] : vector<64x64xf32> to vector<64xf32>
    %53 = vector.shape_cast %52 : vector<64xf32> to vector<64x1xf32>
    %54 = tpu.reciprocal %53 {approx = true} : vector<64x1xf32> -> vector<64x1xf32>
    %55 = vector.broadcast %54 : vector<64x1xf32> to vector<64x64xf32>
    %56 = arith.mulf %51, %55 : vector<64x64xf32>
    %57 = arith.truncf %56 : vector<64x64xf32> to vector<64x64xbf16>
    %58 = vector.extract_strided_slice %35 {offsets = [0, 64], sizes = [64, 8], strides = [1, 1]} : vector<64x96xf32> to vector<64x8xf32>
    %59 = arith.truncf %58 : vector<64x8xf32> to vector<64x8xbf16>
    %cst_27 = arith.constant dense<0.000000e+00> : vector<64x8xf32>
    %60 = tpu.matmul %57, %59, %cst_27 {dimension_numbers = #tpu.dot_dimension_numbers<[1], [0], [0], [1], [0, 0, 1, 1], [], []>} : vector<64x64xbf16>, vector<64x8xbf16>, vector<64x8xf32> -> vector<64x8xf32>
    %c0_28 = arith.constant 0 : index
    %c0_29 = arith.constant 0 : index
    %61 = vector.load %arg16[%c0_28, %c0_29] : memref<64x32xf32, #tpu.memory_space<vmem>>, vector<64x8xf32>
    tpu.vector_store %arg16[%c0_28, %c0_29], %60 {strides = array<i32>} : memref<64x32xf32, #tpu.memory_space<vmem>>, vector<64x8xf32>,
    %62 = vector.extract_strided_slice %35 {offsets = [0, 8], sizes = [64, 8], strides = [1, 1]} : vector<64x96xf32> to vector<64x8xf32>
    %63 = arith.truncf %62 : vector<64x8xf32> to vector<64x8xbf16>
    %64 = vector.extract_strided_slice %35 {offsets = [0, 40], sizes = [64, 8], strides = [1, 1]} : vector<64x96xf32> to vector<64x8xf32>
    %65 = tpu.transpose %64, [1, 0] : vector<64x8xf32> -> vector<8x64xf32>
    %66 = arith.truncf %65 : vector<8x64xf32> to vector<8x64xbf16>
    %cst_30 = arith.constant dense<0.000000e+00> : vector<64x64xf32>
    %67 = tpu.matmul %63, %66, %cst_30 {dimension_numbers = #tpu.dot_dimension_numbers<[1], [0], [0], [1], [0, 0, 1, 1], [], []>} : vector<64x8xbf16>, vector<8x64xbf16>, vector<64x64xf32> -> vector<64x64xf32>
    %cst_31 = arith.constant 0.353553385 : f32
    %68 = vector.broadcast %cst_31 : f32 to vector<64x64xf32>
    %69 = arith.mulf %67, %68 : vector<64x64xf32>
    %c0_32 = arith.constant 0 : index
    %c1 = arith.constant 1 : index
    %c0_33 = arith.constant 0 : index
    %c0_34 = arith.constant 0 : index
    %70 = vector.load %arg14[%c0_32, %c1, %c0_33, %c0_34] : memref<2x4x64x64xf32, #tpu.memory_space<vmem>>, vector<1x1x64x64xf32>
    %71 = vector.shape_cast %70 : vector<1x1x64x64xf32> to vector<64x64xf32>
    %72 = arith.addf %69, %71 : vector<64x64xf32>
    %cst_35 = arith.constant dense<0xFF800000> : vector<64xf32>
    %73 = vector.multi_reduction <maximumf>, %72, %cst_35 [1] : vector<64x64xf32> to vector<64xf32>
    %74 = vector.shape_cast %73 : vector<64xf32> to vector<64x1xf32>
    %75 = vector.broadcast %74 : vector<64x1xf32> to vector<64x64xf32>
    %76 = arith.subf %72, %75 : vector<64x64xf32>
    %77 = math.exp %76 : vector<64x64xf32>
    %cst_36 = arith.constant dense<0.000000e+00> : vector<64xf32>
    %78 = vector.multi_reduction <add>, %77, %cst_36 [1] : vector<64x64xf32> to vector<64xf32>
    %79 = vector.shape_cast %78 : vector<64xf32> to vector<64x1xf32>
    %80 = tpu.reciprocal %79 {approx = true} : vector<64x1xf32> -> vector<64x1xf32>
    %81 = vector.broadcast %80 : vector<64x1xf32> to vector<64x64xf32>
    %82 = arith.mulf %77, %81 : vector<64x64xf32>
    %83 = arith.truncf %82 : vector<64x64xf32> to vector<64x64xbf16>
    %84 = vector.extract_strided_slice %35 {offsets = [0, 72], sizes = [64, 8], strides = [1, 1]} : vector<64x96xf32> to vector<64x8xf32>
    %85 = arith.truncf %84 : vector<64x8xf32> to vector<64x8xbf16>
    %cst_37 = arith.constant dense<0.000000e+00> : vector<64x8xf32>
    %86 = tpu.matmul %83, %85, %cst_37 {dimension_numbers = #tpu.dot_dimension_numbers<[1], [0], [0], [1], [0, 0, 1, 1], [], []>} : vector<64x64xbf16>, vector<64x8xbf16>, vector<64x8xf32> -> vector<64x8xf32>
    %c0_38 = arith.constant 0 : index
    %c8 = arith.constant 8 : index
    %87 = vector.load %arg16[%c0_38, %c8] : memref<64x32xf32, #tpu.memory_space<vmem>>, vector<64x8xf32>
    tpu.vector_store %arg16[%c0_38, %c8], %86 {strides = array<i32>} : memref<64x32xf32, #tpu.memory_space<vmem>>, vector<64x8xf32>,
    %88 = vector.extract_strided_slice %35 {offsets = [0, 16], sizes = [64, 8], strides = [1, 1]} : vector<64x96xf32> to vector<64x8xf32>
    %89 = arith.truncf %88 : vector<64x8xf32> to vector<64x8xbf16>
    %90 = vector.extract_strided_slice %35 {offsets = [0, 48], sizes = [64, 8], strides = [1, 1]} : vector<64x96xf32> to vector<64x8xf32>
    %91 = tpu.transpose %90, [1, 0] : vector<64x8xf32> -> vector<8x64xf32>
    %92 = arith.truncf %91 : vector<8x64xf32> to vector<8x64xbf16>
    %cst_39 = arith.constant dense<0.000000e+00> : vector<64x64xf32>
    %93 = tpu.matmul %89, %92, %cst_39 {dimension_numbers = #tpu.dot_dimension_numbers<[1], [0], [0], [1], [0, 0, 1, 1], [], []>} : vector<64x8xbf16>, vector<8x64xbf16>, vector<64x64xf32> -> vector<64x64xf32>
    %cst_40 = arith.constant 0.353553385 : f32
    %94 = vector.broadcast %cst_40 : f32 to vector<64x64xf32>
    %95 = arith.mulf %93, %94 : vector<64x64xf32>
    %c0_41 = arith.constant 0 : index
    %c2 = arith.constant 2 : index
    %c0_42 = arith.constant 0 : index
    %c0_43 = arith.constant 0 : index
    %96 = vector.load %arg14[%c0_41, %c2, %c0_42, %c0_43] : memref<2x4x64x64xf32, #tpu.memory_space<vmem>>, vector<1x1x64x64xf32>
    %97 = vector.shape_cast %96 : vector<1x1x64x64xf32> to vector<64x64xf32>
    %98 = arith.addf %95, %97 : vector<64x64xf32>
    %cst_44 = arith.constant dense<0xFF800000> : vector<64xf32>
    %99 = vector.multi_reduction <maximumf>, %98, %cst_44 [1] : vector<64x64xf32> to vector<64xf32>
    %100 = vector.shape_cast %99 : vector<64xf32> to vector<64x1xf32>
    %101 = vector.broadcast %100 : vector<64x1xf32> to vector<64x64xf32>
    %102 = arith.subf %98, %101 : vector<64x64xf32>
    %103 = math.exp %102 : vector<64x64xf32>
    %cst_45 = arith.constant dense<0.000000e+00> : vector<64xf32>
    %104 = vector.multi_reduction <add>, %103, %cst_45 [1] : vector<64x64xf32> to vector<64xf32>
    %105 = vector.shape_cast %104 : vector<64xf32> to vector<64x1xf32>
    %106 = tpu.reciprocal %105 {approx = true} : vector<64x1xf32> -> vector<64x1xf32>
    %107 = vector.broadcast %106 : vector<64x1xf32> to vector<64x64xf32>
    %108 = arith.mulf %103, %107 : vector<64x64xf32>
    %109 = arith.truncf %108 : vector<64x64xf32> to vector<64x64xbf16>
    %110 = vector.extract_strided_slice %35 {offsets = [0, 80], sizes = [64, 8], strides = [1, 1]} : vector<64x96xf32> to vector<64x8xf32>
    %111 = arith.truncf %110 : vector<64x8xf32> to vector<64x8xbf16>
    %cst_46 = arith.constant dense<0.000000e+00> : vector<64x8xf32>
    %112 = tpu.matmul %109, %111, %cst_46 {dimension_numbers = #tpu.dot_dimension_numbers<[1], [0], [0], [1], [0, 0, 1, 1], [], []>} : vector<64x64xbf16>, vector<64x8xbf16>, vector<64x8xf32> -> vector<64x8xf32>
    %c0_47 = arith.constant 0 : index
    %c16 = arith.constant 16 : index
    %113 = vector.load %arg16[%c0_47, %c16] : memref<64x32xf32, #tpu.memory_space<vmem>>, vector<64x8xf32>
    tpu.vector_store %arg16[%c0_47, %c16], %112 {strides = array<i32>} : memref<64x32xf32, #tpu.memory_space<vmem>>, vector<64x8xf32>,
    %114 = vector.extract_strided_slice %35 {offsets = [0, 24], sizes = [64, 8], strides = [1, 1]} : vector<64x96xf32> to vector<64x8xf32>
    %115 = arith.truncf %114 : vector<64x8xf32> to vector<64x8xbf16>
    %116 = vector.extract_strided_slice %35 {offsets = [0, 56], sizes = [64, 8], strides = [1, 1]} : vector<64x96xf32> to vector<64x8xf32>
    %117 = tpu.transpose %116, [1, 0] : vector<64x8xf32> -> vector<8x64xf32>
    %118 = arith.truncf %117 : vector<8x64xf32> to vector<8x64xbf16>
    %cst_48 = arith.constant dense<0.000000e+00> : vector<64x64xf32>
    %119 = tpu.matmul %115, %118, %cst_48 {dimension_numbers = #tpu.dot_dimension_numbers<[1], [0], [0], [1], [0, 0, 1, 1], [], []>} : vector<64x8xbf16>, vector<8x64xbf16>, vector<64x64xf32> -> vector<64x64xf32>
    %cst_49 = arith.constant 0.353553385 : f32
    %120 = vector.broadcast %cst_49 : f32 to vector<64x64xf32>
    %121 = arith.mulf %119, %120 : vector<64x64xf32>
    %c0_50 = arith.constant 0 : index
    %c3 = arith.constant 3 : index
    %c0_51 = arith.constant 0 : index
    %c0_52 = arith.constant 0 : index
    %122 = vector.load %arg14[%c0_50, %c3, %c0_51, %c0_52] : memref<2x4x64x64xf32, #tpu.memory_space<vmem>>, vector<1x1x64x64xf32>
    %123 = vector.shape_cast %122 : vector<1x1x64x64xf32> to vector<64x64xf32>
    %124 = arith.addf %121, %123 : vector<64x64xf32>
    %cst_53 = arith.constant dense<0xFF800000> : vector<64xf32>
    %125 = vector.multi_reduction <maximumf>, %124, %cst_53 [1] : vector<64x64xf32> to vector<64xf32>
    %126 = vector.shape_cast %125 : vector<64xf32> to vector<64x1xf32>
    %127 = vector.broadcast %126 : vector<64x1xf32> to vector<64x64xf32>
    %128 = arith.subf %124, %127 : vector<64x64xf32>
    %129 = math.exp %128 : vector<64x64xf32>
    %cst_54 = arith.constant dense<0.000000e+00> : vector<64xf32>
    %130 = vector.multi_reduction <add>, %129, %cst_54 [1] : vector<64x64xf32> to vector<64xf32>
    %131 = vector.shape_cast %130 : vector<64xf32> to vector<64x1xf32>
    %132 = tpu.reciprocal %131 {approx = true} : vector<64x1xf32> -> vector<64x1xf32>
    %133 = vector.broadcast %132 : vector<64x1xf32> to vector<64x64xf32>
    %134 = arith.mulf %129, %133 : vector<64x64xf32>
    %135 = arith.truncf %134 : vector<64x64xf32> to vector<64x64xbf16>
    %136 = vector.extract_strided_slice %35 {offsets = [0, 88], sizes = [64, 8], strides = [1, 1]} : vector<64x96xf32> to vector<64x8xf32>
    %137 = arith.truncf %136 : vector<64x8xf32> to vector<64x8xbf16>
    %cst_55 = arith.constant dense<0.000000e+00> : vector<64x8xf32>
    %138 = tpu.matmul %135, %137, %cst_55 {dimension_numbers = #tpu.dot_dimension_numbers<[1], [0], [0], [1], [0, 0, 1, 1], [], []>} : vector<64x64xbf16>, vector<64x8xbf16>, vector<64x8xf32> -> vector<64x8xf32>
    %c0_56 = arith.constant 0 : index
    %c24 = arith.constant 24 : index
    %139 = vector.load %arg16[%c0_56, %c24] : memref<64x32xf32, #tpu.memory_space<vmem>>, vector<64x8xf32>
    tpu.vector_store %arg16[%c0_56, %c24], %138 {strides = array<i32>} : memref<64x32xf32, #tpu.memory_space<vmem>>, vector<64x8xf32>,
    %c0_57 = arith.constant 0 : index
    %c0_58 = arith.constant 0 : index
    %140 = vector.load %arg16[%c0_57, %c0_58] : memref<64x32xf32, #tpu.memory_space<vmem>>, vector<64x32xf32>
    %141 = arith.truncf %140 : vector<64x32xf32> to vector<64x32xbf16>
    %c0_59 = arith.constant 0 : index
    %c0_60 = arith.constant 0 : index
    %c0_61 = arith.constant 0 : index
    %142 = vector.load %arg6[%c0_59, %c0_60, %c0_61] : memref<2x32x32xbf16, #tpu.memory_space<vmem>>, vector<1x32x32xbf16>
    %143 = vector.shape_cast %142 : vector<1x32x32xbf16> to vector<32x32xbf16>
    %cst_62 = arith.constant dense<0.000000e+00> : vector<64x32xf32>
    %144 = tpu.matmul %141, %143, %cst_62 {dimension_numbers = #tpu.dot_dimension_numbers<[1], [0], [0], [1], [0, 0, 1, 1], [], []>} : vector<64x32xbf16>, vector<32x32xbf16>, vector<64x32xf32> -> vector<64x32xf32>
    %c0_63 = arith.constant 0 : index
    %c0_64 = arith.constant 0 : index
    %c0_65 = arith.constant 0 : index
    %145 = vector.load %arg7[%c0_63, %c0_64, %c0_65] : memref<2x1x32xf32, #tpu.memory_space<vmem>>, vector<1x1x32xf32>
    %146 = vector.shape_cast %145 : vector<1x1x32xf32> to vector<1x32xf32>
    %147 = vector.broadcast %146 : vector<1x32xf32> to vector<64x32xf32>
    %148 = arith.addf %144, %147 : vector<64x32xf32>
    %149 = arith.addf %1, %148 : vector<64x32xf32>
    %c0_66 = arith.constant 0 : index
    %c0_67 = arith.constant 0 : index
    %c0_68 = arith.constant 0 : index
    %150 = vector.load %arg8[%c0_66, %c0_67, %c0_68] : memref<2x1x32xf32, #tpu.memory_space<vmem>>, vector<1x1x32xf32>
    %151 = vector.shape_cast %150 : vector<1x1x32xf32> to vector<1x32xf32>
    %c0_69 = arith.constant 0 : index
    %c0_70 = arith.constant 0 : index
    %c0_71 = arith.constant 0 : index
    %152 = vector.load %arg9[%c0_69, %c0_70, %c0_71] : memref<2x1x32xf32, #tpu.memory_space<vmem>>, vector<1x1x32xf32>
    %153 = vector.shape_cast %152 : vector<1x1x32xf32> to vector<1x32xf32>
    %cst_72 = arith.constant dense<0.000000e+00> : vector<64xf32>
    %154 = vector.multi_reduction <add>, %149, %cst_72 [1] : vector<64x32xf32> to vector<64xf32>
    %155 = vector.shape_cast %154 : vector<64xf32> to vector<64x1xf32>
    %cst_73 = arith.constant 3.200000e+01 : f32
    %156 = vector.broadcast %cst_73 : f32 to vector<64x1xf32>
    %157 = arith.divf %155, %156 : vector<64x1xf32>
    %158 = vector.broadcast %157 : vector<64x1xf32> to vector<64x32xf32>
    %159 = arith.subf %149, %158 : vector<64x32xf32>
    %160 = arith.mulf %159, %159 : vector<64x32xf32>
    %cst_74 = arith.constant dense<0.000000e+00> : vector<64xf32>
    %161 = vector.multi_reduction <add>, %160, %cst_74 [1] : vector<64x32xf32> to vector<64xf32>
    %162 = vector.shape_cast %161 : vector<64xf32> to vector<64x1xf32>
    %cst_75 = arith.constant 3.200000e+01 : f32
    %163 = vector.broadcast %cst_75 : f32 to vector<64x1xf32>
    %164 = arith.divf %162, %163 : vector<64x1xf32>
    %165 = vector.broadcast %157 : vector<64x1xf32> to vector<64x32xf32>
    %166 = arith.subf %149, %165 : vector<64x32xf32>
    %cst_76 = arith.constant 9.99999974E-6 : f32
    %167 = vector.broadcast %cst_76 : f32 to vector<64x1xf32>
    %168 = arith.addf %164, %167 : vector<64x1xf32>
    %169 = math.rsqrt %168 : vector<64x1xf32>
    %170 = vector.broadcast %169 : vector<64x1xf32> to vector<64x32xf32>
    %171 = arith.mulf %166, %170 : vector<64x32xf32>
    %172 = vector.broadcast %151 : vector<1x32xf32> to vector<64x32xf32>
    %173 = arith.mulf %171, %172 : vector<64x32xf32>
    %174 = vector.broadcast %153 : vector<1x32xf32> to vector<64x32xf32>
    %175 = arith.addf %173, %174 : vector<64x32xf32>
    %176 = arith.truncf %175 : vector<64x32xf32> to vector<64x32xbf16>
    %c0_77 = arith.constant 0 : index
    %c0_78 = arith.constant 0 : index
    %c0_79 = arith.constant 0 : index
    %177 = vector.load %arg10[%c0_77, %c0_78, %c0_79] : memref<2x32x128xbf16, #tpu.memory_space<vmem>>, vector<1x32x128xbf16>
    %178 = vector.shape_cast %177 : vector<1x32x128xbf16> to vector<32x128xbf16>
    %cst_80 = arith.constant dense<0.000000e+00> : vector<64x128xf32>
    %179 = tpu.matmul %176, %178, %cst_80 {dimension_numbers = #tpu.dot_dimension_numbers<[1], [0], [0], [1], [0, 0, 1, 1], [], []>} : vector<64x32xbf16>, vector<32x128xbf16>, vector<64x128xf32> -> vector<64x128xf32>
    %c0_81 = arith.constant 0 : index
    %c0_82 = arith.constant 0 : index
    %c0_83 = arith.constant 0 : index
    %180 = vector.load %arg11[%c0_81, %c0_82, %c0_83] : memref<2x1x128xf32, #tpu.memory_space<vmem>>, vector<1x1x128xf32>
    %181 = vector.shape_cast %180 : vector<1x1x128xf32> to vector<1x128xf32>
    %182 = vector.broadcast %181 : vector<1x128xf32> to vector<64x128xf32>
    %183 = arith.addf %179, %182 : vector<64x128xf32>
    %cst_84 = arith.constant 0.707106769 : f32
    %184 = vector.broadcast %cst_84 : f32 to vector<64x128xf32>
    %185 = arith.mulf %183, %184 : vector<64x128xf32>
    %186 = math.absf %185 : vector<64x128xf32>
    %cst_85 = arith.constant 0.327591091 : f32
    %187 = vector.broadcast %cst_85 : f32 to vector<64x128xf32>
    %188 = arith.mulf %187, %186 : vector<64x128xf32>
    %cst_86 = arith.constant 1.000000e+00 : f32
    %189 = vector.broadcast %cst_86 : f32 to vector<64x128xf32>
    %190 = arith.addf %189, %188 : vector<64x128xf32>
    %cst_87 = arith.constant 1.000000e+00 : f32
    %191 = vector.broadcast %cst_87 : f32 to vector<64x128xf32>
    %192 = arith.divf %191, %190 : vector<64x128xf32>
    %cst_88 = arith.constant 1.06140542 : f32
    %193 = vector.broadcast %cst_88 : f32 to vector<64x128xf32>
    %194 = arith.mulf %193, %192 : vector<64x128xf32>
    %cst_89 = arith.constant -1.45315206 : f32
    %195 = vector.broadcast %cst_89 : f32 to vector<64x128xf32>
    %196 = arith.addf %194, %195 : vector<64x128xf32>
    %197 = arith.mulf %196, %192 : vector<64x128xf32>
    %cst_90 = arith.constant 1.42141378 : f32
    %198 = vector.broadcast %cst_90 : f32 to vector<64x128xf32>
    %199 = arith.addf %197, %198 : vector<64x128xf32>
    %200 = arith.mulf %199, %192 : vector<64x128xf32>
    %cst_91 = arith.constant -0.284496725 : f32
    %201 = vector.broadcast %cst_91 : f32 to vector<64x128xf32>
    %202 = arith.addf %200, %201 : vector<64x128xf32>
    %203 = arith.mulf %202, %192 : vector<64x128xf32>
    %cst_92 = arith.constant 0.254829586 : f32
    %204 = vector.broadcast %cst_92 : f32 to vector<64x128xf32>
    %205 = arith.addf %203, %204 : vector<64x128xf32>
    %206 = arith.mulf %205, %192 : vector<64x128xf32>
    %cst_93 = arith.constant 0.000000e+00 : f32
    %207 = vector.broadcast %cst_93 : f32 to vector<64x128xf32>
    %208 = arith.subf %207, %186 : vector<64x128xf32>
    %209 = arith.mulf %208, %186 : vector<64x128xf32>
    %210 = math.exp %209 : vector<64x128xf32>
    %211 = arith.mulf %206, %210 : vector<64x128xf32>
    %cst_94 = arith.constant 1.000000e+00 : f32
    %212 = vector.broadcast %cst_94 : f32 to vector<64x128xf32>
    %213 = arith.subf %212, %211 : vector<64x128xf32>
    %cst_95 = arith.constant 0.000000e+00 : f32
    %214 = vector.broadcast %cst_95 : f32 to vector<64x128xf32>
    %215 = arith.cmpf oge, %185, %214 : vector<64x128xf32>
    %cst_96 = arith.constant 0.000000e+00 : f32
    %216 = vector.broadcast %cst_96 : f32 to vector<64x128xf32>
    %217 = arith.subf %216, %213 : vector<64x128xf32>
    %218 = arith.select %215, %213, %217 : vector<64x128xi1>, vector<64x128xf32>
    %cst_97 = arith.constant 5.000000e-01 : f32
    %219 = vector.broadcast %cst_97 : f32 to vector<64x128xf32>
    %220 = arith.mulf %219, %183 : vector<64x128xf32>
    %cst_98 = arith.constant 1.000000e+00 : f32
    %221 = vector.broadcast %cst_98 : f32 to vector<64x128xf32>
    %222 = arith.addf %221, %218 : vector<64x128xf32>
    %223 = arith.mulf %220, %222 : vector<64x128xf32>
    %224 = arith.truncf %223 : vector<64x128xf32> to vector<64x128xbf16>
    %c0_99 = arith.constant 0 : index
    %c0_100 = arith.constant 0 : index
    %c0_101 = arith.constant 0 : index
    %225 = vector.load %arg12[%c0_99, %c0_100, %c0_101] : memref<2x128x32xbf16, #tpu.memory_space<vmem>>, vector<1x128x32xbf16>
    %226 = vector.shape_cast %225 : vector<1x128x32xbf16> to vector<128x32xbf16>
    %cst_102 = arith.constant dense<0.000000e+00> : vector<64x32xf32>
    %227 = tpu.matmul %224, %226, %cst_102 {dimension_numbers = #tpu.dot_dimension_numbers<[1], [0], [0], [1], [0, 0, 1, 1], [], []>} : vector<64x128xbf16>, vector<128x32xbf16>, vector<64x32xf32> -> vector<64x32xf32>
    %c0_103 = arith.constant 0 : index
    %c0_104 = arith.constant 0 : index
    %c0_105 = arith.constant 0 : index
    %228 = vector.load %arg13[%c0_103, %c0_104, %c0_105] : memref<2x1x32xf32, #tpu.memory_space<vmem>>, vector<1x1x32xf32>
    %229 = vector.shape_cast %228 : vector<1x1x32xf32> to vector<1x32xf32>
    %230 = vector.broadcast %229 : vector<1x32xf32> to vector<64x32xf32>
    %231 = arith.addf %227, %230 : vector<64x32xf32>
    %232 = arith.addf %149, %231 : vector<64x32xf32>
    %c1_106 = arith.constant 1 : index
    %c0_107 = arith.constant 0 : index
    %c0_108 = arith.constant 0 : index
    %233 = vector.load %arg2[%c1_106, %c0_107, %c0_108] : memref<2x1x32xf32, #tpu.memory_space<vmem>>, vector<1x1x32xf32>
    %234 = vector.shape_cast %233 : vector<1x1x32xf32> to vector<1x32xf32>
    %c1_109 = arith.constant 1 : index
    %c0_110 = arith.constant 0 : index
    %c0_111 = arith.constant 0 : index
    %235 = vector.load %arg3[%c1_109, %c0_110, %c0_111] : memref<2x1x32xf32, #tpu.memory_space<vmem>>, vector<1x1x32xf32>
    %236 = vector.shape_cast %235 : vector<1x1x32xf32> to vector<1x32xf32>
    %cst_112 = arith.constant dense<0.000000e+00> : vector<64xf32>
    %237 = vector.multi_reduction <add>, %232, %cst_112 [1] : vector<64x32xf32> to vector<64xf32>
    %238 = vector.shape_cast %237 : vector<64xf32> to vector<64x1xf32>
    %cst_113 = arith.constant 3.200000e+01 : f32
    %239 = vector.broadcast %cst_113 : f32 to vector<64x1xf32>
    %240 = arith.divf %238, %239 : vector<64x1xf32>
    %241 = vector.broadcast %240 : vector<64x1xf32> to vector<64x32xf32>
    %242 = arith.subf %232, %241 : vector<64x32xf32>
    %243 = arith.mulf %242, %242 : vector<64x32xf32>
    %cst_114 = arith.constant dense<0.000000e+00> : vector<64xf32>
    %244 = vector.multi_reduction <add>, %243, %cst_114 [1] : vector<64x32xf32> to vector<64xf32>
    %245 = vector.shape_cast %244 : vector<64xf32> to vector<64x1xf32>
    %cst_115 = arith.constant 3.200000e+01 : f32
    %246 = vector.broadcast %cst_115 : f32 to vector<64x1xf32>
    %247 = arith.divf %245, %246 : vector<64x1xf32>
    %248 = vector.broadcast %240 : vector<64x1xf32> to vector<64x32xf32>
    %249 = arith.subf %232, %248 : vector<64x32xf32>
    %cst_116 = arith.constant 9.99999974E-6 : f32
    %250 = vector.broadcast %cst_116 : f32 to vector<64x1xf32>
    %251 = arith.addf %247, %250 : vector<64x1xf32>
    %252 = math.rsqrt %251 : vector<64x1xf32>
    %253 = vector.broadcast %252 : vector<64x1xf32> to vector<64x32xf32>
    %254 = arith.mulf %249, %253 : vector<64x32xf32>
    %255 = vector.broadcast %234 : vector<1x32xf32> to vector<64x32xf32>
    %256 = arith.mulf %254, %255 : vector<64x32xf32>
    %257 = vector.broadcast %236 : vector<1x32xf32> to vector<64x32xf32>
    %258 = arith.addf %256, %257 : vector<64x32xf32>
    %259 = arith.truncf %258 : vector<64x32xf32> to vector<64x32xbf16>
    %c1_117 = arith.constant 1 : index
    %c0_118 = arith.constant 0 : index
    %c0_119 = arith.constant 0 : index
    %260 = vector.load %arg4[%c1_117, %c0_118, %c0_119] : memref<2x32x96xbf16, #tpu.memory_space<vmem>>, vector<1x32x96xbf16>
    %261 = vector.shape_cast %260 : vector<1x32x96xbf16> to vector<32x96xbf16>
    %cst_120 = arith.constant dense<0.000000e+00> : vector<64x96xf32>
    %262 = tpu.matmul %259, %261, %cst_120 {dimension_numbers = #tpu.dot_dimension_numbers<[1], [0], [0], [1], [0, 0, 1, 1], [], []>} : vector<64x32xbf16>, vector<32x96xbf16>, vector<64x96xf32> -> vector<64x96xf32>
    %c1_121 = arith.constant 1 : index
    %c0_122 = arith.constant 0 : index
    %c0_123 = arith.constant 0 : index
    %263 = vector.load %arg5[%c1_121, %c0_122, %c0_123] : memref<2x1x96xf32, #tpu.memory_space<vmem>>, vector<1x1x96xf32>
    %264 = vector.shape_cast %263 : vector<1x1x96xf32> to vector<1x96xf32>
    %265 = vector.broadcast %264 : vector<1x96xf32> to vector<64x96xf32>
    %266 = arith.addf %262, %265 : vector<64x96xf32>
    %267 = vector.extract_strided_slice %266 {offsets = [0, 0], sizes = [64, 8], strides = [1, 1]} : vector<64x96xf32> to vector<64x8xf32>
    %268 = arith.truncf %267 : vector<64x8xf32> to vector<64x8xbf16>
    %269 = vector.extract_strided_slice %266 {offsets = [0, 32], sizes = [64, 8], strides = [1, 1]} : vector<64x96xf32> to vector<64x8xf32>
    %270 = tpu.transpose %269, [1, 0] : vector<64x8xf32> -> vector<8x64xf32>
    %271 = arith.truncf %270 : vector<8x64xf32> to vector<8x64xbf16>
    %cst_124 = arith.constant dense<0.000000e+00> : vector<64x64xf32>
    %272 = tpu.matmul %268, %271, %cst_124 {dimension_numbers = #tpu.dot_dimension_numbers<[1], [0], [0], [1], [0, 0, 1, 1], [], []>} : vector<64x8xbf16>, vector<8x64xbf16>, vector<64x64xf32> -> vector<64x64xf32>
    %cst_125 = arith.constant 0.353553385 : f32
    %273 = vector.broadcast %cst_125 : f32 to vector<64x64xf32>
    %274 = arith.mulf %272, %273 : vector<64x64xf32>
    %c1_126 = arith.constant 1 : index
    %c0_127 = arith.constant 0 : index
    %c0_128 = arith.constant 0 : index
    %c0_129 = arith.constant 0 : index
    %275 = vector.load %arg14[%c1_126, %c0_127, %c0_128, %c0_129] : memref<2x4x64x64xf32, #tpu.memory_space<vmem>>, vector<1x1x64x64xf32>
    %276 = vector.shape_cast %275 : vector<1x1x64x64xf32> to vector<64x64xf32>
    %277 = arith.addf %274, %276 : vector<64x64xf32>
    %cst_130 = arith.constant dense<0xFF800000> : vector<64xf32>
    %278 = vector.multi_reduction <maximumf>, %277, %cst_130 [1] : vector<64x64xf32> to vector<64xf32>
    %279 = vector.shape_cast %278 : vector<64xf32> to vector<64x1xf32>
    %280 = vector.broadcast %279 : vector<64x1xf32> to vector<64x64xf32>
    %281 = arith.subf %277, %280 : vector<64x64xf32>
    %282 = math.exp %281 : vector<64x64xf32>
    %cst_131 = arith.constant dense<0.000000e+00> : vector<64xf32>
    %283 = vector.multi_reduction <add>, %282, %cst_131 [1] : vector<64x64xf32> to vector<64xf32>
    %284 = vector.shape_cast %283 : vector<64xf32> to vector<64x1xf32>
    %285 = tpu.reciprocal %284 {approx = true} : vector<64x1xf32> -> vector<64x1xf32>
    %286 = vector.broadcast %285 : vector<64x1xf32> to vector<64x64xf32>
    %287 = arith.mulf %282, %286 : vector<64x64xf32>
    %288 = arith.truncf %287 : vector<64x64xf32> to vector<64x64xbf16>
    %289 = vector.extract_strided_slice %266 {offsets = [0, 64], sizes = [64, 8], strides = [1, 1]} : vector<64x96xf32> to vector<64x8xf32>
    %290 = arith.truncf %289 : vector<64x8xf32> to vector<64x8xbf16>
    %cst_132 = arith.constant dense<0.000000e+00> : vector<64x8xf32>
    %291 = tpu.matmul %288, %290, %cst_132 {dimension_numbers = #tpu.dot_dimension_numbers<[1], [0], [0], [1], [0, 0, 1, 1], [], []>} : vector<64x64xbf16>, vector<64x8xbf16>, vector<64x8xf32> -> vector<64x8xf32>
    %c0_133 = arith.constant 0 : index
    %c0_134 = arith.constant 0 : index
    %292 = vector.load %arg16[%c0_133, %c0_134] : memref<64x32xf32, #tpu.memory_space<vmem>>, vector<64x8xf32>
    tpu.vector_store %arg16[%c0_133, %c0_134], %291 {strides = array<i32>} : memref<64x32xf32, #tpu.memory_space<vmem>>, vector<64x8xf32>,
    %293 = vector.extract_strided_slice %266 {offsets = [0, 8], sizes = [64, 8], strides = [1, 1]} : vector<64x96xf32> to vector<64x8xf32>
    %294 = arith.truncf %293 : vector<64x8xf32> to vector<64x8xbf16>
    %295 = vector.extract_strided_slice %266 {offsets = [0, 40], sizes = [64, 8], strides = [1, 1]} : vector<64x96xf32> to vector<64x8xf32>
    %296 = tpu.transpose %295, [1, 0] : vector<64x8xf32> -> vector<8x64xf32>
    %297 = arith.truncf %296 : vector<8x64xf32> to vector<8x64xbf16>
    %cst_135 = arith.constant dense<0.000000e+00> : vector<64x64xf32>
    %298 = tpu.matmul %294, %297, %cst_135 {dimension_numbers = #tpu.dot_dimension_numbers<[1], [0], [0], [1], [0, 0, 1, 1], [], []>} : vector<64x8xbf16>, vector<8x64xbf16>, vector<64x64xf32> -> vector<64x64xf32>
    %cst_136 = arith.constant 0.353553385 : f32
    %299 = vector.broadcast %cst_136 : f32 to vector<64x64xf32>
    %300 = arith.mulf %298, %299 : vector<64x64xf32>
    %c1_137 = arith.constant 1 : index
    %c1_138 = arith.constant 1 : index
    %c0_139 = arith.constant 0 : index
    %c0_140 = arith.constant 0 : index
    %301 = vector.load %arg14[%c1_137, %c1_138, %c0_139, %c0_140] : memref<2x4x64x64xf32, #tpu.memory_space<vmem>>, vector<1x1x64x64xf32>
    %302 = vector.shape_cast %301 : vector<1x1x64x64xf32> to vector<64x64xf32>
    %303 = arith.addf %300, %302 : vector<64x64xf32>
    %cst_141 = arith.constant dense<0xFF800000> : vector<64xf32>
    %304 = vector.multi_reduction <maximumf>, %303, %cst_141 [1] : vector<64x64xf32> to vector<64xf32>
    %305 = vector.shape_cast %304 : vector<64xf32> to vector<64x1xf32>
    %306 = vector.broadcast %305 : vector<64x1xf32> to vector<64x64xf32>
    %307 = arith.subf %303, %306 : vector<64x64xf32>
    %308 = math.exp %307 : vector<64x64xf32>
    %cst_142 = arith.constant dense<0.000000e+00> : vector<64xf32>
    %309 = vector.multi_reduction <add>, %308, %cst_142 [1] : vector<64x64xf32> to vector<64xf32>
    %310 = vector.shape_cast %309 : vector<64xf32> to vector<64x1xf32>
    %311 = tpu.reciprocal %310 {approx = true} : vector<64x1xf32> -> vector<64x1xf32>
    %312 = vector.broadcast %311 : vector<64x1xf32> to vector<64x64xf32>
    %313 = arith.mulf %308, %312 : vector<64x64xf32>
    %314 = arith.truncf %313 : vector<64x64xf32> to vector<64x64xbf16>
    %315 = vector.extract_strided_slice %266 {offsets = [0, 72], sizes = [64, 8], strides = [1, 1]} : vector<64x96xf32> to vector<64x8xf32>
    %316 = arith.truncf %315 : vector<64x8xf32> to vector<64x8xbf16>
    %cst_143 = arith.constant dense<0.000000e+00> : vector<64x8xf32>
    %317 = tpu.matmul %314, %316, %cst_143 {dimension_numbers = #tpu.dot_dimension_numbers<[1], [0], [0], [1], [0, 0, 1, 1], [], []>} : vector<64x64xbf16>, vector<64x8xbf16>, vector<64x8xf32> -> vector<64x8xf32>
    %c0_144 = arith.constant 0 : index
    %c8_145 = arith.constant 8 : index
    %318 = vector.load %arg16[%c0_144, %c8_145] : memref<64x32xf32, #tpu.memory_space<vmem>>, vector<64x8xf32>
    tpu.vector_store %arg16[%c0_144, %c8_145], %317 {strides = array<i32>} : memref<64x32xf32, #tpu.memory_space<vmem>>, vector<64x8xf32>,
    %319 = vector.extract_strided_slice %266 {offsets = [0, 16], sizes = [64, 8], strides = [1, 1]} : vector<64x96xf32> to vector<64x8xf32>
    %320 = arith.truncf %319 : vector<64x8xf32> to vector<64x8xbf16>
    %321 = vector.extract_strided_slice %266 {offsets = [0, 48], sizes = [64, 8], strides = [1, 1]} : vector<64x96xf32> to vector<64x8xf32>
    %322 = tpu.transpose %321, [1, 0] : vector<64x8xf32> -> vector<8x64xf32>
    %323 = arith.truncf %322 : vector<8x64xf32> to vector<8x64xbf16>
    %cst_146 = arith.constant dense<0.000000e+00> : vector<64x64xf32>
    %324 = tpu.matmul %320, %323, %cst_146 {dimension_numbers = #tpu.dot_dimension_numbers<[1], [0], [0], [1], [0, 0, 1, 1], [], []>} : vector<64x8xbf16>, vector<8x64xbf16>, vector<64x64xf32> -> vector<64x64xf32>
    %cst_147 = arith.constant 0.353553385 : f32
    %325 = vector.broadcast %cst_147 : f32 to vector<64x64xf32>
    %326 = arith.mulf %324, %325 : vector<64x64xf32>
    %c1_148 = arith.constant 1 : index
    %c2_149 = arith.constant 2 : index
    %c0_150 = arith.constant 0 : index
    %c0_151 = arith.constant 0 : index
    %327 = vector.load %arg14[%c1_148, %c2_149, %c0_150, %c0_151] : memref<2x4x64x64xf32, #tpu.memory_space<vmem>>, vector<1x1x64x64xf32>
    %328 = vector.shape_cast %327 : vector<1x1x64x64xf32> to vector<64x64xf32>
    %329 = arith.addf %326, %328 : vector<64x64xf32>
    %cst_152 = arith.constant dense<0xFF800000> : vector<64xf32>
    %330 = vector.multi_reduction <maximumf>, %329, %cst_152 [1] : vector<64x64xf32> to vector<64xf32>
    %331 = vector.shape_cast %330 : vector<64xf32> to vector<64x1xf32>
    %332 = vector.broadcast %331 : vector<64x1xf32> to vector<64x64xf32>
    %333 = arith.subf %329, %332 : vector<64x64xf32>
    %334 = math.exp %333 : vector<64x64xf32>
    %cst_153 = arith.constant dense<0.000000e+00> : vector<64xf32>
    %335 = vector.multi_reduction <add>, %334, %cst_153 [1] : vector<64x64xf32> to vector<64xf32>
    %336 = vector.shape_cast %335 : vector<64xf32> to vector<64x1xf32>
    %337 = tpu.reciprocal %336 {approx = true} : vector<64x1xf32> -> vector<64x1xf32>
    %338 = vector.broadcast %337 : vector<64x1xf32> to vector<64x64xf32>
    %339 = arith.mulf %334, %338 : vector<64x64xf32>
    %340 = arith.truncf %339 : vector<64x64xf32> to vector<64x64xbf16>
    %341 = vector.extract_strided_slice %266 {offsets = [0, 80], sizes = [64, 8], strides = [1, 1]} : vector<64x96xf32> to vector<64x8xf32>
    %342 = arith.truncf %341 : vector<64x8xf32> to vector<64x8xbf16>
    %cst_154 = arith.constant dense<0.000000e+00> : vector<64x8xf32>
    %343 = tpu.matmul %340, %342, %cst_154 {dimension_numbers = #tpu.dot_dimension_numbers<[1], [0], [0], [1], [0, 0, 1, 1], [], []>} : vector<64x64xbf16>, vector<64x8xbf16>, vector<64x8xf32> -> vector<64x8xf32>
    %c0_155 = arith.constant 0 : index
    %c16_156 = arith.constant 16 : index
    %344 = vector.load %arg16[%c0_155, %c16_156] : memref<64x32xf32, #tpu.memory_space<vmem>>, vector<64x8xf32>
    tpu.vector_store %arg16[%c0_155, %c16_156], %343 {strides = array<i32>} : memref<64x32xf32, #tpu.memory_space<vmem>>, vector<64x8xf32>,
    %345 = vector.extract_strided_slice %266 {offsets = [0, 24], sizes = [64, 8], strides = [1, 1]} : vector<64x96xf32> to vector<64x8xf32>
    %346 = arith.truncf %345 : vector<64x8xf32> to vector<64x8xbf16>
    %347 = vector.extract_strided_slice %266 {offsets = [0, 56], sizes = [64, 8], strides = [1, 1]} : vector<64x96xf32> to vector<64x8xf32>
    %348 = tpu.transpose %347, [1, 0] : vector<64x8xf32> -> vector<8x64xf32>
    %349 = arith.truncf %348 : vector<8x64xf32> to vector<8x64xbf16>
    %cst_157 = arith.constant dense<0.000000e+00> : vector<64x64xf32>
    %350 = tpu.matmul %346, %349, %cst_157 {dimension_numbers = #tpu.dot_dimension_numbers<[1], [0], [0], [1], [0, 0, 1, 1], [], []>} : vector<64x8xbf16>, vector<8x64xbf16>, vector<64x64xf32> -> vector<64x64xf32>
    %cst_158 = arith.constant 0.353553385 : f32
    %351 = vector.broadcast %cst_158 : f32 to vector<64x64xf32>
    %352 = arith.mulf %350, %351 : vector<64x64xf32>
    %c1_159 = arith.constant 1 : index
    %c3_160 = arith.constant 3 : index
    %c0_161 = arith.constant 0 : index
    %c0_162 = arith.constant 0 : index
    %353 = vector.load %arg14[%c1_159, %c3_160, %c0_161, %c0_162] : memref<2x4x64x64xf32, #tpu.memory_space<vmem>>, vector<1x1x64x64xf32>
    %354 = vector.shape_cast %353 : vector<1x1x64x64xf32> to vector<64x64xf32>
    %355 = arith.addf %352, %354 : vector<64x64xf32>
    %cst_163 = arith.constant dense<0xFF800000> : vector<64xf32>
    %356 = vector.multi_reduction <maximumf>, %355, %cst_163 [1] : vector<64x64xf32> to vector<64xf32>
    %357 = vector.shape_cast %356 : vector<64xf32> to vector<64x1xf32>
    %358 = vector.broadcast %357 : vector<64x1xf32> to vector<64x64xf32>
    %359 = arith.subf %355, %358 : vector<64x64xf32>
    %360 = math.exp %359 : vector<64x64xf32>
    %cst_164 = arith.constant dense<0.000000e+00> : vector<64xf32>
    %361 = vector.multi_reduction <add>, %360, %cst_164 [1] : vector<64x64xf32> to vector<64xf32>
    %362 = vector.shape_cast %361 : vector<64xf32> to vector<64x1xf32>
    %363 = tpu.reciprocal %362 {approx = true} : vector<64x1xf32> -> vector<64x1xf32>
    %364 = vector.broadcast %363 : vector<64x1xf32> to vector<64x64xf32>
    %365 = arith.mulf %360, %364 : vector<64x64xf32>
    %366 = arith.truncf %365 : vector<64x64xf32> to vector<64x64xbf16>
    %367 = vector.extract_strided_slice %266 {offsets = [0, 88], sizes = [64, 8], strides = [1, 1]} : vector<64x96xf32> to vector<64x8xf32>
    %368 = arith.truncf %367 : vector<64x8xf32> to vector<64x8xbf16>
    %cst_165 = arith.constant dense<0.000000e+00> : vector<64x8xf32>
    %369 = tpu.matmul %366, %368, %cst_165 {dimension_numbers = #tpu.dot_dimension_numbers<[1], [0], [0], [1], [0, 0, 1, 1], [], []>} : vector<64x64xbf16>, vector<64x8xbf16>, vector<64x8xf32> -> vector<64x8xf32>
    %c0_166 = arith.constant 0 : index
    %c24_167 = arith.constant 24 : index
    %370 = vector.load %arg16[%c0_166, %c24_167] : memref<64x32xf32, #tpu.memory_space<vmem>>, vector<64x8xf32>
    tpu.vector_store %arg16[%c0_166, %c24_167], %369 {strides = array<i32>} : memref<64x32xf32, #tpu.memory_space<vmem>>, vector<64x8xf32>,
    %c0_168 = arith.constant 0 : index
    %c0_169 = arith.constant 0 : index
    %371 = vector.load %arg16[%c0_168, %c0_169] : memref<64x32xf32, #tpu.memory_space<vmem>>, vector<64x32xf32>
    %372 = arith.truncf %371 : vector<64x32xf32> to vector<64x32xbf16>
    %c1_170 = arith.constant 1 : index
    %c0_171 = arith.constant 0 : index
    %c0_172 = arith.constant 0 : index
    %373 = vector.load %arg6[%c1_170, %c0_171, %c0_172] : memref<2x32x32xbf16, #tpu.memory_space<vmem>>, vector<1x32x32xbf16>
    %374 = vector.shape_cast %373 : vector<1x32x32xbf16> to vector<32x32xbf16>
    %cst_173 = arith.constant dense<0.000000e+00> : vector<64x32xf32>
    %375 = tpu.matmul %372, %374, %cst_173 {dimension_numbers = #tpu.dot_dimension_numbers<[1], [0], [0], [1], [0, 0, 1, 1], [], []>} : vector<64x32xbf16>, vector<32x32xbf16>, vector<64x32xf32> -> vector<64x32xf32>
    %c1_174 = arith.constant 1 : index
    %c0_175 = arith.constant 0 : index
    %c0_176 = arith.constant 0 : index
    %376 = vector.load %arg7[%c1_174, %c0_175, %c0_176] : memref<2x1x32xf32, #tpu.memory_space<vmem>>, vector<1x1x32xf32>
    %377 = vector.shape_cast %376 : vector<1x1x32xf32> to vector<1x32xf32>
    %378 = vector.broadcast %377 : vector<1x32xf32> to vector<64x32xf32>
    %379 = arith.addf %375, %378 : vector<64x32xf32>
    %380 = arith.addf %232, %379 : vector<64x32xf32>
    %c1_177 = arith.constant 1 : index
    %c0_178 = arith.constant 0 : index
    %c0_179 = arith.constant 0 : index
    %381 = vector.load %arg8[%c1_177, %c0_178, %c0_179] : memref<2x1x32xf32, #tpu.memory_space<vmem>>, vector<1x1x32xf32>
    %382 = vector.shape_cast %381 : vector<1x1x32xf32> to vector<1x32xf32>
    %c1_180 = arith.constant 1 : index
    %c0_181 = arith.constant 0 : index
    %c0_182 = arith.constant 0 : index
    %383 = vector.load %arg9[%c1_180, %c0_181, %c0_182] : memref<2x1x32xf32, #tpu.memory_space<vmem>>, vector<1x1x32xf32>
    %384 = vector.shape_cast %383 : vector<1x1x32xf32> to vector<1x32xf32>
    %cst_183 = arith.constant dense<0.000000e+00> : vector<64xf32>
    %385 = vector.multi_reduction <add>, %380, %cst_183 [1] : vector<64x32xf32> to vector<64xf32>
    %386 = vector.shape_cast %385 : vector<64xf32> to vector<64x1xf32>
    %cst_184 = arith.constant 3.200000e+01 : f32
    %387 = vector.broadcast %cst_184 : f32 to vector<64x1xf32>
    %388 = arith.divf %386, %387 : vector<64x1xf32>
    %389 = vector.broadcast %388 : vector<64x1xf32> to vector<64x32xf32>
    %390 = arith.subf %380, %389 : vector<64x32xf32>
    %391 = arith.mulf %390, %390 : vector<64x32xf32>
    %cst_185 = arith.constant dense<0.000000e+00> : vector<64xf32>
    %392 = vector.multi_reduction <add>, %391, %cst_185 [1] : vector<64x32xf32> to vector<64xf32>
    %393 = vector.shape_cast %392 : vector<64xf32> to vector<64x1xf32>
    %cst_186 = arith.constant 3.200000e+01 : f32
    %394 = vector.broadcast %cst_186 : f32 to vector<64x1xf32>
    %395 = arith.divf %393, %394 : vector<64x1xf32>
    %396 = vector.broadcast %388 : vector<64x1xf32> to vector<64x32xf32>
    %397 = arith.subf %380, %396 : vector<64x32xf32>
    %cst_187 = arith.constant 9.99999974E-6 : f32
    %398 = vector.broadcast %cst_187 : f32 to vector<64x1xf32>
    %399 = arith.addf %395, %398 : vector<64x1xf32>
    %400 = math.rsqrt %399 : vector<64x1xf32>
    %401 = vector.broadcast %400 : vector<64x1xf32> to vector<64x32xf32>
    %402 = arith.mulf %397, %401 : vector<64x32xf32>
    %403 = vector.broadcast %382 : vector<1x32xf32> to vector<64x32xf32>
    %404 = arith.mulf %402, %403 : vector<64x32xf32>
    %405 = vector.broadcast %384 : vector<1x32xf32> to vector<64x32xf32>
    %406 = arith.addf %404, %405 : vector<64x32xf32>
    %407 = arith.truncf %406 : vector<64x32xf32> to vector<64x32xbf16>
    %c1_188 = arith.constant 1 : index
    %c0_189 = arith.constant 0 : index
    %c0_190 = arith.constant 0 : index
    %408 = vector.load %arg10[%c1_188, %c0_189, %c0_190] : memref<2x32x128xbf16, #tpu.memory_space<vmem>>, vector<1x32x128xbf16>
    %409 = vector.shape_cast %408 : vector<1x32x128xbf16> to vector<32x128xbf16>
    %cst_191 = arith.constant dense<0.000000e+00> : vector<64x128xf32>
    %410 = tpu.matmul %407, %409, %cst_191 {dimension_numbers = #tpu.dot_dimension_numbers<[1], [0], [0], [1], [0, 0, 1, 1], [], []>} : vector<64x32xbf16>, vector<32x128xbf16>, vector<64x128xf32> -> vector<64x128xf32>
    %c1_192 = arith.constant 1 : index
    %c0_193 = arith.constant 0 : index
    %c0_194 = arith.constant 0 : index
    %411 = vector.load %arg11[%c1_192, %c0_193, %c0_194] : memref<2x1x128xf32, #tpu.memory_space<vmem>>, vector<1x1x128xf32>
    %412 = vector.shape_cast %411 : vector<1x1x128xf32> to vector<1x128xf32>
    %413 = vector.broadcast %412 : vector<1x128xf32> to vector<64x128xf32>
    %414 = arith.addf %410, %413 : vector<64x128xf32>
    %cst_195 = arith.constant 0.707106769 : f32
    %415 = vector.broadcast %cst_195 : f32 to vector<64x128xf32>
    %416 = arith.mulf %414, %415 : vector<64x128xf32>
    %417 = math.absf %416 : vector<64x128xf32>
    %cst_196 = arith.constant 0.327591091 : f32
    %418 = vector.broadcast %cst_196 : f32 to vector<64x128xf32>
    %419 = arith.mulf %418, %417 : vector<64x128xf32>
    %cst_197 = arith.constant 1.000000e+00 : f32
    %420 = vector.broadcast %cst_197 : f32 to vector<64x128xf32>
    %421 = arith.addf %420, %419 : vector<64x128xf32>
    %cst_198 = arith.constant 1.000000e+00 : f32
    %422 = vector.broadcast %cst_198 : f32 to vector<64x128xf32>
    %423 = arith.divf %422, %421 : vector<64x128xf32>
    %cst_199 = arith.constant 1.06140542 : f32
    %424 = vector.broadcast %cst_199 : f32 to vector<64x128xf32>
    %425 = arith.mulf %424, %423 : vector<64x128xf32>
    %cst_200 = arith.constant -1.45315206 : f32
    %426 = vector.broadcast %cst_200 : f32 to vector<64x128xf32>
    %427 = arith.addf %425, %426 : vector<64x128xf32>
    %428 = arith.mulf %427, %423 : vector<64x128xf32>
    %cst_201 = arith.constant 1.42141378 : f32
    %429 = vector.broadcast %cst_201 : f32 to vector<64x128xf32>
    %430 = arith.addf %428, %429 : vector<64x128xf32>
    %431 = arith.mulf %430, %423 : vector<64x128xf32>
    %cst_202 = arith.constant -0.284496725 : f32
    %432 = vector.broadcast %cst_202 : f32 to vector<64x128xf32>
    %433 = arith.addf %431, %432 : vector<64x128xf32>
    %434 = arith.mulf %433, %423 : vector<64x128xf32>
    %cst_203 = arith.constant 0.254829586 : f32
    %435 = vector.broadcast %cst_203 : f32 to vector<64x128xf32>
    %436 = arith.addf %434, %435 : vector<64x128xf32>
    %437 = arith.mulf %436, %423 : vector<64x128xf32>
    %cst_204 = arith.constant 0.000000e+00 : f32
    %438 = vector.broadcast %cst_204 : f32 to vector<64x128xf32>
    %439 = arith.subf %438, %417 : vector<64x128xf32>
    %440 = arith.mulf %439, %417 : vector<64x128xf32>
    %441 = math.exp %440 : vector<64x128xf32>
    %442 = arith.mulf %437, %441 : vector<64x128xf32>
    %cst_205 = arith.constant 1.000000e+00 : f32
    %443 = vector.broadcast %cst_205 : f32 to vector<64x128xf32>
    %444 = arith.subf %443, %442 : vector<64x128xf32>
    %cst_206 = arith.constant 0.000000e+00 : f32
    %445 = vector.broadcast %cst_206 : f32 to vector<64x128xf32>
    %446 = arith.cmpf oge, %416, %445 : vector<64x128xf32>
    %cst_207 = arith.constant 0.000000e+00 : f32
    %447 = vector.broadcast %cst_207 : f32 to vector<64x128xf32>
    %448 = arith.subf %447, %444 : vector<64x128xf32>
    %449 = arith.select %446, %444, %448 : vector<64x128xi1>, vector<64x128xf32>
    %cst_208 = arith.constant 5.000000e-01 : f32
    %450 = vector.broadcast %cst_208 : f32 to vector<64x128xf32>
    %451 = arith.mulf %450, %414 : vector<64x128xf32>
    %cst_209 = arith.constant 1.000000e+00 : f32
    %452 = vector.broadcast %cst_209 : f32 to vector<64x128xf32>
    %453 = arith.addf %452, %449 : vector<64x128xf32>
    %454 = arith.mulf %451, %453 : vector<64x128xf32>
    %455 = arith.truncf %454 : vector<64x128xf32> to vector<64x128xbf16>
    %c1_210 = arith.constant 1 : index
    %c0_211 = arith.constant 0 : index
    %c0_212 = arith.constant 0 : index
    %456 = vector.load %arg12[%c1_210, %c0_211, %c0_212] : memref<2x128x32xbf16, #tpu.memory_space<vmem>>, vector<1x128x32xbf16>
    %457 = vector.shape_cast %456 : vector<1x128x32xbf16> to vector<128x32xbf16>
    %cst_213 = arith.constant dense<0.000000e+00> : vector<64x32xf32>
    %458 = tpu.matmul %455, %457, %cst_213 {dimension_numbers = #tpu.dot_dimension_numbers<[1], [0], [0], [1], [0, 0, 1, 1], [], []>} : vector<64x128xbf16>, vector<128x32xbf16>, vector<64x32xf32> -> vector<64x32xf32>
    %c1_214 = arith.constant 1 : index
    %c0_215 = arith.constant 0 : index
    %c0_216 = arith.constant 0 : index
    %459 = vector.load %arg13[%c1_214, %c0_215, %c0_216] : memref<2x1x32xf32, #tpu.memory_space<vmem>>, vector<1x1x32xf32>
    %460 = vector.shape_cast %459 : vector<1x1x32xf32> to vector<1x32xf32>
    %461 = vector.broadcast %460 : vector<1x32xf32> to vector<64x32xf32>
    %462 = arith.addf %458, %461 : vector<64x32xf32>
    %463 = arith.addf %380, %462 : vector<64x32xf32>
    %c0_217 = arith.constant 0 : index
    %c0_218 = arith.constant 0 : index
    %c0_219 = arith.constant 0 : index
    %464 = vector.load %arg15[%c0_217, %c0_218, %c0_219] : memref<1x64x32xf32, #tpu.memory_space<vmem>>, vector<1x64x32xf32>
    %465 = vector.shape_cast %464 : vector<1x64x32xf32> to vector<64x32xf32>
    %466 = vector.shape_cast %463 : vector<64x32xf32> to vector<1x64x32xf32>
    tpu.vector_store %arg15[%c0_217, %c0_218, %c0_219], %466 {strides = array<i32>} : memref<1x64x32xf32, #tpu.memory_space<vmem>>, vector<1x64x32xf32>,
    return
  }
  func.func @transform_0(%arg0: i32) -> (i32, i32, i32) {
    %c0_i32 = arith.constant 0 : i32
    %c0_i32_0 = arith.constant 0 : i32
    %c0_i32_1 = arith.constant 0 : i32
    return %arg0, %c0_i32, %c0_i32_0 : i32, i32, i32
  }
  func.func @transform_1(%arg0: i32) -> (i32, i32, i32) {
    %c0_i32 = arith.constant 0 : i32
    %c0_i32_0 = arith.constant 0 : i32
    %c0_i32_1 = arith.constant 0 : i32
    %c0_i32_2 = arith.constant 0 : i32
    return %c0_i32, %c0_i32_0, %c0_i32_1 : i32, i32, i32
  }
  func.func @transform_2(%arg0: i32) -> (i32, i32, i32) {
    %c0_i32 = arith.constant 0 : i32
    %c0_i32_0 = arith.constant 0 : i32
    %c0_i32_1 = arith.constant 0 : i32
    %c0_i32_2 = arith.constant 0 : i32
    return %c0_i32, %c0_i32_0, %c0_i32_1 : i32, i32, i32
  }
  func.func @transform_3(%arg0: i32) -> (i32, i32, i32) {
    %c0_i32 = arith.constant 0 : i32
    %c0_i32_0 = arith.constant 0 : i32
    %c0_i32_1 = arith.constant 0 : i32
    %c0_i32_2 = arith.constant 0 : i32
    return %c0_i32, %c0_i32_0, %c0_i32_1 : i32, i32, i32
  }
  func.func @transform_4(%arg0: i32) -> (i32, i32, i32) {
    %c0_i32 = arith.constant 0 : i32
    %c0_i32_0 = arith.constant 0 : i32
    %c0_i32_1 = arith.constant 0 : i32
    %c0_i32_2 = arith.constant 0 : i32
    return %c0_i32, %c0_i32_0, %c0_i32_1 : i32, i32, i32
  }
  func.func @transform_5(%arg0: i32) -> (i32, i32, i32) {
    %c0_i32 = arith.constant 0 : i32
    %c0_i32_0 = arith.constant 0 : i32
    %c0_i32_1 = arith.constant 0 : i32
    %c0_i32_2 = arith.constant 0 : i32
    return %c0_i32, %c0_i32_0, %c0_i32_1 : i32, i32, i32
  }
  func.func @transform_6(%arg0: i32) -> (i32, i32, i32) {
    %c0_i32 = arith.constant 0 : i32
    %c0_i32_0 = arith.constant 0 : i32
    %c0_i32_1 = arith.constant 0 : i32
    %c0_i32_2 = arith.constant 0 : i32
    return %c0_i32, %c0_i32_0, %c0_i32_1 : i32, i32, i32
  }
  func.func @transform_7(%arg0: i32) -> (i32, i32, i32) {
    %c0_i32 = arith.constant 0 : i32
    %c0_i32_0 = arith.constant 0 : i32
    %c0_i32_1 = arith.constant 0 : i32
    %c0_i32_2 = arith.constant 0 : i32
    return %c0_i32, %c0_i32_0, %c0_i32_1 : i32, i32, i32
  }
  func.func @transform_8(%arg0: i32) -> (i32, i32, i32) {
    %c0_i32 = arith.constant 0 : i32
    %c0_i32_0 = arith.constant 0 : i32
    %c0_i32_1 = arith.constant 0 : i32
    %c0_i32_2 = arith.constant 0 : i32
    return %c0_i32, %c0_i32_0, %c0_i32_1 : i32, i32, i32
  }
  func.func @transform_9(%arg0: i32) -> (i32, i32, i32) {
    %c0_i32 = arith.constant 0 : i32
    %c0_i32_0 = arith.constant 0 : i32
    %c0_i32_1 = arith.constant 0 : i32
    %c0_i32_2 = arith.constant 0 : i32
    return %c0_i32, %c0_i32_0, %c0_i32_1 : i32, i32, i32
  }
  func.func @transform_10(%arg0: i32) -> (i32, i32, i32) {
    %c0_i32 = arith.constant 0 : i32
    %c0_i32_0 = arith.constant 0 : i32
    %c0_i32_1 = arith.constant 0 : i32
    %c0_i32_2 = arith.constant 0 : i32
    return %c0_i32, %c0_i32_0, %c0_i32_1 : i32, i32, i32
  }
  func.func @transform_11(%arg0: i32) -> (i32, i32, i32) {
    %c0_i32 = arith.constant 0 : i32
    %c0_i32_0 = arith.constant 0 : i32
    %c0_i32_1 = arith.constant 0 : i32
    %c0_i32_2 = arith.constant 0 : i32
    return %c0_i32, %c0_i32_0, %c0_i32_1 : i32, i32, i32
  }
  func.func @transform_12(%arg0: i32) -> (i32, i32, i32) {
    %c0_i32 = arith.constant 0 : i32
    %c0_i32_0 = arith.constant 0 : i32
    %c0_i32_1 = arith.constant 0 : i32
    %c0_i32_2 = arith.constant 0 : i32
    return %c0_i32, %c0_i32_0, %c0_i32_1 : i32, i32, i32
  }
  func.func @transform_13(%arg0: i32) -> (i32, i32, i32, i32) {
    %c0_i32 = arith.constant 0 : i32
    %c0_i32_0 = arith.constant 0 : i32
    %c0_i32_1 = arith.constant 0 : i32
    %c0_i32_2 = arith.constant 0 : i32
    %c0_i32_3 = arith.constant 0 : i32
    return %c0_i32, %c0_i32_0, %c0_i32_1, %c0_i32_2 : i32, i32, i32, i32
  }
  func.func @transform_14(%arg0: i32) -> (i32, i32, i32) {
    %c0_i32 = arith.constant 0 : i32
    %c0_i32_0 = arith.constant 0 : i32
    %c0_i32_1 = arith.constant 0 : i32
    return %arg0, %c0_i32, %c0_i32_0 : i32, i32, i32
  }
}

</mosaic_0001>

<llo_original>
// kernel: basic_layer_forward.1
$region0: #{basic_layer_forward.1}
  #allocation0 [shape = 'u32[]', space=smem, size = 0x4, offset = 0x4, fixed_abs, tag = 'smem constant byte address 0x4 - core index']
  #allocation1 [shape = 'u32[144,128]{1,0:T(1,128)}', space=vmem, size = 0x12000, scoped, tag = 'internal scratch']
  #allocation2 [shape = 'f32[64,32]{1,0:T(8,128)}', space=vmem, size = 0x8000, scoped, tag = 'scratch operand']
  %s0 = inlined_call_operand.vmem [shape: f32[2,64,32], index: 0, kind: input, shape index: {}]
  %s1 = inlined_call_operand.vmem [shape: f32[2,1,32], index: 1, kind: input, shape index: {}]
  %s2 = inlined_call_operand.vmem [shape: f32[2,1,32], index: 2, kind: input, shape index: {}]
  %s3 = inlined_call_operand.vmem [shape: bf16[2,32,96], index: 3, kind: input, shape index: {}]
  %s4 = inlined_call_operand.vmem [shape: f32[2,1,96], index: 4, kind: input, shape index: {}]
  %s5 = inlined_call_operand.vmem [shape: bf16[2,32,32], index: 5, kind: input, shape index: {}]
  %s6 = inlined_call_operand.vmem [shape: f32[2,1,32], index: 6, kind: input, shape index: {}]
  %s7 = inlined_call_operand.vmem [shape: f32[2,1,32], index: 7, kind: input, shape index: {}]
  %s8 = inlined_call_operand.vmem [shape: f32[2,1,32], index: 8, kind: input, shape index: {}]
  %s9 = inlined_call_operand.vmem [shape: bf16[2,32,128], index: 9, kind: input, shape index: {}]
  %s10 = inlined_call_operand.vmem [shape: f32[2,1,128], index: 10, kind: input, shape index: {}]
  %s11 = inlined_call_operand.vmem [shape: bf16[2,128,32], index: 11, kind: input, shape index: {}]
  %s12 = inlined_call_operand.vmem [shape: f32[2,1,32], index: 12, kind: input, shape index: {}]
  %s13 = inlined_call_operand.hbm [shape: f32[2,4,64,64], index: 13, kind: input, shape index: {}]
  %s14 = inlined_call_operand.vmem [shape: f32[2,64,32], index: 14, kind: output, shape index: {}]
  %s15 = sld [smem:[#allocation0]]
  $region93: #{basic_layer_forward.1} parent=0
    _
  %s17 = ssub.s32 1, %s15
  %s18 = scalar_select 0, %s17, %s15
  $region1: #{basic_layer_forward.1} parent=0
    #allocation3 [shape = 'u8[262144]{0}', space=vmem, size = 0x40000, scoped, tag = 'input window, operand 13, single buffered']
    #allocation4 [shape = 's32[2]{0}', space=sflag, size = 0x8, scoped, tag = 'scoped memory for basic_layer_forward.1']
    %19 = vsyncpa [#allocation4], 0
    loop: start=0, step=1, limit=4
    $region2: #{basic_layer_forward.1} parent=1 // loop_pre_header
      _
    $region3: #{basic_layer_forward.1} parent=1 // loop_header
      %s21 = sphi 0, %s25
      %p22 = scmp.ge.s32.totalorder %s21, 4
      %s31 = sphi 0, %s33
      %s34 = sphi 0, %s31
      %s35 = sphi 0, %s34
      %s51 = sphi 0, %s35
      %s55 = sphi 0, %s55
      %s57 = sphi 0, %s55
      %s58 = sphi 0, %s57
      %s72 = sphi 0, %s58
      %s76 = sphi 0, %s76
      %s78 = sphi 0, %s76
      %s79 = sphi 0, %s78
      %s93 = sphi 0, %s79
      %s97 = sphi 0, %s97
      %s99 = sphi 0, %s97
      %s100 = sphi 0, %s99
      %s114 = sphi 0, %s100
      %s118 = sphi 0, %s118
      %s120 = sphi 0, %s118
      %s121 = sphi 0, %s120
      %s135 = sphi 0, %s121
      %s139 = sphi 0, %s139
      %s141 = sphi 0, %s139
      %s142 = sphi 0, %s141
      %s156 = sphi 0, %s142
      %s160 = sphi 0, %s160
      %s162 = sphi 0, %s160
      %s163 = sphi 0, %s162
      %s177 = sphi 0, %s163
      %s181 = sphi 0, %s181
      %s183 = sphi 0, %s181
      %s184 = sphi 0, %s183
      %s198 = sphi 0, %s184
      %s202 = sphi 0, %s202
      %s204 = sphi 0, %s202
      %s205 = sphi 0, %s204
      %s219 = sphi 0, %s205
      %s223 = sphi 0, %s223
      %s225 = sphi 0, %s223
      %s226 = sphi 0, %s225
      %s240 = sphi 0, %s226
      %s244 = sphi 0, %s244
      %s246 = sphi 0, %s244
      %s247 = sphi 0, %s246
      %s261 = sphi 0, %s247
      %s265 = sphi 0, %s265
      %s267 = sphi 0, %s265
      %s268 = sphi 0, %s267
      %s282 = sphi 0, %s268
      %s286 = sphi 0, %s286
      %s288 = sphi 0, %s286
      %s289 = sphi 0, %s288
      %s303 = sphi 0, %s289
      %s307 = sphi 0, %s307
      %s309 = sphi 0, %s307
      %s310 = sphi 0, %s309
      %s324 = sphi 0, %s310
      %s330 = sphi 0, %s332
      %s333 = sphi 0, %s330
      %s334 = sphi 0, %s333
      %s350 = sphi 0, %s334
    $region4: #{basic_layer_forward.1} parent=1 // loop_header_branch
      %24 = sbr.rel (%p22) target = $region8
    $region5: #{basic_layer_forward.1} parent=1 // loop_body
      %s26 = ssub.s32 %s21, 1
      %s27 = ssub.s32 %s21, 2
      %s28 = sadd.s32 %s21, 1
      %s29 = ssub.s32 %s21, %s28
      %p30 = scmp.eq.s32.totalorder %s29, 0
      %s32 = sadd.s32 %s31, 1
      %s33 = scalar_select %p30, %s31, %s32
      %p36 = pneg %p30
      %p37 = scmp.eq.s32.totalorder %s21, 1
      %p38 = por %p36, %p37
      %p39 = scmp.ne.s32.totalorder %s31, %s34
      %p40 = scmp.eq.s32.totalorder %s21, 0
      %p41 = por %p39, %p40
      %p42 = scmp.ne.s32.totalorder %s31, %s34
      %p43 = scmp.eq.s32.totalorder %s26, 1
      %p44 = por %p42, %p43
      %p45 = scmp.ne.s32.totalorder %s34, %s35
      %p46 = scmp.eq.s32.totalorder %s26, 0
      %p47 = por %p45, %p46
      %p48 = scmp.ne.s32.totalorder %s34, %s35
      %p49 = scmp.eq.s32.totalorder %s27, 1
      %p50 = por %p48, %p49
      %p52 = scmp.ne.s32.totalorder %s35, %s51
      %p53 = scmp.eq.s32.totalorder %s27, 0
      %p54 = por %p52, %p53
      %s56 = sadd.s32 %s55, 1
      %p59 = scmp.eq.s32.totalorder %s21, 1
      %p60 = scmp.ne.s32.totalorder %s55, %s57
      %p61 = scmp.eq.s32.totalorder %s21, 0
      %p62 = por %p60, %p61
      %p63 = scmp.ne.s32.totalorder %s55, %s57
      %p64 = scmp.eq.s32.totalorder %s26, 1
      %p65 = por %p63, %p64
      %p66 = scmp.ne.s32.totalorder %s57, %s58
      %p67 = scmp.eq.s32.totalorder %s26, 0
      %p68 = por %p66, %p67
      %p69 = scmp.ne.s32.totalorder %s57, %s58
      %p70 = scmp.eq.s32.totalorder %s27, 1
      %p71 = por %p69, %p70
      %p73 = scmp.ne.s32.totalorder %s58, %s72
      %p74 = scmp.eq.s32.totalorder %s27, 0
      %p75 = por %p73, %p74
      %s77 = sadd.s32 %s76, 1
      %p80 = scmp.eq.s32.totalorder %s21, 1
      %p81 = scmp.ne.s32.totalorder %s76, %s78
      %p82 = scmp.eq.s32.totalorder %s21, 0
      %p83 = por %p81, %p82
      %p84 = scmp.ne.s32.totalorder %s76, %s78
      %p85 = scmp.eq.s32.totalorder %s26, 1
      %p86 = por %p84, %p85
      %p87 = scmp.ne.s32.totalorder %s78, %s79
      %p88 = scmp.eq.s32.totalorder %s26, 0
      %p89 = por %p87, %p88
      %p90 = scmp.ne.s32.totalorder %s78, %s79
      %p91 = scmp.eq.s32.totalorder %s27, 1
      %p92 = por %p90, %p91
      %p94 = scmp.ne.s32.totalorder %s79, %s93
      %p95 = scmp.eq.s32.totalorder %s27, 0
      %p96 = por %p94, %p95
      %s98 = sadd.s32 %s97, 1
      %p101 = scmp.eq.s32.totalorder %s21, 1
      %p102 = scmp.ne.s32.totalorder %s97, %s99
      %p103 = scmp.eq.s32.totalorder %s21, 0
      %p104 = por %p102, %p103
      %p105 = scmp.ne.s32.totalorder %s97, %s99
      %p106 = scmp.eq.s32.totalorder %s26, 1
      %p107 = por %p105, %p106
      %p108 = scmp.ne.s32.totalorder %s99, %s100
      %p109 = scmp.eq.s32.totalorder %s26, 0
      %p110 = por %p108, %p109
      %p111 = scmp.ne.s32.totalorder %s99, %s100
      %p112 = scmp.eq.s32.totalorder %s27, 1
      %p113 = por %p111, %p112
      %p115 = scmp.ne.s32.totalorder %s100, %s114
      %p116 = scmp.eq.s32.totalorder %s27, 0
      %p117 = por %p115, %p116
      %s119 = sadd.s32 %s118, 1
      %p122 = scmp.eq.s32.totalorder %s21, 1
      %p123 = scmp.ne.s32.totalorder %s118, %s120
      %p124 = scmp.eq.s32.totalorder %s21, 0
      %p125 = por %p123, %p124
      %p126 = scmp.ne.s32.totalorder %s118, %s120
      %p127 = scmp.eq.s32.totalorder %s26, 1
      %p128 = por %p126, %p127
      %p129 = scmp.ne.s32.totalorder %s120, %s121
      %p130 = scmp.eq.s32.totalorder %s26, 0
      %p131 = por %p129, %p130
      %p132 = scmp.ne.s32.totalorder %s120, %s121
      %p133 = scmp.eq.s32.totalorder %s27, 1
      %p134 = por %p132, %p133
      %p136 = scmp.ne.s32.totalorder %s121, %s135
      %p137 = scmp.eq.s32.totalorder %s27, 0
      %p138 = por %p136, %p137
      %s140 = sadd.s32 %s139, 1
      %p143 = scmp.eq.s32.totalorder %s21, 1
      %p144 = scmp.ne.s32.totalorder %s139, %s141
      %p145 = scmp.eq.s32.totalorder %s21, 0
      %p146 = por %p144, %p145
      %p147 = scmp.ne.s32.totalorder %s139, %s141
      %p148 = scmp.eq.s32.totalorder %s26, 1
      %p149 = por %p147, %p148
      %p150 = scmp.ne.s32.totalorder %s141, %s142
      %p151 = scmp.eq.s32.totalorder %s26, 0
      %p152 = por %p150, %p151
      %p153 = scmp.ne.s32.totalorder %s141, %s142
      %p154 = scmp.eq.s32.totalorder %s27, 1
      %p155 = por %p153, %p154
      %p157 = scmp.ne.s32.totalorder %s142, %s156
      %p158 = scmp.eq.s32.totalorder %s27, 0
      %p159 = por %p157, %p158
      %s161 = sadd.s32 %s160, 1
      %p164 = scmp.eq.s32.totalorder %s21, 1
      %p165 = scmp.ne.s32.totalorder %s160, %s162
      %p166 = scmp.eq.s32.totalorder %s21, 0
      %p167 = por %p165, %p166
      %p168 = scmp.ne.s32.totalorder %s160, %s162
      %p169 = scmp.eq.s32.totalorder %s26, 1
      %p170 = por %p168, %p169
      %p171 = scmp.ne.s32.totalorder %s162, %s163
      %p172 = scmp.eq.s32.totalorder %s26, 0
      %p173 = por %p171, %p172
      %p174 = scmp.ne.s32.totalorder %s162, %s163
      %p175 = scmp.eq.s32.totalorder %s27, 1
      %p176 = por %p174, %p175
      %p178 = scmp.ne.s32.totalorder %s163, %s177
      %p179 = scmp.eq.s32.totalorder %s27, 0
      %p180 = por %p178, %p179
      %s182 = sadd.s32 %s181, 1
      %p185 = scmp.eq.s32.totalorder %s21, 1
      %p186 = scmp.ne.s32.totalorder %s181, %s183
      %p187 = scmp.eq.s32.totalorder %s21, 0
      %p188 = por %p186, %p187
      %p189 = scmp.ne.s32.totalorder %s181, %s183
      %p190 = scmp.eq.s32.totalorder %s26, 1
      %p191 = por %p189, %p190
      %p192 = scmp.ne.s32.totalorder %s183, %s184
      %p193 = scmp.eq.s32.totalorder %s26, 0
      %p194 = por %p192, %p193
      %p195 = scmp.ne.s32.totalorder %s183, %s184
      %p196 = scmp.eq.s32.totalorder %s27, 1
      %p197 = por %p195, %p196
      %p199 = scmp.ne.s32.totalorder %s184, %s198
      %p200 = scmp.eq.s32.totalorder %s27, 0
      %p201 = por %p199, %p200
      %s203 = sadd.s32 %s202, 1
      %p206 = scmp.eq.s32.totalorder %s21, 1
      %p207 = scmp.ne.s32.totalorder %s202, %s204
      %p208 = scmp.eq.s32.totalorder %s21, 0
      %p209 = por %p207, %p208
      %p210 = scmp.ne.s32.totalorder %s202, %s204
      %p211 = scmp.eq.s32.totalorder %s26, 1
      %p212 = por %p210, %p211
      %p213 = scmp.ne.s32.totalorder %s204, %s205
      %p214 = scmp.eq.s32.totalorder %s26, 0
      %p215 = por %p213, %p214
      %p216 = scmp.ne.s32.totalorder %s204, %s205
      %p217 = scmp.eq.s32.totalorder %s27, 1
      %p218 = por %p216, %p217
      %p220 = scmp.ne.s32.totalorder %s205, %s219
      %p221 = scmp.eq.s32.totalorder %s27, 0
      %p222 = por %p220, %p221
      %s224 = sadd.s32 %s223, 1
      %p227 = scmp.eq.s32.totalorder %s21, 1
      %p228 = scmp.ne.s32.totalorder %s223, %s225
      %p229 = scmp.eq.s32.totalorder %s21, 0
      %p230 = por %p228, %p229
      %p231 = scmp.ne.s32.totalorder %s223, %s225
      %p232 = scmp.eq.s32.totalorder %s26, 1
      %p233 = por %p231, %p232
      %p234 = scmp.ne.s32.totalorder %s225, %s226
      %p235 = scmp.eq.s32.totalorder %s26, 0
      %p236 = por %p234, %p235
      %p237 = scmp.ne.s32.totalorder %s225, %s226
      %p238 = scmp.eq.s32.totalorder %s27, 1
      %p239 = por %p237, %p238
      %p241 = scmp.ne.s32.totalorder %s226, %s240
      %p242 = scmp.eq.s32.totalorder %s27, 0
      %p243 = por %p241, %p242
      %s245 = sadd.s32 %s244, 1
      %p248 = scmp.eq.s32.totalorder %s21, 1
      %p249 = scmp.ne.s32.totalorder %s244, %s246
      %p250 = scmp.eq.s32.totalorder %s21, 0
      %p251 = por %p249, %p250
      %p252 = scmp.ne.s32.totalorder %s244, %s246
      %p253 = scmp.eq.s32.totalorder %s26, 1
      %p254 = por %p252, %p253
      %p255 = scmp.ne.s32.totalorder %s246, %s247
      %p256 = scmp.eq.s32.totalorder %s26, 0
      %p257 = por %p255, %p256
      %p258 = scmp.ne.s32.totalorder %s246, %s247
      %p259 = scmp.eq.s32.totalorder %s27, 1
      %p260 = por %p258, %p259
      %p262 = scmp.ne.s32.totalorder %s247, %s261
      %p263 = scmp.eq.s32.totalorder %s27, 0
      %p264 = por %p262, %p263
      %s266 = sadd.s32 %s265, 1
      %p269 = scmp.eq.s32.totalorder %s21, 1
      %p270 = scmp.ne.s32.totalorder %s265, %s267
      %p271 = scmp.eq.s32.totalorder %s21, 0
      %p272 = por %p270, %p271
      %p273 = scmp.ne.s32.totalorder %s265, %s267
      %p274 = scmp.eq.s32.totalorder %s26, 1
      %p275 = por %p273, %p274
      %p276 = scmp.ne.s32.totalorder %s267, %s268
      %p277 = scmp.eq.s32.totalorder %s26, 0
      %p278 = por %p276, %p277
      %p279 = scmp.ne.s32.totalorder %s267, %s268
      %p280 = scmp.eq.s32.totalorder %s27, 1
      %p281 = por %p279, %p280
      %p283 = scmp.ne.s32.totalorder %s268, %s282
      %p284 = scmp.eq.s32.totalorder %s27, 0
      %p285 = por %p283, %p284
      %s287 = sadd.s32 %s286, 1
      %p290 = scmp.eq.s32.totalorder %s21, 1
      %p291 = scmp.ne.s32.totalorder %s286, %s288
      %p292 = scmp.eq.s32.totalorder %s21, 0
      %p293 = por %p291, %p292
      %p294 = scmp.ne.s32.totalorder %s286, %s288
      %p295 = scmp.eq.s32.totalorder %s26, 1
      %p296 = por %p294, %p295
      %p297 = scmp.ne.s32.totalorder %s288, %s289
      %p298 = scmp.eq.s32.totalorder %s26, 0
      %p299 = por %p297, %p298
      %p300 = scmp.ne.s32.totalorder %s288, %s289
      %p301 = scmp.eq.s32.totalorder %s27, 1
      %p302 = por %p300, %p301
      %p304 = scmp.ne.s32.totalorder %s289, %s303
      %p305 = scmp.eq.s32.totalorder %s27, 0
      %p306 = por %p304, %p305
      %s308 = sadd.s32 %s307, 1
      %p311 = scmp.eq.s32.totalorder %s21, 1
      %p312 = scmp.ne.s32.totalorder %s307, %s309
      %p313 = scmp.eq.s32.totalorder %s21, 0
      %p314 = por %p312, %p313
      %p315 = scmp.ne.s32.totalorder %s307, %s309
      %p316 = scmp.eq.s32.totalorder %s26, 1
      %p317 = por %p315, %p316
      %p318 = scmp.ne.s32.totalorder %s309, %s310
      %p319 = scmp.eq.s32.totalorder %s26, 0
      %p320 = por %p318, %p319
      %p321 = scmp.ne.s32.totalorder %s309, %s310
      %p322 = scmp.eq.s32.totalorder %s27, 1
      %p323 = por %p321, %p322
      %p325 = scmp.ne.s32.totalorder %s310, %s324
      %p326 = scmp.eq.s32.totalorder %s27, 0
      %p327 = por %p325, %p326
      %s328 = ssub.s32 %s21, %s28
      %p329 = scmp.eq.s32.totalorder %s328, 0
      %s331 = sadd.s32 %s330, 1
      %s332 = scalar_select %p329, %s330, %s331
      %p335 = pneg %p329
      %p336 = scmp.eq.s32.totalorder %s21, 1
      %p337 = por %p335, %p336
      %p338 = scmp.ne.s32.totalorder %s330, %s333
      %p339 = scmp.eq.s32.totalorder %s21, 0
      %p340 = por %p338, %p339
      %p341 = scmp.ne.s32.totalorder %s330, %s333
      %p342 = scmp.eq.s32.totalorder %s26, 1
      %p343 = por %p341, %p342
      %p344 = scmp.ne.s32.totalorder %s333, %s334
      %p345 = scmp.eq.s32.totalorder %s26, 0
      %p346 = por %p344, %p345
      %p347 = scmp.ne.s32.totalorder %s333, %s334
      %p348 = scmp.eq.s32.totalorder %s27, 1
      %p349 = por %p347, %p348
      %p351 = scmp.ne.s32.totalorder %s334, %s350
      %p352 = scmp.eq.s32.totalorder %s27, 0
      %p353 = por %p351, %p352
      %p354 = scmp.le.s32.totalorder 1, %s21
      %p355 = scmp.lt.s32.totalorder %s21, 3
      %p356 = pnand %p354, %p355
      %p357 = pneg %p356
      // Predicated region
      $region9: #{basic_layer_forward.1} parent=5 // pred_check
        _
      $region10: #{basic_layer_forward.1} parent=5 // pred_check_branch
        %359 = sbr.rel (%p356) target = $region12
      $region11: #{basic_layer_forward.1} parent=5 // pred_region
        %s360 = ssub.s32 %s21, 1
        // Predicated region
        $region13: #{basic_layer_forward.1} parent=11 // pred_check
          %p361 = pneg %p68
        $region14: #{basic_layer_forward.1} parent=11 // pred_check_branch
          %363 = sbr.rel (%p361) target = $region16
        $region15: #{basic_layer_forward.1} parent=11 // pred_region
          _
        $region16: #{basic_layer_forward.1} parent=11 // pred_fallthru
          _
        // Predicated region
        $region17: #{basic_layer_forward.1} parent=11 // pred_check
          %p364 = pneg %p89
        $region18: #{basic_layer_forward.1} parent=11 // pred_check_branch
          %366 = sbr.rel (%p364) target = $region20
        $region19: #{basic_layer_forward.1} parent=11 // pred_region
          _
        $region20: #{basic_layer_forward.1} parent=11 // pred_fallthru
          _
        // Predicated region
        $region21: #{basic_layer_forward.1} parent=11 // pred_check
          %p367 = pneg %p110
        $region22: #{basic_layer_forward.1} parent=11 // pred_check_branch
          %369 = sbr.rel (%p367) target = $region24
        $region23: #{basic_layer_forward.1} parent=11 // pred_region
          _
        $region24: #{basic_layer_forward.1} parent=11 // pred_fallthru
          _
        // Predicated region
        $region25: #{basic_layer_forward.1} parent=11 // pred_check
          %p370 = pneg %p131
        $region26: #{basic_layer_forward.1} parent=11 // pred_check_branch
          %372 = sbr.rel (%p370) target = $region28
        $region27: #{basic_layer_forward.1} parent=11 // pred_region
          _
        $region28: #{basic_layer_forward.1} parent=11 // pred_fallthru
          _
        // Predicated region
        $region29: #{basic_layer_forward.1} parent=11 // pred_check
          %p373 = pneg %p152
        $region30: #{basic_layer_forward.1} parent=11 // pred_check_branch
          %375 = sbr.rel (%p373) target = $region32
        $region31: #{basic_layer_forward.1} parent=11 // pred_region
          _
        $region32: #{basic_layer_forward.1} parent=11 // pred_fallthru
          _
        // Predicated region
        $region33: #{basic_layer_forward.1} parent=11 // pred_check
          %p376 = pneg %p173
        $region34: #{basic_layer_forward.1} parent=11 // pred_check_branch
          %378 = sbr.rel (%p376) target = $region36
        $region35: #{basic_layer_forward.1} parent=11 // pred_region
          _
        $region36: #{basic_layer_forward.1} parent=11 // pred_fallthru
          _
        // Predicated region
        $region37: #{basic_layer_forward.1} parent=11 // pred_check
          %p379 = pneg %p194
        $region38: #{basic_layer_forward.1} parent=11 // pred_check_branch
          %381 = sbr.rel (%p379) target = $region40
        $region39: #{basic_layer_forward.1} parent=11 // pred_region
          _
        $region40: #{basic_layer_forward.1} parent=11 // pred_fallthru
          _
        // Predicated region
        $region41: #{basic_layer_forward.1} parent=11 // pred_check
          %p382 = pneg %p215
        $region42: #{basic_layer_forward.1} parent=11 // pred_check_branch
          %384 = sbr.rel (%p382) target = $region44
        $region43: #{basic_layer_forward.1} parent=11 // pred_region
          _
        $region44: #{basic_layer_forward.1} parent=11 // pred_fallthru
          _
        // Predicated region
        $region45: #{basic_layer_forward.1} parent=11 // pred_check
          %p385 = pneg %p236
        $region46: #{basic_layer_forward.1} parent=11 // pred_check_branch
          %387 = sbr.rel (%p385) target = $region48
        $region47: #{basic_layer_forward.1} parent=11 // pred_region
          _
        $region48: #{basic_layer_forward.1} parent=11 // pred_fallthru
          _
        // Predicated region
        $region49: #{basic_layer_forward.1} parent=11 // pred_check
          %p388 = pneg %p257
        $region50: #{basic_layer_forward.1} parent=11 // pred_check_branch
          %390 = sbr.rel (%p388) target = $region52
        $region51: #{basic_layer_forward.1} parent=11 // pred_region
          _
        $region52: #{basic_layer_forward.1} parent=11 // pred_fallthru
          _
        // Predicated region
        $region53: #{basic_layer_forward.1} parent=11 // pred_check
          %p391 = pneg %p278
        $region54: #{basic_layer_forward.1} parent=11 // pred_check_branch
          %393 = sbr.rel (%p391) target = $region56
        $region55: #{basic_layer_forward.1} parent=11 // pred_region
          _
        $region56: #{basic_layer_forward.1} parent=11 // pred_fallthru
          _
        // Predicated region
        $region57: #{basic_layer_forward.1} parent=11 // pred_check
          %p394 = pneg %p299
        $region58: #{basic_layer_forward.1} parent=11 // pred_check_branch
          %396 = sbr.rel (%p394) target = $region60
        $region59: #{basic_layer_forward.1} parent=11 // pred_region
          _
        $region60: #{basic_layer_forward.1} parent=11 // pred_fallthru
          _
        // Predicated region
        $region61: #{basic_layer_forward.1} parent=11 // pred_check
          %p397 = pneg %p320
        $region62: #{basic_layer_forward.1} parent=11 // pred_check_branch
          %399 = sbr.rel (%p397) target = $region64
        $region63: #{basic_layer_forward.1} parent=11 // pred_region
          %s401 = ssub.s32 8192, 8192
          %402 = vsyncadd [#allocation4], %s401
          %s403 = sshll.u32 [#allocation3], 4
          %s404 = int_to_ptr.vmem [resolvable:$true] %s403
          %409 = dma.hbm_to_vmem [thread:$0]  %s13, 8192, %s404, [#allocation4], 128, 128, 8
        $region64: #{basic_layer_forward.1} parent=11 // pred_fallthru
          _
      $region12: #{basic_layer_forward.1} parent=5 // pred_fallthru
        _
      %p410 = scmp.lt.s32.totalorder %s21, 2
      // Predicated region
      $region65: #{basic_layer_forward.1} parent=5 // pred_check
        %p411 = pneg %p410
      $region66: #{basic_layer_forward.1} parent=5 // pred_check_branch
        %413 = sbr.rel (%p411) target = $region68
      $region67: #{basic_layer_forward.1} parent=5 // pred_region
        // Predicated region
        $region69: #{basic_layer_forward.1} parent=67 // pred_check
          %p414 = pneg %p41
        $region70: #{basic_layer_forward.1} parent=67 // pred_check_branch
          %416 = sbr.rel (%p414) target = $region72
        $region71: #{basic_layer_forward.1} parent=67 // pred_region
          %p417 = scmp.lt.s32.totalorder %s21, 1
          %s418 = scalar_select %p417, %s21, 1
          %s419 = smul.addr %s418, 8
          %s420 = smul.addr %s419, 8
          %s421 = scalar_lea.vmem %s0, %s420
        $region72: #{basic_layer_forward.1} parent=67 // pred_fallthru
          _
      $region68: #{basic_layer_forward.1} parent=5 // pred_fallthru
        _
      %p422 = scmp.le.s32.totalorder 1, %s21
      %p423 = scmp.lt.s32.totalorder %s21, 3
      %p424 = pnand %p422, %p423
      %p425 = pneg %p424
      // Predicated region
      $region73: #{basic_layer_forward.1} parent=5 // pred_check
        _
      $region74: #{basic_layer_forward.1} parent=5 // pred_check_branch
        %427 = sbr.rel (%p424) target = $region76
      $region75: #{basic_layer_forward.1} parent=5 // pred_region
        %s428 = ssub.s32 %s21, 1
        // Predicated region
        $region77: #{basic_layer_forward.1} parent=75 // pred_check
          %p429 = pneg %p320
        $region78: #{basic_layer_forward.1} parent=75 // pred_check_branch
          %431 = sbr.rel (%p429) target = $region80
        $region79: #{basic_layer_forward.1} parent=75 // pred_region
          %432 = dma.done [#allocation4], 8192
        $region80: #{basic_layer_forward.1} parent=75 // pred_fallthru
          _
        %p433 = scmp.lt.s32.totalorder %s26, 1
        %s434 = scalar_select %p433, %s26, 1
        %s435 = smul.addr %s434, 8
        %s436 = smul.addr %s435, 8
        %s437 = scalar_lea.vmem %s0, %s436
        %p438 = pneg %p47
        %p439 = pneg %p44
        %p440 = pneg %p68
        %p441 = pneg %p65
        %p442 = pneg %p89
        %p443 = pneg %p86
        %p444 = pneg %p110
        %p445 = pneg %p107
        %p446 = pneg %p131
        %p447 = pneg %p128
        %p448 = pneg %p152
        %p449 = pneg %p149
        %p450 = pneg %p173
        %p451 = pneg %p170
        %p452 = pneg %p194
        %p453 = pneg %p191
        %p454 = pneg %p215
        %p455 = pneg %p212
        %p456 = pneg %p236
        %p457 = pneg %p233
        %p458 = pneg %p257
        %p459 = pneg %p254
        %p460 = pneg %p278
        %p461 = pneg %p275
        %p462 = pneg %p299
        %p463 = pneg %p296
        %p464 = pneg %p320
        %p465 = pneg %p317
        %p466 = pneg %p346
        %p467 = pneg %p343
        %p468 = scmp.lt.s32.totalorder %s26, 1
        %s469 = scalar_select %p468, %s26, 1
        %s470 = smul.addr %s469, 8
        %s471 = smul.addr %s470, 8
        %s472 = scalar_lea.vmem %s14, %s471
        %p473 = scmp.lt.s32.totalorder %s26, 1
        %s474 = scalar_select %p473, %s26, 1
        %s475 = smul.addr %s474, 8
        %s476 = smul.addr %s475, 8
        %s477 = scalar_lea.vmem %s0, %s476
        %p478 = scmp.lt.s32.totalorder %s26, 1
        %s479 = scalar_select %p478, %s26, 1
        %s480 = smul.addr %s479, 8
        %s481 = smul.addr %s480, 8
        %s482 = scalar_lea.vmem %s14, %s481
        %v484 = vld [vmem:[%s477] sm:$0xff]
        %v485 = vld [vmem:[%s477 + $0x8] sm:$0xff]
        %v486 = vld [vmem:[%s477 + $0x10] sm:$0xff]
        %v487 = vld [vmem:[%s477 + $0x18] sm:$0xff]
        %v488 = vld [vmem:[%s477 + $0x20] sm:$0xff]
        %v489 = vld [vmem:[%s477 + $0x28] sm:$0xff]
        %v490 = vld [vmem:[%s477 + $0x30] sm:$0xff]
        %v491 = vld [vmem:[%s477 + $0x38] sm:$0xff]
        %v492 = vld [vmem:[%s1] sm:$0x1]
        %v493 = vld [vmem:[%s2] sm:$0x1]
        %vm494 = vcmask 261120
        %v495 = vsel %vm494, %v484, 0.0
        %496 = vadd.xlane.f32.xlu0 %v495
        %v497 = vpop.xlane.xlu0 %496
        %v498 = vsel %vm494, %v485, 0.0
        %499 = vadd.xlane.f32.xlu0 %v498
        %v500 = vpop.xlane.xlu0 %499
        %v501 = vsel %vm494, %v486, 0.0
        %502 = vadd.xlane.f32.xlu0 %v501
        %v503 = vpop.xlane.xlu0 %502
        %v504 = vsel %vm494, %v487, 0.0
        %505 = vadd.xlane.f32.xlu0 %v504
        %v506 = vpop.xlane.xlu0 %505
        %v507 = vsel %vm494, %v488, 0.0
        %508 = vadd.xlane.f32.xlu0 %v507
        %v509 = vpop.xlane.xlu0 %508
        %v510 = vsel %vm494, %v489, 0.0
        %511 = vadd.xlane.f32.xlu0 %v510
        %v512 = vpop.xlane.xlu0 %511
        %v513 = vsel %vm494, %v490, 0.0
        %514 = vadd.xlane.f32.xlu0 %v513
        %v515 = vpop.xlane.xlu0 %514
        %v516 = vsel %vm494, %v491, 0.0
        %517 = vadd.xlane.f32.xlu0 %v516
        %v518 = vpop.xlane.xlu0 %517
        %v519 = vrcp.pop 32.0
        %v520 = vmul.f32 %v497, %v519
        %v521 = vmul.f32 %v500, %v519
        %v522 = vmul.f32 %v503, %v519
        %v523 = vmul.f32 %v506, %v519
        %v524 = vmul.f32 %v509, %v519
        %v525 = vmul.f32 %v512, %v519
        %v526 = vmul.f32 %v515, %v519
        %v527 = vmul.f32 %v518, %v519
        %v528 = vsub.f32 %v484, %v520
        %v529 = vsub.f32 %v485, %v521
        %v530 = vsub.f32 %v486, %v522
        %v531 = vsub.f32 %v487, %v523
        %v532 = vsub.f32 %v488, %v524
        %v533 = vsub.f32 %v489, %v525
        %v534 = vsub.f32 %v490, %v526
        %v535 = vsub.f32 %v491, %v527
        %v536 = vmul.f32 %v528, %v528
        %v537 = vmul.f32 %v529, %v529
        %v538 = vmul.f32 %v530, %v530
        %v539 = vmul.f32 %v531, %v531
        %v540 = vmul.f32 %v532, %v532
        %v541 = vmul.f32 %v533, %v533
        %v542 = vmul.f32 %v534, %v534
        %v543 = vmul.f32 %v535, %v535
        %v544 = vsel %vm494, %v536, 0.0
        %545 = vadd.xlane.f32.xlu0 %v544
        %v546 = vpop.xlane.xlu0 %545
        %v547 = vsel %vm494, %v537, 0.0
        %548 = vadd.xlane.f32.xlu0 %v547
        %v549 = vpop.xlane.xlu0 %548
        %v550 = vsel %vm494, %v538, 0.0
        %551 = vadd.xlane.f32.xlu0 %v550
        %v552 = vpop.xlane.xlu0 %551
        %v553 = vsel %vm494, %v539, 0.0
        %554 = vadd.xlane.f32.xlu0 %v553
        %v555 = vpop.xlane.xlu0 %554
        %v556 = vsel %vm494, %v540, 0.0
        %557 = vadd.xlane.f32.xlu0 %v556
        %v558 = vpop.xlane.xlu0 %557
        %v559 = vsel %vm494, %v541, 0.0
        %560 = vadd.xlane.f32.xlu0 %v559
        %v561 = vpop.xlane.xlu0 %560
        %v562 = vsel %vm494, %v542, 0.0
        %563 = vadd.xlane.f32.xlu0 %v562
        %v564 = vpop.xlane.xlu0 %563
        %v565 = vsel %vm494, %v543, 0.0
        %566 = vadd.xlane.f32.xlu0 %v565
        %v567 = vpop.xlane.xlu0 %566
        %v568 = vmul.f32 %v546, %v519
        %v569 = vmul.f32 %v549, %v519
        %v570 = vmul.f32 %v552, %v519
        %v571 = vmul.f32 %v555, %v519
        %v572 = vmul.f32 %v558, %v519
        %v573 = vmul.f32 %v561, %v519
        %v574 = vmul.f32 %v564, %v519
        %v575 = vmul.f32 %v567, %v519
        %v576 = vadd.f32 %v568, 1e-05
        %v577 = vadd.f32 %v569, 1e-05
        %v578 = vadd.f32 %v570, 1e-05
        %v579 = vadd.f32 %v571, 1e-05
        %v580 = vadd.f32 %v572, 1e-05
        %v581 = vadd.f32 %v573, 1e-05
        %v582 = vadd.f32 %v574, 1e-05
        %v583 = vadd.f32 %v575, 1e-05
        %v584 = vrsqrt.pop %v576
        %v585 = vrsqrt.pop %v577
        %v586 = vrsqrt.pop %v578
        %v587 = vrsqrt.pop %v579
        %v588 = vrsqrt.pop %v580
        %v589 = vrsqrt.pop %v581
        %v590 = vrsqrt.pop %v582
        %v591 = vrsqrt.pop %v583
        %v592 = vmul.f32 %v528, %v584
        %v593 = vmul.f32 %v529, %v585
        %v594 = vmul.f32 %v530, %v586
        %v595 = vmul.f32 %v531, %v587
        %v596 = vmul.f32 %v532, %v588
        %v597 = vmul.f32 %v533, %v589
        %v598 = vmul.f32 %v534, %v590
        %v599 = vmul.f32 %v535, %v591
        %v601 = vlaneseq
        %v602 = vshrl.u32 %v601, 7
        %v603 = vsub.s32 0, %v602
        %v604 = vrot.slane %v492, %v603
        %v606 = vmul.f32 %v592, %v604
        %v607 = vmul.f32 %v593, %v604
        %v608 = vmul.f32 %v594, %v604
        %v609 = vmul.f32 %v595, %v604
        %v610 = vmul.f32 %v596, %v604
        %v611 = vmul.f32 %v597, %v604
        %v612 = vmul.f32 %v598, %v604
        %v613 = vmul.f32 %v599, %v604
        %v615 = vlaneseq
        %v616 = vshrl.u32 %v615, 7
        %v617 = vsub.s32 0, %v616
        %v618 = vrot.slane %v493, %v617
        %v620 = vadd.f32 %v606, %v618
        %v621 = vadd.f32 %v607, %v618
        %v622 = vadd.f32 %v608, %v618
        %v623 = vadd.f32 %v609, %v618
        %v624 = vadd.f32 %v610, %v618
        %v625 = vadd.f32 %v611, %v618
        %v626 = vadd.f32 %v612, %v618
        %v627 = vadd.f32 %v613, %v618
        %v628 = vpack.c.bf16 %v621, %v620
        %v629 = vpack.c.bf16 %v623, %v622
        %v630 = vpack.c.bf16 %v625, %v624
        %v631 = vpack.c.bf16 %v627, %v626
        %v632 = vld [vmem:[%s3] sm:$0xf]
        %v633 = vld [vmem:[%s3 + $0x4] sm:$0xf]
        %v634 = vld [vmem:[%s3 + $0x8] sm:$0xf]
        %v635 = vld [vmem:[%s3 + $0xc] sm:$0xf]
        %v636 = vld [vmem:[%s4] sm:$0x1]
        %v638 = vlaneseq
        %v639 = vshrl.u32 %v638, 7
        %v640 = vsub.s32 0, %v639
        %v641 = vrot.slane %v636, %v640
        %v647 = vunpack.c.l.b16 %v632
        %v648 = vunpack.c.l.b16 %v633
        %v649 = vunpack.c.l.b16 %v634
        %v650 = vunpack.c.l.b16 %v635
        %v651 = vpack.c.b16 %v648, %v647
        %v652 = vpack.c.b16 %v650, %v649
        %v656 = vsel %vm494, %v628, 0
        %v659 = vsel %vm494, %v629, 0
        %v662 = vsel %vm494, %v630, 0
        %v665 = vsel %vm494, %v631, 0
        %667 = vmatprep.subr.bf16.mxu0 0
        %668 = vmatpush1.bf16.msra.mxu0 0
        %669 = vmatprep.subr.bf16.mxu0 0
        %670 = vmatpush1.bf16.msra.mxu0 0
        %671 = vmatprep.subr.bf16.mxu0 0
        %672 = vmatpush1.bf16.msra.mxu0 0
        %673 = vmatprep.subr.bf16.mxu0 0
        %674 = vmatpush1.bf16.msra.mxu0 0
        %675 = vmatprep.subr.bf16.mxu0 0
        %676 = vmatpush1.bf16.msra.mxu0 0
        %677 = vmatprep.subr.bf16.mxu0 0
        %678 = vmatpush1.bf16.msra.mxu0 0
        %679 = vmatprep.subr.bf16.mxu0 0
        %680 = vmatpush1.bf16.msra.mxu0 %v652
        %681 = vmatprep.subr.bf16.mxu0 0
        %682 = vmatpush1.bf16.msra.mxu0 %v651
        %683 = vmatprep.subr.bf16.mxu0 0
        %684 = vmatpush2.bf16.msra.mxu0 0
        %685 = vmatprep.subr.bf16.mxu0 0
        %686 = vmatpush2.bf16.msra.mxu0 0
        %687 = vmatprep.subr.bf16.mxu0 0
        %688 = vmatpush2.bf16.msra.mxu0 0
        %689 = vmatprep.subr.bf16.mxu0 0
        %690 = vmatpush2.bf16.msra.mxu0 0
        %691 = vmatprep.subr.bf16.mxu0 0
        %692 = vmatpush2.bf16.msra.mxu0 0
        %693 = vmatprep.subr.bf16.mxu0 0
        %694 = vmatpush2.bf16.msra.mxu0 0
        %695 = vmatprep.subr.bf16.mxu0 0
        %696 = vmatpush2.bf16.msra.mxu0 0
        %697 = vmatprep.subr.bf16.mxu0 0
        %698 = vmatpush2.bf16.msra.mxu0 0
        %699 = vmatprep.mubr.bf16.mxu0 0
        %700 = vmatmul.mubr.bf16.gmra.mxu0 %v656
        %v701 = vpop.f32.mrf.mxu0
        %v702 = vadd.f32 %v641, %v701
        %v703 = vpop.f32.mrf.mxu0
        %v704 = vpop.f32.mrf.mxu0
        %v705 = vadd.f32 %v641, %v704
        %v706 = vpop.f32.mrf.mxu0
        %707 = vmatprep.mubr.bf16.mxu0 0
        %708 = vmatmul.mubr.bf16.gmra.mxu0 %v659
        %v709 = vpop.f32.mrf.mxu0
        %v710 = vadd.f32 %v641, %v709
        %v711 = vpop.f32.mrf.mxu0
        %v712 = vpop.f32.mrf.mxu0
        %v713 = vadd.f32 %v641, %v712
        %v714 = vpop.f32.mrf.mxu0
        %715 = vmatprep.mubr.bf16.mxu0 0
        %716 = vmatmul.mubr.bf16.gmra.mxu0 %v662
        %v717 = vpop.f32.mrf.mxu0
        %v718 = vadd.f32 %v641, %v717
        %v719 = vpop.f32.mrf.mxu0
        %v720 = vpop.f32.mrf.mxu0
        %v721 = vadd.f32 %v641, %v720
        %v722 = vpop.f32.mrf.mxu0
        %723 = vmatprep.mubr.bf16.mxu0 0
        %724 = vmatmul.mubr.bf16.gmra.mxu0 %v665
        %v725 = vpop.f32.mrf.mxu0
        %v726 = vadd.f32 %v641, %v725
        %v727 = vpop.f32.mrf.mxu0
        %v728 = vpop.f32.mrf.mxu0
        %v729 = vadd.f32 %v641, %v728
        %v730 = vpop.f32.mrf.mxu0
        %731 = vdwg.mxu0
        %v732 = vpack.c.bf16 %v705, %v702
        %v733 = vpack.c.bf16 %v713, %v710
        %v734 = vpack.c.bf16 %v721, %v718
        %v735 = vpack.c.bf16 %v729, %v726
        %744 = vrot.lane.b32.xlu0 %v702, 96
        %v745 = vpop.permute.xlu0 %744
        %746 = vrot.lane.b32.xlu0 %v705, 96
        %v747 = vpop.permute.xlu0 %746
        %748 = vrot.lane.b32.xlu0 %v710, 96
        %v749 = vpop.permute.xlu0 %748
        %750 = vrot.lane.b32.xlu0 %v713, 96
        %v751 = vpop.permute.xlu0 %750
        %752 = vrot.lane.b32.xlu0 %v718, 96
        %v753 = vpop.permute.xlu0 %752
        %754 = vrot.lane.b32.xlu0 %v721, 96
        %v755 = vpop.permute.xlu0 %754
        %756 = vrot.lane.b32.xlu0 %v726, 96
        %v757 = vpop.permute.xlu0 %756
        %758 = vrot.lane.b32.xlu0 %v729, 96
        %v759 = vpop.permute.xlu0 %758
        %768 = vxpose.xlu0.b32.start [1/16] %v745, 128
        %769 = vxpose.xlu0.b32.cont [2/16] %v747, 128
        %770 = vxpose.xlu0.b32.cont [3/16] %v749, 128
        %771 = vxpose.xlu0.b32.cont [4/16] %v751, 128
        %772 = vxpose.xlu0.b32.cont [5/16] %v753, 128
        %773 = vxpose.xlu0.b32.cont [6/16] %v755, 128
        %774 = vxpose.xlu0.b32.cont [7/16] %v757, 128
        %775 = vxpose.xlu0.b32.cont [8/16] %v759, 128
        %776 = vxpose.xlu0.b32.cont [9/16] 0.0, 128
        %777 = vxpose.xlu0.b32.cont [10/16] 0.0, 128
        %778 = vxpose.xlu0.b32.cont [11/16] 0.0, 128
        %779 = vxpose.xlu0.b32.cont [12/16] 0.0, 128
        %780 = vxpose.xlu0.b32.cont [13/16] 0.0, 128
        %781 = vxpose.xlu0.b32.cont [14/16] 0.0, 128
        %782 = vxpose.xlu0.b32.cont [15/16] 0.0, 128
        %783 = vxpose.xlu0.b32.end [16/16] 0.0, 128
        %v784 = vpop.trf.xlu0
        %v785 = vpop.trf.xlu0
        %v786 = vpop.trf.xlu0
        %v787 = vpop.trf.xlu0
        %v788 = vpop.trf.xlu0
        %v789 = vpop.trf.xlu0
        %v790 = vpop.trf.xlu0
        %v791 = vpop.trf.xlu0
        %v792 = vpop.trf.xlu0
        %v793 = vpop.trf.xlu0
        %v794 = vpop.trf.xlu0
        %v795 = vpop.trf.xlu0
        %v796 = vpop.trf.xlu0
        %v797 = vpop.trf.xlu0
        %v798 = vpop.trf.xlu0
        %v799 = vpop.trf.xlu0
        %v800 = vpack.c.bf16 %v784, %v784
        %vm801 = vcmask 64512
        %v803 = vsel %vm801, %v732, 0
        %v806 = vsel %vm801, %v733, 0
        %v809 = vsel %vm801, %v734, 0
        %v812 = vsel %vm801, %v735, 0
        %vm814 = vcmask 1043456
        %v816 = vsel %vm814, %v800, 0
        %818 = vmatprep.subr.bf16.mxu0 0
        %819 = vmatpush1.bf16.msra.mxu0 0
        %820 = vmatprep.subr.bf16.mxu0 0
        %821 = vmatpush1.bf16.msra.mxu0 0
        %822 = vmatprep.subr.bf16.mxu0 0
        %823 = vmatpush1.bf16.msra.mxu0 0
        %824 = vmatprep.subr.bf16.mxu0 0
        %825 = vmatpush1.bf16.msra.mxu0 0
        %826 = vmatprep.subr.bf16.mxu0 0
        %827 = vmatpush1.bf16.msra.mxu0 0
        %828 = vmatprep.subr.bf16.mxu0 0
        %829 = vmatpush1.bf16.msra.mxu0 0
        %830 = vmatprep.subr.bf16.mxu0 0
        %831 = vmatpush1.bf16.msra.mxu0 0
        %832 = vmatprep.subr.bf16.mxu0 0
        %833 = vmatpush1.bf16.msra.mxu0 %v816
        %834 = vmatprep.subr.bf16.mxu0 0
        %835 = vmatpush2.bf16.msra.mxu0 0
        %836 = vmatprep.subr.bf16.mxu0 0
        %837 = vmatpush2.bf16.msra.mxu0 0
        %838 = vmatprep.subr.bf16.mxu0 0
        %839 = vmatpush2.bf16.msra.mxu0 0
        %840 = vmatprep.subr.bf16.mxu0 0
        %841 = vmatpush2.bf16.msra.mxu0 0
        %842 = vmatprep.subr.bf16.mxu0 0
        %843 = vmatpush2.bf16.msra.mxu0 0
        %844 = vmatprep.subr.bf16.mxu0 0
        %845 = vmatpush2.bf16.msra.mxu0 0
        %846 = vmatprep.subr.bf16.mxu0 0
        %847 = vmatpush2.bf16.msra.mxu0 0
        %848 = vmatprep.subr.bf16.mxu0 0
        %849 = vmatpush2.bf16.msra.mxu0 0
        %850 = vmatprep.mubr.bf16.mxu0 0
        %851 = vmatmul.mubr.bf16.gmra.mxu0 %v803
        %v852 = vpop.f32.mrf.mxu0
        %v853 = vadd.f32 0.0, %v852
        %v854 = vpop.f32.mrf.mxu0
        %v855 = vpop.f32.mrf.mxu0
        %v856 = vadd.f32 0.0, %v855
        %v857 = vpop.f32.mrf.mxu0
        %858 = vmatprep.mubr.bf16.mxu0 0
        %859 = vmatmul.mubr.bf16.gmra.mxu0 %v806
        %v860 = vpop.f32.mrf.mxu0
        %v861 = vadd.f32 0.0, %v860
        %v862 = vpop.f32.mrf.mxu0
        %v863 = vpop.f32.mrf.mxu0
        %v864 = vadd.f32 0.0, %v863
        %v865 = vpop.f32.mrf.mxu0
        %866 = vmatprep.mubr.bf16.mxu0 0
        %867 = vmatmul.mubr.bf16.gmra.mxu0 %v809
        %v868 = vpop.f32.mrf.mxu0
        %v869 = vadd.f32 0.0, %v868
        %v870 = vpop.f32.mrf.mxu0
        %v871 = vpop.f32.mrf.mxu0
        %v872 = vadd.f32 0.0, %v871
        %v873 = vpop.f32.mrf.mxu0
        %874 = vmatprep.mubr.bf16.mxu0 0
        %875 = vmatmul.mubr.bf16.gmra.mxu0 %v812
        %v876 = vpop.f32.mrf.mxu0
        %v877 = vadd.f32 0.0, %v876
        %v878 = vpop.f32.mrf.mxu0
        %v879 = vpop.f32.mrf.mxu0
        %v880 = vadd.f32 0.0, %v879
        %v881 = vpop.f32.mrf.mxu0
        %882 = vdwg.mxu0
        %v883 = vmul.f32 %v853, 0.35355338
        %v884 = vmul.f32 %v856, 0.35355338
        %v885 = vmul.f32 %v861, 0.35355338
        %v886 = vmul.f32 %v864, 0.35355338
        %v887 = vmul.f32 %v869, 0.35355338
        %v888 = vmul.f32 %v872, 0.35355338
        %v889 = vmul.f32 %v877, 0.35355338
        %v890 = vmul.f32 %v880, 0.35355338
        %v891 = vld [vmem:[#allocation3] sm:$0xff]
        %v892 = vld [vmem:[#allocation3 + $0x8] sm:$0xff]
        %v893 = vld [vmem:[#allocation3 + $0x10] sm:$0xff]
        %v894 = vld [vmem:[#allocation3 + $0x18] sm:$0xff]
        %v895 = vld [vmem:[#allocation3 + $0x20] sm:$0xff]
        %v896 = vld [vmem:[#allocation3 + $0x28] sm:$0xff]
        %v897 = vld [vmem:[#allocation3 + $0x30] sm:$0xff]
        %v898 = vld [vmem:[#allocation3 + $0x38] sm:$0xff]
        %v899 = vadd.f32 %v883, %v891
        %v900 = vadd.f32 %v884, %v892
        %v901 = vadd.f32 %v885, %v893
        %v902 = vadd.f32 %v886, %v894
        %v903 = vadd.f32 %v887, %v895
        %v904 = vadd.f32 %v888, %v896
        %v905 = vadd.f32 %v889, %v897
        %v906 = vadd.f32 %v890, %v898
        %vm907 = vcmask 523264
        %v908 = vsel %vm907, %v899, -inf
        %909 = vmax.xlane.f32.xlu0 %v908
        %v910 = vpop.xlane.xlu0 %909
        %v911 = vsel %vm907, %v900, -inf
        %912 = vmax.xlane.f32.xlu0 %v911
        %v913 = vpop.xlane.xlu0 %912
        %v914 = vsel %vm907, %v901, -inf
        %915 = vmax.xlane.f32.xlu0 %v914
        %v916 = vpop.xlane.xlu0 %915
        %v917 = vsel %vm907, %v902, -inf
        %918 = vmax.xlane.f32.xlu0 %v917
        %v919 = vpop.xlane.xlu0 %918
        %v920 = vsel %vm907, %v903, -inf
        %921 = vmax.xlane.f32.xlu0 %v920
        %v922 = vpop.xlane.xlu0 %921
        %v923 = vsel %vm907, %v904, -inf
        %924 = vmax.xlane.f32.xlu0 %v923
        %v925 = vpop.xlane.xlu0 %924
        %v926 = vsel %vm907, %v905, -inf
        %927 = vmax.xlane.f32.xlu0 %v926
        %v928 = vpop.xlane.xlu0 %927
        %v929 = vsel %vm907, %v906, -inf
        %930 = vmax.xlane.f32.xlu0 %v929
        %v931 = vpop.xlane.xlu0 %930
        %v932 = vsub.f32 %v899, %v910
        %v933 = vsub.f32 %v900, %v913
        %v934 = vsub.f32 %v901, %v916
        %v935 = vsub.f32 %v902, %v919
        %v936 = vsub.f32 %v903, %v922
        %v937 = vsub.f32 %v904, %v925
        %v938 = vsub.f32 %v905, %v928
        %v939 = vsub.f32 %v906, %v931
        %v940 = vmul.f32 %v932, 1.442695
        %v941 = vpow.pop %v940
        %v942 = vmul.f32 %v933, 1.442695
        %v943 = vpow.pop %v942
        %v944 = vmul.f32 %v934, 1.442695
        %v945 = vpow.pop %v944
        %v946 = vmul.f32 %v935, 1.442695
        %v947 = vpow.pop %v946
        %v948 = vmul.f32 %v936, 1.442695
        %v949 = vpow.pop %v948
        %v950 = vmul.f32 %v937, 1.442695
        %v951 = vpow.pop %v950
        %v952 = vmul.f32 %v938, 1.442695
        %v953 = vpow.pop %v952
        %v954 = vmul.f32 %v939, 1.442695
        %v955 = vpow.pop %v954
        %v956 = vsel %vm907, %v941, 0.0
        %957 = vadd.xlane.f32.xlu0 %v956
        %v958 = vpop.xlane.xlu0 %957
        %v959 = vsel %vm907, %v943, 0.0
        %960 = vadd.xlane.f32.xlu0 %v959
        %v961 = vpop.xlane.xlu0 %960
        %v962 = vsel %vm907, %v945, 0.0
        %963 = vadd.xlane.f32.xlu0 %v962
        %v964 = vpop.xlane.xlu0 %963
        %v965 = vsel %vm907, %v947, 0.0
        %966 = vadd.xlane.f32.xlu0 %v965
        %v967 = vpop.xlane.xlu0 %966
        %v968 = vsel %vm907, %v949, 0.0
        %969 = vadd.xlane.f32.xlu0 %v968
        %v970 = vpop.xlane.xlu0 %969
        %v971 = vsel %vm907, %v951, 0.0
        %972 = vadd.xlane.f32.xlu0 %v971
        %v973 = vpop.xlane.xlu0 %972
        %v974 = vsel %vm907, %v953, 0.0
        %975 = vadd.xlane.f32.xlu0 %v974
        %v976 = vpop.xlane.xlu0 %975
        %v977 = vsel %vm907, %v955, 0.0
        %978 = vadd.xlane.f32.xlu0 %v977
        %v979 = vpop.xlane.xlu0 %978
        %v980 = vrcp.pop %v958
        %v981 = vrcp.pop %v961
        %v982 = vrcp.pop %v964
        %v983 = vrcp.pop %v967
        %v984 = vrcp.pop %v970
        %v985 = vrcp.pop %v973
        %v986 = vrcp.pop %v976
        %v987 = vrcp.pop %v979
        %v988 = vmul.f32 %v941, %v980
        %v989 = vmul.f32 %v943, %v981
        %v990 = vmul.f32 %v945, %v982
        %v991 = vmul.f32 %v947, %v983
        %v992 = vmul.f32 %v949, %v984
        %v993 = vmul.f32 %v951, %v985
        %v994 = vmul.f32 %v953, %v986
        %v995 = vmul.f32 %v955, %v987
        %v996 = vpack.c.bf16 %v989, %v988
        %v997 = vpack.c.bf16 %v991, %v990
        %v998 = vpack.c.bf16 %v993, %v992
        %v999 = vpack.c.bf16 %v995, %v994
        %1004 = vrot.lane.b32.xlu0 %v732, 64
        %v1005 = vpop.permute.xlu0 %1004
        %1006 = vrot.lane.b32.xlu0 %v733, 64
        %v1007 = vpop.permute.xlu0 %1006
        %1008 = vrot.lane.b32.xlu0 %v734, 64
        %v1009 = vpop.permute.xlu0 %1008
        %1010 = vrot.lane.b32.xlu0 %v735, 64
        %v1011 = vpop.permute.xlu0 %1010
        %v1017 = vsel %vm907, %v996, 0
        %v1020 = vsel %vm907, %v997, 0
        %v1023 = vsel %vm907, %v998, 0
        %v1026 = vsel %vm907, %v999, 0
        %1028 = vmatprep.subr.bf16.mxu0 0
        %1029 = vmatpush1.bf16.msra.mxu0 0
        %1030 = vmatprep.subr.bf16.mxu0 0
        %1031 = vmatpush1.bf16.msra.mxu0 0
        %1032 = vmatprep.subr.bf16.mxu0 0
        %1033 = vmatpush1.bf16.msra.mxu0 0
        %1034 = vmatprep.subr.bf16.mxu0 0
        %1035 = vmatpush1.bf16.msra.mxu0 0
        %1036 = vmatprep.subr.bf16.mxu0 0
        %1037 = vmatpush1.bf16.msra.mxu0 %v1011
        %1038 = vmatprep.subr.bf16.mxu0 0
        %1039 = vmatpush1.bf16.msra.mxu0 %v1009
        %1040 = vmatprep.subr.bf16.mxu0 0
        %1041 = vmatpush1.bf16.msra.mxu0 %v1007
        %1042 = vmatprep.subr.bf16.mxu0 0
        %1043 = vmatpush1.bf16.msra.mxu0 %v1005
        %1044 = vmatprep.subr.bf16.mxu0 0
        %1045 = vmatpush2.bf16.msra.mxu0 0
        %1046 = vmatprep.subr.bf16.mxu0 0
        %1047 = vmatpush2.bf16.msra.mxu0 0
        %1048 = vmatprep.subr.bf16.mxu0 0
        %1049 = vmatpush2.bf16.msra.mxu0 0
        %1050 = vmatprep.subr.bf16.mxu0 0
        %1051 = vmatpush2.bf16.msra.mxu0 0
        %1052 = vmatprep.subr.bf16.mxu0 0
        %1053 = vmatpush2.bf16.msra.mxu0 0
        %1054 = vmatprep.subr.bf16.mxu0 0
        %1055 = vmatpush2.bf16.msra.mxu0 0
        %1056 = vmatprep.subr.bf16.mxu0 0
        %1057 = vmatpush2.bf16.msra.mxu0 0
        %1058 = vmatprep.subr.bf16.mxu0 0
        %1059 = vmatpush2.bf16.msra.mxu0 0
        %1060 = vmatprep.mubr.bf16.mxu0 0
        %1061 = vmatmul.mubr.bf16.gmra.mxu0 %v1017
        %v1062 = vpop.f32.mrf.mxu0
        %v1063 = vadd.f32 0.0, %v1062
        %v1064 = vpop.f32.mrf.mxu0
        %v1065 = vpop.f32.mrf.mxu0
        %v1066 = vadd.f32 0.0, %v1065
        %v1067 = vpop.f32.mrf.mxu0
        %1068 = vmatprep.mubr.bf16.mxu0 0
        %1069 = vmatmul.mubr.bf16.gmra.mxu0 %v1020
        %v1070 = vpop.f32.mrf.mxu0
        %v1071 = vadd.f32 0.0, %v1070
        %v1072 = vpop.f32.mrf.mxu0
        %v1073 = vpop.f32.mrf.mxu0
        %v1074 = vadd.f32 0.0, %v1073
        %v1075 = vpop.f32.mrf.mxu0
        %1076 = vmatprep.mubr.bf16.mxu0 0
        %1077 = vmatmul.mubr.bf16.gmra.mxu0 %v1023
        %v1078 = vpop.f32.mrf.mxu0
        %v1079 = vadd.f32 0.0, %v1078
        %v1080 = vpop.f32.mrf.mxu0
        %v1081 = vpop.f32.mrf.mxu0
        %v1082 = vadd.f32 0.0, %v1081
        %v1083 = vpop.f32.mrf.mxu0
        %1084 = vmatprep.mubr.bf16.mxu0 0
        %1085 = vmatmul.mubr.bf16.gmra.mxu0 %v1026
        %v1086 = vpop.f32.mrf.mxu0
        %v1087 = vadd.f32 0.0, %v1086
        %v1088 = vpop.f32.mrf.mxu0
        %v1089 = vpop.f32.mrf.mxu0
        %v1090 = vadd.f32 0.0, %v1089
        %v1091 = vpop.f32.mrf.mxu0
        %1092 = vdwg.mxu0
        %1093 = vst.msk [vmem:[#allocation2] sm:$0xff] %vm801, %v1063
        %1094 = vst.msk [vmem:[#allocation2 + $0x8] sm:$0xff] %vm801, %v1066
        %1095 = vst.msk [vmem:[#allocation2 + $0x10] sm:$0xff] %vm801, %v1071
        %1096 = vst.msk [vmem:[#allocation2 + $0x18] sm:$0xff] %vm801, %v1074
        %1097 = vst.msk [vmem:[#allocation2 + $0x20] sm:$0xff] %vm801, %v1079
        %1098 = vst.msk [vmem:[#allocation2 + $0x28] sm:$0xff] %vm801, %v1082
        %1099 = vst.msk [vmem:[#allocation2 + $0x30] sm:$0xff] %vm801, %v1087
        %1100 = vst.msk [vmem:[#allocation2 + $0x38] sm:$0xff] %vm801, %v1090
        %1101 = vrot.lane.b32.xlu0 %v702, 88
        %v1102 = vpop.permute.xlu0 %1101
        %1103 = vrot.lane.b32.xlu0 %v705, 88
        %v1104 = vpop.permute.xlu0 %1103
        %1105 = vrot.lane.b32.xlu0 %v710, 88
        %v1106 = vpop.permute.xlu0 %1105
        %1107 = vrot.lane.b32.xlu0 %v713, 88
        %v1108 = vpop.permute.xlu0 %1107
        %1109 = vrot.lane.b32.xlu0 %v718, 88
        %v1110 = vpop.permute.xlu0 %1109
        %1111 = vrot.lane.b32.xlu0 %v721, 88
        %v1112 = vpop.permute.xlu0 %1111
        %1113 = vrot.lane.b32.xlu0 %v726, 88
        %v1114 = vpop.permute.xlu0 %1113
        %1115 = vrot.lane.b32.xlu0 %v729, 88
        %v1116 = vpop.permute.xlu0 %1115
        %1125 = vxpose.xlu0.b32.start [1/16] %v1102, 128
        %1126 = vxpose.xlu0.b32.cont [2/16] %v1104, 128
        %1127 = vxpose.xlu0.b32.cont [3/16] %v1106, 128
        %1128 = vxpose.xlu0.b32.cont [4/16] %v1108, 128
        %1129 = vxpose.xlu0.b32.cont [5/16] %v1110, 128
        %1130 = vxpose.xlu0.b32.cont [6/16] %v1112, 128
        %1131 = vxpose.xlu0.b32.cont [7/16] %v1114, 128
        %1132 = vxpose.xlu0.b32.cont [8/16] %v1116, 128
        %1133 = vxpose.xlu0.b32.cont [9/16] 0.0, 128
        %1134 = vxpose.xlu0.b32.cont [10/16] 0.0, 128
        %1135 = vxpose.xlu0.b32.cont [11/16] 0.0, 128
        %1136 = vxpose.xlu0.b32.cont [12/16] 0.0, 128
        %1137 = vxpose.xlu0.b32.cont [13/16] 0.0, 128
        %1138 = vxpose.xlu0.b32.cont [14/16] 0.0, 128
        %1139 = vxpose.xlu0.b32.cont [15/16] 0.0, 128
        %1140 = vxpose.xlu0.b32.end [16/16] 0.0, 128
        %v1141 = vpop.trf.xlu0
        %v1142 = vpop.trf.xlu0
        %v1143 = vpop.trf.xlu0
        %v1144 = vpop.trf.xlu0
        %v1145 = vpop.trf.xlu0
        %v1146 = vpop.trf.xlu0
        %v1147 = vpop.trf.xlu0
        %v1148 = vpop.trf.xlu0
        %v1149 = vpop.trf.xlu0
        %v1150 = vpop.trf.xlu0
        %v1151 = vpop.trf.xlu0
        %v1152 = vpop.trf.xlu0
        %v1153 = vpop.trf.xlu0
        %v1154 = vpop.trf.xlu0
        %v1155 = vpop.trf.xlu0
        %v1156 = vpop.trf.xlu0
        %v1157 = vpack.c.bf16 %v1141, %v1141
        %1158 = vrot.lane.b32.xlu0 %v732, 120
        %v1159 = vpop.permute.xlu0 %1158
        %1160 = vrot.lane.b32.xlu0 %v733, 120
        %v1161 = vpop.permute.xlu0 %1160
        %1162 = vrot.lane.b32.xlu0 %v734, 120
        %v1163 = vpop.permute.xlu0 %1162
        %1164 = vrot.lane.b32.xlu0 %v735, 120
        %v1165 = vpop.permute.xlu0 %1164
        %v1167 = vsel %vm801, %v1159, 0
        %v1170 = vsel %vm801, %v1161, 0
        %v1173 = vsel %vm801, %v1163, 0
        %v1176 = vsel %vm801, %v1165, 0
        %v1179 = vsel %vm814, %v1157, 0
        %1181 = vmatprep.subr.bf16.mxu0 0
        %1182 = vmatpush1.bf16.msra.mxu0 0
        %1183 = vmatprep.subr.bf16.mxu0 0
        %1184 = vmatpush1.bf16.msra.mxu0 0
        %1185 = vmatprep.subr.bf16.mxu0 0
        %1186 = vmatpush1.bf16.msra.mxu0 0
        %1187 = vmatprep.subr.bf16.mxu0 0
        %1188 = vmatpush1.bf16.msra.mxu0 0
        %1189 = vmatprep.subr.bf16.mxu0 0
        %1190 = vmatpush1.bf16.msra.mxu0 0
        %1191 = vmatprep.subr.bf16.mxu0 0
        %1192 = vmatpush1.bf16.msra.mxu0 0
        %1193 = vmatprep.subr.bf16.mxu0 0
        %1194 = vmatpush1.bf16.msra.mxu0 0
        %1195 = vmatprep.subr.bf16.mxu0 0
        %1196 = vmatpush1.bf16.msra.mxu0 %v1179
        %1197 = vmatprep.subr.bf16.mxu0 0
        %1198 = vmatpush2.bf16.msra.mxu0 0
        %1199 = vmatprep.subr.bf16.mxu0 0
        %1200 = vmatpush2.bf16.msra.mxu0 0
        %1201 = vmatprep.subr.bf16.mxu0 0
        %1202 = vmatpush2.bf16.msra.mxu0 0
        %1203 = vmatprep.subr.bf16.mxu0 0
        %1204 = vmatpush2.bf16.msra.mxu0 0
        %1205 = vmatprep.subr.bf16.mxu0 0
        %1206 = vmatpush2.bf16.msra.mxu0 0
        %1207 = vmatprep.subr.bf16.mxu0 0
        %1208 = vmatpush2.bf16.msra.mxu0 0
        %1209 = vmatprep.subr.bf16.mxu0 0
        %1210 = vmatpush2.bf16.msra.mxu0 0
        %1211 = vmatprep.subr.bf16.mxu0 0
        %1212 = vmatpush2.bf16.msra.mxu0 0
        %1213 = vmatprep.mubr.bf16.mxu0 0
        %1214 = vmatmul.mubr.bf16.gmra.mxu0 %v1167
        %v1215 = vpop.f32.mrf.mxu0
        %v1216 = vadd.f32 0.0, %v1215
        %v1217 = vpop.f32.mrf.mxu0
        %v1218 = vpop.f32.mrf.mxu0
        %v1219 = vadd.f32 0.0, %v1218
        %v1220 = vpop.f32.mrf.mxu0
        %1221 = vmatprep.mubr.bf16.mxu0 0
        %1222 = vmatmul.mubr.bf16.gmra.mxu0 %v1170
        %v1223 = vpop.f32.mrf.mxu0
        %v1224 = vadd.f32 0.0, %v1223
        %v1225 = vpop.f32.mrf.mxu0
        %v1226 = vpop.f32.mrf.mxu0
        %v1227 = vadd.f32 0.0, %v1226
        %v1228 = vpop.f32.mrf.mxu0
        %1229 = vmatprep.mubr.bf16.mxu0 0
        %1230 = vmatmul.mubr.bf16.gmra.mxu0 %v1173
        %v1231 = vpop.f32.mrf.mxu0
        %v1232 = vadd.f32 0.0, %v1231
        %v1233 = vpop.f32.mrf.mxu0
        %v1234 = vpop.f32.mrf.mxu0
        %v1235 = vadd.f32 0.0, %v1234
        %v1236 = vpop.f32.mrf.mxu0
        %1237 = vmatprep.mubr.bf16.mxu0 0
        %1238 = vmatmul.mubr.bf16.gmra.mxu0 %v1176
        %v1239 = vpop.f32.mrf.mxu0
        %v1240 = vadd.f32 0.0, %v1239
        %v1241 = vpop.f32.mrf.mxu0
        %v1242 = vpop.f32.mrf.mxu0
        %v1243 = vadd.f32 0.0, %v1242
        %v1244 = vpop.f32.mrf.mxu0
        %1245 = vdwg.mxu0
        %v1246 = vmul.f32 %v1216, 0.35355338
        %v1247 = vmul.f32 %v1219, 0.35355338
        %v1248 = vmul.f32 %v1224, 0.35355338
        %v1249 = vmul.f32 %v1227, 0.35355338
        %v1250 = vmul.f32 %v1232, 0.35355338
        %v1251 = vmul.f32 %v1235, 0.35355338
        %v1252 = vmul.f32 %v1240, 0.35355338
        %v1253 = vmul.f32 %v1243, 0.35355338
        %s1254 = scalar_lea.vmem [#allocation3], 64
        %v1255 = vld [vmem:[%s1254] sm:$0xff]
        %v1256 = vld [vmem:[%s1254 + $0x8] sm:$0xff]
        %v1257 = vld [vmem:[%s1254 + $0x10] sm:$0xff]
        %v1258 = vld [vmem:[%s1254 + $0x18] sm:$0xff]
        %v1259 = vld [vmem:[%s1254 + $0x20] sm:$0xff]
        %v1260 = vld [vmem:[%s1254 + $0x28] sm:$0xff]
        %v1261 = vld [vmem:[%s1254 + $0x30] sm:$0xff]
        %v1262 = vld [vmem:[%s1254 + $0x38] sm:$0xff]
        %v1263 = vadd.f32 %v1246, %v1255
        %v1264 = vadd.f32 %v1247, %v1256
        %v1265 = vadd.f32 %v1248, %v1257
        %v1266 = vadd.f32 %v1249, %v1258
        %v1267 = vadd.f32 %v1250, %v1259
        %v1268 = vadd.f32 %v1251, %v1260
        %v1269 = vadd.f32 %v1252, %v1261
        %v1270 = vadd.f32 %v1253, %v1262
        %v1271 = vsel %vm907, %v1263, -inf
        %1272 = vmax.xlane.f32.xlu0 %v1271
        %v1273 = vpop.xlane.xlu0 %1272
        %v1274 = vsel %vm907, %v1264, -inf
        %1275 = vmax.xlane.f32.xlu0 %v1274
        %v1276 = vpop.xlane.xlu0 %1275
        %v1277 = vsel %vm907, %v1265, -inf
        %1278 = vmax.xlane.f32.xlu0 %v1277
        %v1279 = vpop.xlane.xlu0 %1278
        %v1280 = vsel %vm907, %v1266, -inf
        %1281 = vmax.xlane.f32.xlu0 %v1280
        %v1282 = vpop.xlane.xlu0 %1281
        %v1283 = vsel %vm907, %v1267, -inf
        %1284 = vmax.xlane.f32.xlu0 %v1283
        %v1285 = vpop.xlane.xlu0 %1284
        %v1286 = vsel %vm907, %v1268, -inf
        %1287 = vmax.xlane.f32.xlu0 %v1286
        %v1288 = vpop.xlane.xlu0 %1287
        %v1289 = vsel %vm907, %v1269, -inf
        %1290 = vmax.xlane.f32.xlu0 %v1289
        %v1291 = vpop.xlane.xlu0 %1290
        %v1292 = vsel %vm907, %v1270, -inf
        %1293 = vmax.xlane.f32.xlu0 %v1292
        %v1294 = vpop.xlane.xlu0 %1293
        %v1295 = vsub.f32 %v1263, %v1273
        %v1296 = vsub.f32 %v1264, %v1276
        %v1297 = vsub.f32 %v1265, %v1279
        %v1298 = vsub.f32 %v1266, %v1282
        %v1299 = vsub.f32 %v1267, %v1285
        %v1300 = vsub.f32 %v1268, %v1288
        %v1301 = vsub.f32 %v1269, %v1291
        %v1302 = vsub.f32 %v1270, %v1294
        %v1303 = vmul.f32 %v1295, 1.442695
        %v1304 = vpow.pop %v1303
        %v1305 = vmul.f32 %v1296, 1.442695
        %v1306 = vpow.pop %v1305
        %v1307 = vmul.f32 %v1297, 1.442695
        %v1308 = vpow.pop %v1307
        %v1309 = vmul.f32 %v1298, 1.442695
        %v1310 = vpow.pop %v1309
        %v1311 = vmul.f32 %v1299, 1.442695
        %v1312 = vpow.pop %v1311
        %v1313 = vmul.f32 %v1300, 1.442695
        %v1314 = vpow.pop %v1313
        %v1315 = vmul.f32 %v1301, 1.442695
        %v1316 = vpow.pop %v1315
        %v1317 = vmul.f32 %v1302, 1.442695
        %v1318 = vpow.pop %v1317
        %v1319 = vsel %vm907, %v1304, 0.0
        %1320 = vadd.xlane.f32.xlu0 %v1319
        %v1321 = vpop.xlane.xlu0 %1320
        %v1322 = vsel %vm907, %v1306, 0.0
        %1323 = vadd.xlane.f32.xlu0 %v1322
        %v1324 = vpop.xlane.xlu0 %1323
        %v1325 = vsel %vm907, %v1308, 0.0
        %1326 = vadd.xlane.f32.xlu0 %v1325
        %v1327 = vpop.xlane.xlu0 %1326
        %v1328 = vsel %vm907, %v1310, 0.0
        %1329 = vadd.xlane.f32.xlu0 %v1328
        %v1330 = vpop.xlane.xlu0 %1329
        %v1331 = vsel %vm907, %v1312, 0.0
        %1332 = vadd.xlane.f32.xlu0 %v1331
        %v1333 = vpop.xlane.xlu0 %1332
        %v1334 = vsel %vm907, %v1314, 0.0
        %1335 = vadd.xlane.f32.xlu0 %v1334
        %v1336 = vpop.xlane.xlu0 %1335
        %v1337 = vsel %vm907, %v1316, 0.0
        %1338 = vadd.xlane.f32.xlu0 %v1337
        %v1339 = vpop.xlane.xlu0 %1338
        %v1340 = vsel %vm907, %v1318, 0.0
        %1341 = vadd.xlane.f32.xlu0 %v1340
        %v1342 = vpop.xlane.xlu0 %1341
        %v1343 = vrcp.pop %v1321
        %v1344 = vrcp.pop %v1324
        %v1345 = vrcp.pop %v1327
        %v1346 = vrcp.pop %v1330
        %v1347 = vrcp.pop %v1333
        %v1348 = vrcp.pop %v1336
        %v1349 = vrcp.pop %v1339
        %v1350 = vrcp.pop %v1342
        %v1351 = vmul.f32 %v1304, %v1343
        %v1352 = vmul.f32 %v1306, %v1344
        %v1353 = vmul.f32 %v1308, %v1345
        %v1354 = vmul.f32 %v1310, %v1346
        %v1355 = vmul.f32 %v1312, %v1347
        %v1356 = vmul.f32 %v1314, %v1348
        %v1357 = vmul.f32 %v1316, %v1349
        %v1358 = vmul.f32 %v1318, %v1350
        %v1359 = vpack.c.bf16 %v1352, %v1351
        %v1360 = vpack.c.bf16 %v1354, %v1353
        %v1361 = vpack.c.bf16 %v1356, %v1355
        %v1362 = vpack.c.bf16 %v1358, %v1357
        %1363 = vrot.lane.b32.xlu0 %v732, 56
        %v1364 = vpop.permute.xlu0 %1363
        %1365 = vrot.lane.b32.xlu0 %v733, 56
        %v1366 = vpop.permute.xlu0 %1365
        %1367 = vrot.lane.b32.xlu0 %v734, 56
        %v1368 = vpop.permute.xlu0 %1367
        %1369 = vrot.lane.b32.xlu0 %v735, 56
        %v1370 = vpop.permute.xlu0 %1369
        %v1376 = vsel %vm907, %v1359, 0
        %v1379 = vsel %vm907, %v1360, 0
        %v1382 = vsel %vm907, %v1361, 0
        %v1385 = vsel %vm907, %v1362, 0
        %1387 = vmatprep.subr.bf16.mxu0 0
        %1388 = vmatpush1.bf16.msra.mxu0 0
        %1389 = vmatprep.subr.bf16.mxu0 0
        %1390 = vmatpush1.bf16.msra.mxu0 0
        %1391 = vmatprep.subr.bf16.mxu0 0
        %1392 = vmatpush1.bf16.msra.mxu0 0
        %1393 = vmatprep.subr.bf16.mxu0 0
        %1394 = vmatpush1.bf16.msra.mxu0 0
        %1395 = vmatprep.subr.bf16.mxu0 0
        %1396 = vmatpush1.bf16.msra.mxu0 %v1370
        %1397 = vmatprep.subr.bf16.mxu0 0
        %1398 = vmatpush1.bf16.msra.mxu0 %v1368
        %1399 = vmatprep.subr.bf16.mxu0 0
        %1400 = vmatpush1.bf16.msra.mxu0 %v1366
        %1401 = vmatprep.subr.bf16.mxu0 0
        %1402 = vmatpush1.bf16.msra.mxu0 %v1364
        %1403 = vmatprep.subr.bf16.mxu0 0
        %1404 = vmatpush2.bf16.msra.mxu0 0
        %1405 = vmatprep.subr.bf16.mxu0 0
        %1406 = vmatpush2.bf16.msra.mxu0 0
        %1407 = vmatprep.subr.bf16.mxu0 0
        %1408 = vmatpush2.bf16.msra.mxu0 0
        %1409 = vmatprep.subr.bf16.mxu0 0
        %1410 = vmatpush2.bf16.msra.mxu0 0
        %1411 = vmatprep.subr.bf16.mxu0 0
        %1412 = vmatpush2.bf16.msra.mxu0 0
        %1413 = vmatprep.subr.bf16.mxu0 0
        %1414 = vmatpush2.bf16.msra.mxu0 0
        %1415 = vmatprep.subr.bf16.mxu0 0
        %1416 = vmatpush2.bf16.msra.mxu0 0
        %1417 = vmatprep.subr.bf16.mxu0 0
        %1418 = vmatpush2.bf16.msra.mxu0 0
        %1419 = vmatprep.mubr.bf16.mxu0 0
        %1420 = vmatmul.mubr.bf16.gmra.mxu0 %v1376
        %v1421 = vpop.f32.mrf.mxu0
        %v1422 = vadd.f32 0.0, %v1421
        %v1423 = vpop.f32.mrf.mxu0
        %v1424 = vpop.f32.mrf.mxu0
        %v1425 = vadd.f32 0.0, %v1424
        %v1426 = vpop.f32.mrf.mxu0
        %1427 = vmatprep.mubr.bf16.mxu0 0
        %1428 = vmatmul.mubr.bf16.gmra.mxu0 %v1379
        %v1429 = vpop.f32.mrf.mxu0
        %v1430 = vadd.f32 0.0, %v1429
        %v1431 = vpop.f32.mrf.mxu0
        %v1432 = vpop.f32.mrf.mxu0
        %v1433 = vadd.f32 0.0, %v1432
        %v1434 = vpop.f32.mrf.mxu0
        %1435 = vmatprep.mubr.bf16.mxu0 0
        %1436 = vmatmul.mubr.bf16.gmra.mxu0 %v1382
        %v1437 = vpop.f32.mrf.mxu0
        %v1438 = vadd.f32 0.0, %v1437
        %v1439 = vpop.f32.mrf.mxu0
        %v1440 = vpop.f32.mrf.mxu0
        %v1441 = vadd.f32 0.0, %v1440
        %v1442 = vpop.f32.mrf.mxu0
        %1443 = vmatprep.mubr.bf16.mxu0 0
        %1444 = vmatmul.mubr.bf16.gmra.mxu0 %v1385
        %v1445 = vpop.f32.mrf.mxu0
        %v1446 = vadd.f32 0.0, %v1445
        %v1447 = vpop.f32.mrf.mxu0
        %v1448 = vpop.f32.mrf.mxu0
        %v1449 = vadd.f32 0.0, %v1448
        %v1450 = vpop.f32.mrf.mxu0
        %1451 = vdwg.mxu0
        %1460 = vrot.lane.b32.xlu0 %v1422, 8
        %v1461 = vpop.permute.xlu0 %1460
        %1462 = vrot.lane.b32.xlu0 %v1425, 8
        %v1463 = vpop.permute.xlu0 %1462
        %1464 = vrot.lane.b32.xlu0 %v1430, 8
        %v1465 = vpop.permute.xlu0 %1464
        %1466 = vrot.lane.b32.xlu0 %v1433, 8
        %v1467 = vpop.permute.xlu0 %1466
        %1468 = vrot.lane.b32.xlu0 %v1438, 8
        %v1469 = vpop.permute.xlu0 %1468
        %1470 = vrot.lane.b32.xlu0 %v1441, 8
        %v1471 = vpop.permute.xlu0 %1470
        %1472 = vrot.lane.b32.xlu0 %v1446, 8
        %v1473 = vpop.permute.xlu0 %1472
        %1474 = vrot.lane.b32.xlu0 %v1449, 8
        %v1475 = vpop.permute.xlu0 %1474
        %vm1484 = vcmask 130112
        %1485 = vst.msk [vmem:[#allocation2] sm:$0xff] %vm1484, %v1461
        %1486 = vst.msk [vmem:[#allocation2 + $0x8] sm:$0xff] %vm1484, %v1463
        %1487 = vst.msk [vmem:[#allocation2 + $0x10] sm:$0xff] %vm1484, %v1465
        %1488 = vst.msk [vmem:[#allocation2 + $0x18] sm:$0xff] %vm1484, %v1467
        %1489 = vst.msk [vmem:[#allocation2 + $0x20] sm:$0xff] %vm1484, %v1469
        %1490 = vst.msk [vmem:[#allocation2 + $0x28] sm:$0xff] %vm1484, %v1471
        %1491 = vst.msk [vmem:[#allocation2 + $0x30] sm:$0xff] %vm1484, %v1473
        %1492 = vst.msk [vmem:[#allocation2 + $0x38] sm:$0xff] %vm1484, %v1475
        %1493 = vrot.lane.b32.xlu0 %v702, 80
        %v1494 = vpop.permute.xlu0 %1493
        %1495 = vrot.lane.b32.xlu0 %v705, 80
        %v1496 = vpop.permute.xlu0 %1495
        %1497 = vrot.lane.b32.xlu0 %v710, 80
        %v1498 = vpop.permute.xlu0 %1497
        %1499 = vrot.lane.b32.xlu0 %v713, 80
        %v1500 = vpop.permute.xlu0 %1499
        %1501 = vrot.lane.b32.xlu0 %v718, 80
        %v1502 = vpop.permute.xlu0 %1501
        %1503 = vrot.lane.b32.xlu0 %v721, 80
        %v1504 = vpop.permute.xlu0 %1503
        %1505 = vrot.lane.b32.xlu0 %v726, 80
        %v1506 = vpop.permute.xlu0 %1505
        %1507 = vrot.lane.b32.xlu0 %v729, 80
        %v1508 = vpop.permute.xlu0 %1507
        %1517 = vxpose.xlu0.b32.start [1/16] %v1494, 128
        %1518 = vxpose.xlu0.b32.cont [2/16] %v1496, 128
        %1519 = vxpose.xlu0.b32.cont [3/16] %v1498, 128
        %1520 = vxpose.xlu0.b32.cont [4/16] %v1500, 128
        %1521 = vxpose.xlu0.b32.cont [5/16] %v1502, 128
        %1522 = vxpose.xlu0.b32.cont [6/16] %v1504, 128
        %1523 = vxpose.xlu0.b32.cont [7/16] %v1506, 128
        %1524 = vxpose.xlu0.b32.cont [8/16] %v1508, 128
        %1525 = vxpose.xlu0.b32.cont [9/16] 0.0, 128
        %1526 = vxpose.xlu0.b32.cont [10/16] 0.0, 128
        %1527 = vxpose.xlu0.b32.cont [11/16] 0.0, 128
        %1528 = vxpose.xlu0.b32.cont [12/16] 0.0, 128
        %1529 = vxpose.xlu0.b32.cont [13/16] 0.0, 128
        %1530 = vxpose.xlu0.b32.cont [14/16] 0.0, 128
        %1531 = vxpose.xlu0.b32.cont [15/16] 0.0, 128
        %1532 = vxpose.xlu0.b32.end [16/16] 0.0, 128
        %v1533 = vpop.trf.xlu0
        %v1534 = vpop.trf.xlu0
        %v1535 = vpop.trf.xlu0
        %v1536 = vpop.trf.xlu0
        %v1537 = vpop.trf.xlu0
        %v1538 = vpop.trf.xlu0
        %v1539 = vpop.trf.xlu0
        %v1540 = vpop.trf.xlu0
        %v1541 = vpop.trf.xlu0
        %v1542 = vpop.trf.xlu0
        %v1543 = vpop.trf.xlu0
        %v1544 = vpop.trf.xlu0
        %v1545 = vpop.trf.xlu0
        %v1546 = vpop.trf.xlu0
        %v1547 = vpop.trf.xlu0
        %v1548 = vpop.trf.xlu0
        %v1549 = vpack.c.bf16 %v1533, %v1533
        %1550 = vrot.lane.b32.xlu0 %v732, 112
        %v1551 = vpop.permute.xlu0 %1550
        %1552 = vrot.lane.b32.xlu0 %v733, 112
        %v1553 = vpop.permute.xlu0 %1552
        %1554 = vrot.lane.b32.xlu0 %v734, 112
        %v1555 = vpop.permute.xlu0 %1554
        %1556 = vrot.lane.b32.xlu0 %v735, 112
        %v1557 = vpop.permute.xlu0 %1556
        %v1559 = vsel %vm801, %v1551, 0
        %v1562 = vsel %vm801, %v1553, 0
        %v1565 = vsel %vm801, %v1555, 0
        %v1568 = vsel %vm801, %v1557, 0
        %v1571 = vsel %vm814, %v1549, 0
        %1573 = vmatprep.subr.bf16.mxu0 0
        %1574 = vmatpush1.bf16.msra.mxu0 0
        %1575 = vmatprep.subr.bf16.mxu0 0
        %1576 = vmatpush1.bf16.msra.mxu0 0
        %1577 = vmatprep.subr.bf16.mxu0 0
        %1578 = vmatpush1.bf16.msra.mxu0 0
        %1579 = vmatprep.subr.bf16.mxu0 0
        %1580 = vmatpush1.bf16.msra.mxu0 0
        %1581 = vmatprep.subr.bf16.mxu0 0
        %1582 = vmatpush1.bf16.msra.mxu0 0
        %1583 = vmatprep.subr.bf16.mxu0 0
        %1584 = vmatpush1.bf16.msra.mxu0 0
        %1585 = vmatprep.subr.bf16.mxu0 0
        %1586 = vmatpush1.bf16.msra.mxu0 0
        %1587 = vmatprep.subr.bf16.mxu0 0
        %1588 = vmatpush1.bf16.msra.mxu0 %v1571
        %1589 = vmatprep.subr.bf16.mxu0 0
        %1590 = vmatpush2.bf16.msra.mxu0 0
        %1591 = vmatprep.subr.bf16.mxu0 0
        %1592 = vmatpush2.bf16.msra.mxu0 0
        %1593 = vmatprep.subr.bf16.mxu0 0
        %1594 = vmatpush2.bf16.msra.mxu0 0
        %1595 = vmatprep.subr.bf16.mxu0 0
        %1596 = vmatpush2.bf16.msra.mxu0 0
        %1597 = vmatprep.subr.bf16.mxu0 0
        %1598 = vmatpush2.bf16.msra.mxu0 0
        %1599 = vmatprep.subr.bf16.mxu0 0
        %1600 = vmatpush2.bf16.msra.mxu0 0
        %1601 = vmatprep.subr.bf16.mxu0 0
        %1602 = vmatpush2.bf16.msra.mxu0 0
        %1603 = vmatprep.subr.bf16.mxu0 0
        %1604 = vmatpush2.bf16.msra.mxu0 0
        %1605 = vmatprep.mubr.bf16.mxu0 0
        %1606 = vmatmul.mubr.bf16.gmra.mxu0 %v1559
        %v1607 = vpop.f32.mrf.mxu0
        %v1608 = vadd.f32 0.0, %v1607
        %v1609 = vpop.f32.mrf.mxu0
        %v1610 = vpop.f32.mrf.mxu0
        %v1611 = vadd.f32 0.0, %v1610
        %v1612 = vpop.f32.mrf.mxu0
        %1613 = vmatprep.mubr.bf16.mxu0 0
        %1614 = vmatmul.mubr.bf16.gmra.mxu0 %v1562
        %v1615 = vpop.f32.mrf.mxu0
        %v1616 = vadd.f32 0.0, %v1615
        %v1617 = vpop.f32.mrf.mxu0
        %v1618 = vpop.f32.mrf.mxu0
        %v1619 = vadd.f32 0.0, %v1618
        %v1620 = vpop.f32.mrf.mxu0
        %1621 = vmatprep.mubr.bf16.mxu0 0
        %1622 = vmatmul.mubr.bf16.gmra.mxu0 %v1565
        %v1623 = vpop.f32.mrf.mxu0
        %v1624 = vadd.f32 0.0, %v1623
        %v1625 = vpop.f32.mrf.mxu0
        %v1626 = vpop.f32.mrf.mxu0
        %v1627 = vadd.f32 0.0, %v1626
        %v1628 = vpop.f32.mrf.mxu0
        %1629 = vmatprep.mubr.bf16.mxu0 0
        %1630 = vmatmul.mubr.bf16.gmra.mxu0 %v1568
        %v1631 = vpop.f32.mrf.mxu0
        %v1632 = vadd.f32 0.0, %v1631
        %v1633 = vpop.f32.mrf.mxu0
        %v1634 = vpop.f32.mrf.mxu0
        %v1635 = vadd.f32 0.0, %v1634
        %v1636 = vpop.f32.mrf.mxu0
        %1637 = vdwg.mxu0
        %v1638 = vmul.f32 %v1608, 0.35355338
        %v1639 = vmul.f32 %v1611, 0.35355338
        %v1640 = vmul.f32 %v1616, 0.35355338
        %v1641 = vmul.f32 %v1619, 0.35355338
        %v1642 = vmul.f32 %v1624, 0.35355338
        %v1643 = vmul.f32 %v1627, 0.35355338
        %v1644 = vmul.f32 %v1632, 0.35355338
        %v1645 = vmul.f32 %v1635, 0.35355338
        %s1646 = scalar_lea.vmem [#allocation3], 128
        %v1647 = vld [vmem:[%s1646] sm:$0xff]
        %v1648 = vld [vmem:[%s1646 + $0x8] sm:$0xff]
        %v1649 = vld [vmem:[%s1646 + $0x10] sm:$0xff]
        %v1650 = vld [vmem:[%s1646 + $0x18] sm:$0xff]
        %v1651 = vld [vmem:[%s1646 + $0x20] sm:$0xff]
        %v1652 = vld [vmem:[%s1646 + $0x28] sm:$0xff]
        %v1653 = vld [vmem:[%s1646 + $0x30] sm:$0xff]
        %v1654 = vld [vmem:[%s1646 + $0x38] sm:$0xff]
        %v1655 = vadd.f32 %v1638, %v1647
        %v1656 = vadd.f32 %v1639, %v1648
        %v1657 = vadd.f32 %v1640, %v1649
        %v1658 = vadd.f32 %v1641, %v1650
        %v1659 = vadd.f32 %v1642, %v1651
        %v1660 = vadd.f32 %v1643, %v1652
        %v1661 = vadd.f32 %v1644, %v1653
        %v1662 = vadd.f32 %v1645, %v1654
        %v1663 = vsel %vm907, %v1655, -inf
        %1664 = vmax.xlane.f32.xlu0 %v1663
        %v1665 = vpop.xlane.xlu0 %1664
        %v1666 = vsel %vm907, %v1656, -inf
        %1667 = vmax.xlane.f32.xlu0 %v1666
        %v1668 = vpop.xlane.xlu0 %1667
        %v1669 = vsel %vm907, %v1657, -inf
        %1670 = vmax.xlane.f32.xlu0 %v1669
        %v1671 = vpop.xlane.xlu0 %1670
        %v1672 = vsel %vm907, %v1658, -inf
        %1673 = vmax.xlane.f32.xlu0 %v1672
        %v1674 = vpop.xlane.xlu0 %1673
        %v1675 = vsel %vm907, %v1659, -inf
        %1676 = vmax.xlane.f32.xlu0 %v1675
        %v1677 = vpop.xlane.xlu0 %1676
        %v1678 = vsel %vm907, %v1660, -inf
        %1679 = vmax.xlane.f32.xlu0 %v1678
        %v1680 = vpop.xlane.xlu0 %1679
        %v1681 = vsel %vm907, %v1661, -inf
        %1682 = vmax.xlane.f32.xlu0 %v1681
        %v1683 = vpop.xlane.xlu0 %1682
        %v1684 = vsel %vm907, %v1662, -inf
        %1685 = vmax.xlane.f32.xlu0 %v1684
        %v1686 = vpop.xlane.xlu0 %1685
        %v1687 = vsub.f32 %v1655, %v1665
        %v1688 = vsub.f32 %v1656, %v1668
        %v1689 = vsub.f32 %v1657, %v1671
        %v1690 = vsub.f32 %v1658, %v1674
        %v1691 = vsub.f32 %v1659, %v1677
        %v1692 = vsub.f32 %v1660, %v1680
        %v1693 = vsub.f32 %v1661, %v1683
        %v1694 = vsub.f32 %v1662, %v1686
        %v1695 = vmul.f32 %v1687, 1.442695
        %v1696 = vpow.pop %v1695
        %v1697 = vmul.f32 %v1688, 1.442695
        %v1698 = vpow.pop %v1697
        %v1699 = vmul.f32 %v1689, 1.442695
        %v1700 = vpow.pop %v1699
        %v1701 = vmul.f32 %v1690, 1.442695
        %v1702 = vpow.pop %v1701
        %v1703 = vmul.f32 %v1691, 1.442695
        %v1704 = vpow.pop %v1703
        %v1705 = vmul.f32 %v1692, 1.442695
        %v1706 = vpow.pop %v1705
        %v1707 = vmul.f32 %v1693, 1.442695
        %v1708 = vpow.pop %v1707
        %v1709 = vmul.f32 %v1694, 1.442695
        %v1710 = vpow.pop %v1709
        %v1711 = vsel %vm907, %v1696, 0.0
        %1712 = vadd.xlane.f32.xlu0 %v1711
        %v1713 = vpop.xlane.xlu0 %1712
        %v1714 = vsel %vm907, %v1698, 0.0
        %1715 = vadd.xlane.f32.xlu0 %v1714
        %v1716 = vpop.xlane.xlu0 %1715
        %v1717 = vsel %vm907, %v1700, 0.0
        %1718 = vadd.xlane.f32.xlu0 %v1717
        %v1719 = vpop.xlane.xlu0 %1718
        %v1720 = vsel %vm907, %v1702, 0.0
        %1721 = vadd.xlane.f32.xlu0 %v1720
        %v1722 = vpop.xlane.xlu0 %1721
        %v1723 = vsel %vm907, %v1704, 0.0
        %1724 = vadd.xlane.f32.xlu0 %v1723
        %v1725 = vpop.xlane.xlu0 %1724
        %v1726 = vsel %vm907, %v1706, 0.0
        %1727 = vadd.xlane.f32.xlu0 %v1726
        %v1728 = vpop.xlane.xlu0 %1727
        %v1729 = vsel %vm907, %v1708, 0.0
        %1730 = vadd.xlane.f32.xlu0 %v1729
        %v1731 = vpop.xlane.xlu0 %1730
        %v1732 = vsel %vm907, %v1710, 0.0
        %1733 = vadd.xlane.f32.xlu0 %v1732
        %v1734 = vpop.xlane.xlu0 %1733
        %v1735 = vrcp.pop %v1713
        %v1736 = vrcp.pop %v1716
        %v1737 = vrcp.pop %v1719
        %v1738 = vrcp.pop %v1722
        %v1739 = vrcp.pop %v1725
        %v1740 = vrcp.pop %v1728
        %v1741 = vrcp.pop %v1731
        %v1742 = vrcp.pop %v1734
        %v1743 = vmul.f32 %v1696, %v1735
        %v1744 = vmul.f32 %v1698, %v1736
        %v1745 = vmul.f32 %v1700, %v1737
        %v1746 = vmul.f32 %v1702, %v1738
        %v1747 = vmul.f32 %v1704, %v1739
        %v1748 = vmul.f32 %v1706, %v1740
        %v1749 = vmul.f32 %v1708, %v1741
        %v1750 = vmul.f32 %v1710, %v1742
        %v1751 = vpack.c.bf16 %v1744, %v1743
        %v1752 = vpack.c.bf16 %v1746, %v1745
        %v1753 = vpack.c.bf16 %v1748, %v1747
        %v1754 = vpack.c.bf16 %v1750, %v1749
        %1755 = vrot.lane.b32.xlu0 %v732, 48
        %v1756 = vpop.permute.xlu0 %1755
        %1757 = vrot.lane.b32.xlu0 %v733, 48
        %v1758 = vpop.permute.xlu0 %1757
        %1759 = vrot.lane.b32.xlu0 %v734, 48
        %v1760 = vpop.permute.xlu0 %1759
        %1761 = vrot.lane.b32.xlu0 %v735, 48
        %v1762 = vpop.permute.xlu0 %1761
        %v1768 = vsel %vm907, %v1751, 0
        %v1771 = vsel %vm907, %v1752, 0
        %v1774 = vsel %vm907, %v1753, 0
        %v1777 = vsel %vm907, %v1754, 0
        %1779 = vmatprep.subr.bf16.mxu0 0
        %1780 = vmatpush1.bf16.msra.mxu0 0
        %1781 = vmatprep.subr.bf16.mxu0 0
        %1782 = vmatpush1.bf16.msra.mxu0 0
        %1783 = vmatprep.subr.bf16.mxu0 0
        %1784 = vmatpush1.bf16.msra.mxu0 0
        %1785 = vmatprep.subr.bf16.mxu0 0
        %1786 = vmatpush1.bf16.msra.mxu0 0
        %1787 = vmatprep.subr.bf16.mxu0 0
        %1788 = vmatpush1.bf16.msra.mxu0 %v1762
        %1789 = vmatprep.subr.bf16.mxu0 0
        %1790 = vmatpush1.bf16.msra.mxu0 %v1760
        %1791 = vmatprep.subr.bf16.mxu0 0
        %1792 = vmatpush1.bf16.msra.mxu0 %v1758
        %1793 = vmatprep.subr.bf16.mxu0 0
        %1794 = vmatpush1.bf16.msra.mxu0 %v1756
        %1795 = vmatprep.subr.bf16.mxu0 0
        %1796 = vmatpush2.bf16.msra.mxu0 0
        %1797 = vmatprep.subr.bf16.mxu0 0
        %1798 = vmatpush2.bf16.msra.mxu0 0
        %1799 = vmatprep.subr.bf16.mxu0 0
        %1800 = vmatpush2.bf16.msra.mxu0 0
        %1801 = vmatprep.subr.bf16.mxu0 0
        %1802 = vmatpush2.bf16.msra.mxu0 0
        %1803 = vmatprep.subr.bf16.mxu0 0
        %1804 = vmatpush2.bf16.msra.mxu0 0
        %1805 = vmatprep.subr.bf16.mxu0 0
        %1806 = vmatpush2.bf16.msra.mxu0 0
        %1807 = vmatprep.subr.bf16.mxu0 0
        %1808 = vmatpush2.bf16.msra.mxu0 0
        %1809 = vmatprep.subr.bf16.mxu0 0
        %1810 = vmatpush2.bf16.msra.mxu0 0
        %1811 = vmatprep.mubr.bf16.mxu0 0
        %1812 = vmatmul.mubr.bf16.gmra.mxu0 %v1768
        %v1813 = vpop.f32.mrf.mxu0
        %v1814 = vadd.f32 0.0, %v1813
        %v1815 = vpop.f32.mrf.mxu0
        %v1816 = vpop.f32.mrf.mxu0
        %v1817 = vadd.f32 0.0, %v1816
        %v1818 = vpop.f32.mrf.mxu0
        %1819 = vmatprep.mubr.bf16.mxu0 0
        %1820 = vmatmul.mubr.bf16.gmra.mxu0 %v1771
        %v1821 = vpop.f32.mrf.mxu0
        %v1822 = vadd.f32 0.0, %v1821
        %v1823 = vpop.f32.mrf.mxu0
        %v1824 = vpop.f32.mrf.mxu0
        %v1825 = vadd.f32 0.0, %v1824
        %v1826 = vpop.f32.mrf.mxu0
        %1827 = vmatprep.mubr.bf16.mxu0 0
        %1828 = vmatmul.mubr.bf16.gmra.mxu0 %v1774
        %v1829 = vpop.f32.mrf.mxu0
        %v1830 = vadd.f32 0.0, %v1829
        %v1831 = vpop.f32.mrf.mxu0
        %v1832 = vpop.f32.mrf.mxu0
        %v1833 = vadd.f32 0.0, %v1832
        %v1834 = vpop.f32.mrf.mxu0
        %1835 = vmatprep.mubr.bf16.mxu0 0
        %1836 = vmatmul.mubr.bf16.gmra.mxu0 %v1777
        %v1837 = vpop.f32.mrf.mxu0
        %v1838 = vadd.f32 0.0, %v1837
        %v1839 = vpop.f32.mrf.mxu0
        %v1840 = vpop.f32.mrf.mxu0
        %v1841 = vadd.f32 0.0, %v1840
        %v1842 = vpop.f32.mrf.mxu0
        %1843 = vdwg.mxu0
        %1852 = vrot.lane.b32.xlu0 %v1814, 16
        %v1853 = vpop.permute.xlu0 %1852
        %1854 = vrot.lane.b32.xlu0 %v1817, 16
        %v1855 = vpop.permute.xlu0 %1854
        %1856 = vrot.lane.b32.xlu0 %v1822, 16
        %v1857 = vpop.permute.xlu0 %1856
        %1858 = vrot.lane.b32.xlu0 %v1825, 16
        %v1859 = vpop.permute.xlu0 %1858
        %1860 = vrot.lane.b32.xlu0 %v1830, 16
        %v1861 = vpop.permute.xlu0 %1860
        %1862 = vrot.lane.b32.xlu0 %v1833, 16
        %v1863 = vpop.permute.xlu0 %1862
        %1864 = vrot.lane.b32.xlu0 %v1838, 16
        %v1865 = vpop.permute.xlu0 %1864
        %1866 = vrot.lane.b32.xlu0 %v1841, 16
        %v1867 = vpop.permute.xlu0 %1866
        %vm1876 = vcmask 195712
        %1877 = vst.msk [vmem:[#allocation2] sm:$0xff] %vm1876, %v1853
        %1878 = vst.msk [vmem:[#allocation2 + $0x8] sm:$0xff] %vm1876, %v1855
        %1879 = vst.msk [vmem:[#allocation2 + $0x10] sm:$0xff] %vm1876, %v1857
        %1880 = vst.msk [vmem:[#allocation2 + $0x18] sm:$0xff] %vm1876, %v1859
        %1881 = vst.msk [vmem:[#allocation2 + $0x20] sm:$0xff] %vm1876, %v1861
        %1882 = vst.msk [vmem:[#allocation2 + $0x28] sm:$0xff] %vm1876, %v1863
        %1883 = vst.msk [vmem:[#allocation2 + $0x30] sm:$0xff] %vm1876, %v1865
        %1884 = vst.msk [vmem:[#allocation2 + $0x38] sm:$0xff] %vm1876, %v1867
        %1885 = vrot.lane.b32.xlu0 %v702, 72
        %v1886 = vpop.permute.xlu0 %1885
        %1887 = vrot.lane.b32.xlu0 %v705, 72
        %v1888 = vpop.permute.xlu0 %1887
        %1889 = vrot.lane.b32.xlu0 %v710, 72
        %v1890 = vpop.permute.xlu0 %1889
        %1891 = vrot.lane.b32.xlu0 %v713, 72
        %v1892 = vpop.permute.xlu0 %1891
        %1893 = vrot.lane.b32.xlu0 %v718, 72
        %v1894 = vpop.permute.xlu0 %1893
        %1895 = vrot.lane.b32.xlu0 %v721, 72
        %v1896 = vpop.permute.xlu0 %1895
        %1897 = vrot.lane.b32.xlu0 %v726, 72
        %v1898 = vpop.permute.xlu0 %1897
        %1899 = vrot.lane.b32.xlu0 %v729, 72
        %v1900 = vpop.permute.xlu0 %1899
        %1909 = vxpose.xlu0.b32.start [1/16] %v1886, 128
        %1910 = vxpose.xlu0.b32.cont [2/16] %v1888, 128
        %1911 = vxpose.xlu0.b32.cont [3/16] %v1890, 128
        %1912 = vxpose.xlu0.b32.cont [4/16] %v1892, 128
        %1913 = vxpose.xlu0.b32.cont [5/16] %v1894, 128
        %1914 = vxpose.xlu0.b32.cont [6/16] %v1896, 128
        %1915 = vxpose.xlu0.b32.cont [7/16] %v1898, 128
        %1916 = vxpose.xlu0.b32.cont [8/16] %v1900, 128
        %1917 = vxpose.xlu0.b32.cont [9/16] 0.0, 128
        %1918 = vxpose.xlu0.b32.cont [10/16] 0.0, 128
        %1919 = vxpose.xlu0.b32.cont [11/16] 0.0, 128
        %1920 = vxpose.xlu0.b32.cont [12/16] 0.0, 128
        %1921 = vxpose.xlu0.b32.cont [13/16] 0.0, 128
        %1922 = vxpose.xlu0.b32.cont [14/16] 0.0, 128
        %1923 = vxpose.xlu0.b32.cont [15/16] 0.0, 128
        %1924 = vxpose.xlu0.b32.end [16/16] 0.0, 128
        %v1925 = vpop.trf.xlu0
        %v1926 = vpop.trf.xlu0
        %v1927 = vpop.trf.xlu0
        %v1928 = vpop.trf.xlu0
        %v1929 = vpop.trf.xlu0
        %v1930 = vpop.trf.xlu0
        %v1931 = vpop.trf.xlu0
        %v1932 = vpop.trf.xlu0
        %v1933 = vpop.trf.xlu0
        %v1934 = vpop.trf.xlu0
        %v1935 = vpop.trf.xlu0
        %v1936 = vpop.trf.xlu0
        %v1937 = vpop.trf.xlu0
        %v1938 = vpop.trf.xlu0
        %v1939 = vpop.trf.xlu0
        %v1940 = vpop.trf.xlu0
        %v1941 = vpack.c.bf16 %v1925, %v1925
        %1942 = vrot.lane.b32.xlu0 %v732, 104
        %v1943 = vpop.permute.xlu0 %1942
        %1944 = vrot.lane.b32.xlu0 %v733, 104
        %v1945 = vpop.permute.xlu0 %1944
        %1946 = vrot.lane.b32.xlu0 %v734, 104
        %v1947 = vpop.permute.xlu0 %1946
        %1948 = vrot.lane.b32.xlu0 %v735, 104
        %v1949 = vpop.permute.xlu0 %1948
        %v1951 = vsel %vm801, %v1943, 0
        %v1954 = vsel %vm801, %v1945, 0
        %v1957 = vsel %vm801, %v1947, 0
        %v1960 = vsel %vm801, %v1949, 0
        %v1963 = vsel %vm814, %v1941, 0
        %1965 = vmatprep.subr.bf16.mxu0 0
        %1966 = vmatpush1.bf16.msra.mxu0 0
        %1967 = vmatprep.subr.bf16.mxu0 0
        %1968 = vmatpush1.bf16.msra.mxu0 0
        %1969 = vmatprep.subr.bf16.mxu0 0
        %1970 = vmatpush1.bf16.msra.mxu0 0
        %1971 = vmatprep.subr.bf16.mxu0 0
        %1972 = vmatpush1.bf16.msra.mxu0 0
        %1973 = vmatprep.subr.bf16.mxu0 0
        %1974 = vmatpush1.bf16.msra.mxu0 0
        %1975 = vmatprep.subr.bf16.mxu0 0
        %1976 = vmatpush1.bf16.msra.mxu0 0
        %1977 = vmatprep.subr.bf16.mxu0 0
        %1978 = vmatpush1.bf16.msra.mxu0 0
        %1979 = vmatprep.subr.bf16.mxu0 0
        %1980 = vmatpush1.bf16.msra.mxu0 %v1963
        %1981 = vmatprep.subr.bf16.mxu0 0
        %1982 = vmatpush2.bf16.msra.mxu0 0
        %1983 = vmatprep.subr.bf16.mxu0 0
        %1984 = vmatpush2.bf16.msra.mxu0 0
        %1985 = vmatprep.subr.bf16.mxu0 0
        %1986 = vmatpush2.bf16.msra.mxu0 0
        %1987 = vmatprep.subr.bf16.mxu0 0
        %1988 = vmatpush2.bf16.msra.mxu0 0
        %1989 = vmatprep.subr.bf16.mxu0 0
        %1990 = vmatpush2.bf16.msra.mxu0 0
        %1991 = vmatprep.subr.bf16.mxu0 0
        %1992 = vmatpush2.bf16.msra.mxu0 0
        %1993 = vmatprep.subr.bf16.mxu0 0
        %1994 = vmatpush2.bf16.msra.mxu0 0
        %1995 = vmatprep.subr.bf16.mxu0 0
        %1996 = vmatpush2.bf16.msra.mxu0 0
        %1997 = vmatprep.mubr.bf16.mxu0 0
        %1998 = vmatmul.mubr.bf16.gmra.mxu0 %v1951
        %v1999 = vpop.f32.mrf.mxu0
        %v2000 = vadd.f32 0.0, %v1999
        %v2001 = vpop.f32.mrf.mxu0
        %v2002 = vpop.f32.mrf.mxu0
        %v2003 = vadd.f32 0.0, %v2002
        %v2004 = vpop.f32.mrf.mxu0
        %2005 = vmatprep.mubr.bf16.mxu0 0
        %2006 = vmatmul.mubr.bf16.gmra.mxu0 %v1954
        %v2007 = vpop.f32.mrf.mxu0
        %v2008 = vadd.f32 0.0, %v2007
        %v2009 = vpop.f32.mrf.mxu0
        %v2010 = vpop.f32.mrf.mxu0
        %v2011 = vadd.f32 0.0, %v2010
        %v2012 = vpop.f32.mrf.mxu0
        %2013 = vmatprep.mubr.bf16.mxu0 0
        %2014 = vmatmul.mubr.bf16.gmra.mxu0 %v1957
        %v2015 = vpop.f32.mrf.mxu0
        %v2016 = vadd.f32 0.0, %v2015
        %v2017 = vpop.f32.mrf.mxu0
        %v2018 = vpop.f32.mrf.mxu0
        %v2019 = vadd.f32 0.0, %v2018
        %v2020 = vpop.f32.mrf.mxu0
        %2021 = vmatprep.mubr.bf16.mxu0 0
        %2022 = vmatmul.mubr.bf16.gmra.mxu0 %v1960
        %v2023 = vpop.f32.mrf.mxu0
        %v2024 = vadd.f32 0.0, %v2023
        %v2025 = vpop.f32.mrf.mxu0
        %v2026 = vpop.f32.mrf.mxu0
        %v2027 = vadd.f32 0.0, %v2026
        %v2028 = vpop.f32.mrf.mxu0
        %2029 = vdwg.mxu0
        %v2030 = vmul.f32 %v2000, 0.35355338
        %v2031 = vmul.f32 %v2003, 0.35355338
        %v2032 = vmul.f32 %v2008, 0.35355338
        %v2033 = vmul.f32 %v2011, 0.35355338
        %v2034 = vmul.f32 %v2016, 0.35355338
        %v2035 = vmul.f32 %v2019, 0.35355338
        %v2036 = vmul.f32 %v2024, 0.35355338
        %v2037 = vmul.f32 %v2027, 0.35355338
        %s2038 = scalar_lea.vmem [#allocation3], 192
        %v2039 = vld [vmem:[%s2038] sm:$0xff]
        %v2040 = vld [vmem:[%s2038 + $0x8] sm:$0xff]
        %v2041 = vld [vmem:[%s2038 + $0x10] sm:$0xff]
        %v2042 = vld [vmem:[%s2038 + $0x18] sm:$0xff]
        %v2043 = vld [vmem:[%s2038 + $0x20] sm:$0xff]
        %v2044 = vld [vmem:[%s2038 + $0x28] sm:$0xff]
        %v2045 = vld [vmem:[%s2038 + $0x30] sm:$0xff]
        %v2046 = vld [vmem:[%s2038 + $0x38] sm:$0xff]
        %v2047 = vadd.f32 %v2030, %v2039
        %v2048 = vadd.f32 %v2031, %v2040
        %v2049 = vadd.f32 %v2032, %v2041
        %v2050 = vadd.f32 %v2033, %v2042
        %v2051 = vadd.f32 %v2034, %v2043
        %v2052 = vadd.f32 %v2035, %v2044
        %v2053 = vadd.f32 %v2036, %v2045
        %v2054 = vadd.f32 %v2037, %v2046
        %v2055 = vsel %vm907, %v2047, -inf
        %2056 = vmax.xlane.f32.xlu0 %v2055
        %v2057 = vpop.xlane.xlu0 %2056
        %v2058 = vsel %vm907, %v2048, -inf
        %2059 = vmax.xlane.f32.xlu0 %v2058
        %v2060 = vpop.xlane.xlu0 %2059
        %v2061 = vsel %vm907, %v2049, -inf
        %2062 = vmax.xlane.f32.xlu0 %v2061
        %v2063 = vpop.xlane.xlu0 %2062
        %v2064 = vsel %vm907, %v2050, -inf
        %2065 = vmax.xlane.f32.xlu0 %v2064
        %v2066 = vpop.xlane.xlu0 %2065
        %v2067 = vsel %vm907, %v2051, -inf
        %2068 = vmax.xlane.f32.xlu0 %v2067
        %v2069 = vpop.xlane.xlu0 %2068
        %v2070 = vsel %vm907, %v2052, -inf
        %2071 = vmax.xlane.f32.xlu0 %v2070
        %v2072 = vpop.xlane.xlu0 %2071
        %v2073 = vsel %vm907, %v2053, -inf
        %2074 = vmax.xlane.f32.xlu0 %v2073
        %v2075 = vpop.xlane.xlu0 %2074
        %v2076 = vsel %vm907, %v2054, -inf
        %2077 = vmax.xlane.f32.xlu0 %v2076
        %v2078 = vpop.xlane.xlu0 %2077
        %v2079 = vsub.f32 %v2047, %v2057
        %v2080 = vsub.f32 %v2048, %v2060
        %v2081 = vsub.f32 %v2049, %v2063
        %v2082 = vsub.f32 %v2050, %v2066
        %v2083 = vsub.f32 %v2051, %v2069
        %v2084 = vsub.f32 %v2052, %v2072
        %v2085 = vsub.f32 %v2053, %v2075
        %v2086 = vsub.f32 %v2054, %v2078
        %v2087 = vmul.f32 %v2079, 1.442695
        %v2088 = vpow.pop %v2087
        %v2089 = vmul.f32 %v2080, 1.442695
        %v2090 = vpow.pop %v2089
        %v2091 = vmul.f32 %v2081, 1.442695
        %v2092 = vpow.pop %v2091
        %v2093 = vmul.f32 %v2082, 1.442695
        %v2094 = vpow.pop %v2093
        %v2095 = vmul.f32 %v2083, 1.442695
        %v2096 = vpow.pop %v2095
        %v2097 = vmul.f32 %v2084, 1.442695
        %v2098 = vpow.pop %v2097
        %v2099 = vmul.f32 %v2085, 1.442695
        %v2100 = vpow.pop %v2099
        %v2101 = vmul.f32 %v2086, 1.442695
        %v2102 = vpow.pop %v2101
        %v2103 = vsel %vm907, %v2088, 0.0
        %2104 = vadd.xlane.f32.xlu0 %v2103
        %v2105 = vpop.xlane.xlu0 %2104
        %v2106 = vsel %vm907, %v2090, 0.0
        %2107 = vadd.xlane.f32.xlu0 %v2106
        %v2108 = vpop.xlane.xlu0 %2107
        %v2109 = vsel %vm907, %v2092, 0.0
        %2110 = vadd.xlane.f32.xlu0 %v2109
        %v2111 = vpop.xlane.xlu0 %2110
        %v2112 = vsel %vm907, %v2094, 0.0
        %2113 = vadd.xlane.f32.xlu0 %v2112
        %v2114 = vpop.xlane.xlu0 %2113
        %v2115 = vsel %vm907, %v2096, 0.0
        %2116 = vadd.xlane.f32.xlu0 %v2115
        %v2117 = vpop.xlane.xlu0 %2116
        %v2118 = vsel %vm907, %v2098, 0.0
        %2119 = vadd.xlane.f32.xlu0 %v2118
        %v2120 = vpop.xlane.xlu0 %2119
        %v2121 = vsel %vm907, %v2100, 0.0
        %2122 = vadd.xlane.f32.xlu0 %v2121
        %v2123 = vpop.xlane.xlu0 %2122
        %v2124 = vsel %vm907, %v2102, 0.0
        %2125 = vadd.xlane.f32.xlu0 %v2124
        %v2126 = vpop.xlane.xlu0 %2125
        %v2127 = vrcp.pop %v2105
        %v2128 = vrcp.pop %v2108
        %v2129 = vrcp.pop %v2111
        %v2130 = vrcp.pop %v2114
        %v2131 = vrcp.pop %v2117
        %v2132 = vrcp.pop %v2120
        %v2133 = vrcp.pop %v2123
        %v2134 = vrcp.pop %v2126
        %v2135 = vmul.f32 %v2088, %v2127
        %v2136 = vmul.f32 %v2090, %v2128
        %v2137 = vmul.f32 %v2092, %v2129
        %v2138 = vmul.f32 %v2094, %v2130
        %v2139 = vmul.f32 %v2096, %v2131
        %v2140 = vmul.f32 %v2098, %v2132
        %v2141 = vmul.f32 %v2100, %v2133
        %v2142 = vmul.f32 %v2102, %v2134
        %v2143 = vpack.c.bf16 %v2136, %v2135
        %v2144 = vpack.c.bf16 %v2138, %v2137
        %v2145 = vpack.c.bf16 %v2140, %v2139
        %v2146 = vpack.c.bf16 %v2142, %v2141
        %2147 = vrot.lane.b32.xlu0 %v732, 40
        %v2148 = vpop.permute.xlu0 %2147
        %2149 = vrot.lane.b32.xlu0 %v733, 40
        %v2150 = vpop.permute.xlu0 %2149
        %2151 = vrot.lane.b32.xlu0 %v734, 40
        %v2152 = vpop.permute.xlu0 %2151
        %2153 = vrot.lane.b32.xlu0 %v735, 40
        %v2154 = vpop.permute.xlu0 %2153
        %v2160 = vsel %vm907, %v2143, 0
        %v2163 = vsel %vm907, %v2144, 0
        %v2166 = vsel %vm907, %v2145, 0
        %v2169 = vsel %vm907, %v2146, 0
        %2171 = vmatprep.subr.bf16.mxu0 0
        %2172 = vmatpush1.bf16.msra.mxu0 0
        %2173 = vmatprep.subr.bf16.mxu0 0
        %2174 = vmatpush1.bf16.msra.mxu0 0
        %2175 = vmatprep.subr.bf16.mxu0 0
        %2176 = vmatpush1.bf16.msra.mxu0 0
        %2177 = vmatprep.subr.bf16.mxu0 0
        %2178 = vmatpush1.bf16.msra.mxu0 0
        %2179 = vmatprep.subr.bf16.mxu0 0
        %2180 = vmatpush1.bf16.msra.mxu0 %v2154
        %2181 = vmatprep.subr.bf16.mxu0 0
        %2182 = vmatpush1.bf16.msra.mxu0 %v2152
        %2183 = vmatprep.subr.bf16.mxu0 0
        %2184 = vmatpush1.bf16.msra.mxu0 %v2150
        %2185 = vmatprep.subr.bf16.mxu0 0
        %2186 = vmatpush1.bf16.msra.mxu0 %v2148
        %2187 = vmatprep.subr.bf16.mxu0 0
        %2188 = vmatpush2.bf16.msra.mxu0 0
        %2189 = vmatprep.subr.bf16.mxu0 0
        %2190 = vmatpush2.bf16.msra.mxu0 0
        %2191 = vmatprep.subr.bf16.mxu0 0
        %2192 = vmatpush2.bf16.msra.mxu0 0
        %2193 = vmatprep.subr.bf16.mxu0 0
        %2194 = vmatpush2.bf16.msra.mxu0 0
        %2195 = vmatprep.subr.bf16.mxu0 0
        %2196 = vmatpush2.bf16.msra.mxu0 0
        %2197 = vmatprep.subr.bf16.mxu0 0
        %2198 = vmatpush2.bf16.msra.mxu0 0
        %2199 = vmatprep.subr.bf16.mxu0 0
        %2200 = vmatpush2.bf16.msra.mxu0 0
        %2201 = vmatprep.subr.bf16.mxu0 0
        %2202 = vmatpush2.bf16.msra.mxu0 0
        %2203 = vmatprep.mubr.bf16.mxu0 0
        %2204 = vmatmul.mubr.bf16.gmra.mxu0 %v2160
        %v2205 = vpop.f32.mrf.mxu0
        %v2206 = vadd.f32 0.0, %v2205
        %v2207 = vpop.f32.mrf.mxu0
        %v2208 = vpop.f32.mrf.mxu0
        %v2209 = vadd.f32 0.0, %v2208
        %v2210 = vpop.f32.mrf.mxu0
        %2211 = vmatprep.mubr.bf16.mxu0 0
        %2212 = vmatmul.mubr.bf16.gmra.mxu0 %v2163
        %v2213 = vpop.f32.mrf.mxu0
        %v2214 = vadd.f32 0.0, %v2213
        %v2215 = vpop.f32.mrf.mxu0
        %v2216 = vpop.f32.mrf.mxu0
        %v2217 = vadd.f32 0.0, %v2216
        %v2218 = vpop.f32.mrf.mxu0
        %2219 = vmatprep.mubr.bf16.mxu0 0
        %2220 = vmatmul.mubr.bf16.gmra.mxu0 %v2166
        %v2221 = vpop.f32.mrf.mxu0
        %v2222 = vadd.f32 0.0, %v2221
        %v2223 = vpop.f32.mrf.mxu0
        %v2224 = vpop.f32.mrf.mxu0
        %v2225 = vadd.f32 0.0, %v2224
        %v2226 = vpop.f32.mrf.mxu0
        %2227 = vmatprep.mubr.bf16.mxu0 0
        %2228 = vmatmul.mubr.bf16.gmra.mxu0 %v2169
        %v2229 = vpop.f32.mrf.mxu0
        %v2230 = vadd.f32 0.0, %v2229
        %v2231 = vpop.f32.mrf.mxu0
        %v2232 = vpop.f32.mrf.mxu0
        %v2233 = vadd.f32 0.0, %v2232
        %v2234 = vpop.f32.mrf.mxu0
        %2235 = vdwg.mxu0
        %2244 = vrot.lane.b32.xlu0 %v2206, 24
        %v2245 = vpop.permute.xlu0 %2244
        %2246 = vrot.lane.b32.xlu0 %v2209, 24
        %v2247 = vpop.permute.xlu0 %2246
        %2248 = vrot.lane.b32.xlu0 %v2214, 24
        %v2249 = vpop.permute.xlu0 %2248
        %2250 = vrot.lane.b32.xlu0 %v2217, 24
        %v2251 = vpop.permute.xlu0 %2250
        %2252 = vrot.lane.b32.xlu0 %v2222, 24
        %v2253 = vpop.permute.xlu0 %2252
        %2254 = vrot.lane.b32.xlu0 %v2225, 24
        %v2255 = vpop.permute.xlu0 %2254
        %2256 = vrot.lane.b32.xlu0 %v2230, 24
        %v2257 = vpop.permute.xlu0 %2256
        %2258 = vrot.lane.b32.xlu0 %v2233, 24
        %v2259 = vpop.permute.xlu0 %2258
        %vm2268 = vcmask 261312
        %2269 = vst.msk [vmem:[#allocation2] sm:$0xff] %vm2268, %v2245
        %2270 = vst.msk [vmem:[#allocation2 + $0x8] sm:$0xff] %vm2268, %v2247
        %2271 = vst.msk [vmem:[#allocation2 + $0x10] sm:$0xff] %vm2268, %v2249
        %2272 = vst.msk [vmem:[#allocation2 + $0x18] sm:$0xff] %vm2268, %v2251
        %2273 = vst.msk [vmem:[#allocation2 + $0x20] sm:$0xff] %vm2268, %v2253
        %2274 = vst.msk [vmem:[#allocation2 + $0x28] sm:$0xff] %vm2268, %v2255
        %2275 = vst.msk [vmem:[#allocation2 + $0x30] sm:$0xff] %vm2268, %v2257
        %2276 = vst.msk [vmem:[#allocation2 + $0x38] sm:$0xff] %vm2268, %v2259
        %v2277 = vld [vmem:[#allocation2] sm:$0xff]
        %v2278 = vld [vmem:[#allocation2 + $0x8] sm:$0xff]
        %v2279 = vld [vmem:[#allocation2 + $0x10] sm:$0xff]
        %v2280 = vld [vmem:[#allocation2 + $0x18] sm:$0xff]
        %v2281 = vld [vmem:[#allocation2 + $0x20] sm:$0xff]
        %v2282 = vld [vmem:[#allocation2 + $0x28] sm:$0xff]
        %v2283 = vld [vmem:[#allocation2 + $0x30] sm:$0xff]
        %v2284 = vld [vmem:[#allocation2 + $0x38] sm:$0xff]
        %v2285 = vpack.c.bf16 %v2278, %v2277
        %v2286 = vpack.c.bf16 %v2280, %v2279
        %v2287 = vpack.c.bf16 %v2282, %v2281
        %v2288 = vpack.c.bf16 %v2284, %v2283
        %v2289 = vld [vmem:[%s5] sm:$0xf]
        %v2290 = vld [vmem:[%s5 + $0x4] sm:$0xf]
        %v2291 = vld [vmem:[%s5 + $0x8] sm:$0xf]
        %v2292 = vld [vmem:[%s5 + $0xc] sm:$0xf]
        %v2293 = vld [vmem:[%s6] sm:$0x1]
        %v2295 = vlaneseq
        %v2296 = vshrl.u32 %v2295, 7
        %v2297 = vsub.s32 0, %v2296
        %v2298 = vrot.slane %v2293, %v2297
        %v2304 = vunpack.c.l.b16 %v2289
        %v2305 = vunpack.c.l.b16 %v2290
        %v2306 = vunpack.c.l.b16 %v2291
        %v2307 = vunpack.c.l.b16 %v2292
        %v2308 = vpack.c.b16 %v2305, %v2304
        %v2309 = vpack.c.b16 %v2307, %v2306
        %v2313 = vsel %vm494, %v2285, 0
        %v2316 = vsel %vm494, %v2286, 0
        %v2319 = vsel %vm494, %v2287, 0
        %v2322 = vsel %vm494, %v2288, 0
        %2324 = vmatprep.subr.bf16.mxu0 0
        %2325 = vmatpush1.bf16.msra.mxu0 0
        %2326 = vmatprep.subr.bf16.mxu0 0
        %2327 = vmatpush1.bf16.msra.mxu0 0
        %2328 = vmatprep.subr.bf16.mxu0 0
        %2329 = vmatpush1.bf16.msra.mxu0 0
        %2330 = vmatprep.subr.bf16.mxu0 0
        %2331 = vmatpush1.bf16.msra.mxu0 0
        %2332 = vmatprep.subr.bf16.mxu0 0
        %2333 = vmatpush1.bf16.msra.mxu0 0
        %2334 = vmatprep.subr.bf16.mxu0 0
        %2335 = vmatpush1.bf16.msra.mxu0 0
        %2336 = vmatprep.subr.bf16.mxu0 0
        %2337 = vmatpush1.bf16.msra.mxu0 %v2309
        %2338 = vmatprep.subr.bf16.mxu0 0
        %2339 = vmatpush1.bf16.msra.mxu0 %v2308
        %2340 = vmatprep.subr.bf16.mxu0 0
        %2341 = vmatpush2.bf16.msra.mxu0 0
        %2342 = vmatprep.subr.bf16.mxu0 0
        %2343 = vmatpush2.bf16.msra.mxu0 0
        %2344 = vmatprep.subr.bf16.mxu0 0
        %2345 = vmatpush2.bf16.msra.mxu0 0
        %2346 = vmatprep.subr.bf16.mxu0 0
        %2347 = vmatpush2.bf16.msra.mxu0 0
        %2348 = vmatprep.subr.bf16.mxu0 0
        %2349 = vmatpush2.bf16.msra.mxu0 0
        %2350 = vmatprep.subr.bf16.mxu0 0
        %2351 = vmatpush2.bf16.msra.mxu0 0
        %2352 = vmatprep.subr.bf16.mxu0 0
        %2353 = vmatpush2.bf16.msra.mxu0 0
        %2354 = vmatprep.subr.bf16.mxu0 0
        %2355 = vmatpush2.bf16.msra.mxu0 0
        %2356 = vmatprep.mubr.bf16.mxu0 0
        %2357 = vmatmul.mubr.bf16.gmra.mxu0 %v2313
        %v2358 = vpop.f32.mrf.mxu0
        %v2359 = vadd.f32 %v2298, %v2358
        %v2360 = vpop.f32.mrf.mxu0
        %v2361 = vpop.f32.mrf.mxu0
        %v2362 = vadd.f32 %v2298, %v2361
        %v2363 = vpop.f32.mrf.mxu0
        %2364 = vmatprep.mubr.bf16.mxu0 0
        %2365 = vmatmul.mubr.bf16.gmra.mxu0 %v2316
        %v2366 = vpop.f32.mrf.mxu0
        %v2367 = vadd.f32 %v2298, %v2366
        %v2368 = vpop.f32.mrf.mxu0
        %v2369 = vpop.f32.mrf.mxu0
        %v2370 = vadd.f32 %v2298, %v2369
        %v2371 = vpop.f32.mrf.mxu0
        %2372 = vmatprep.mubr.bf16.mxu0 0
        %2373 = vmatmul.mubr.bf16.gmra.mxu0 %v2319
        %v2374 = vpop.f32.mrf.mxu0
        %v2375 = vadd.f32 %v2298, %v2374
        %v2376 = vpop.f32.mrf.mxu0
        %v2377 = vpop.f32.mrf.mxu0
        %v2378 = vadd.f32 %v2298, %v2377
        %v2379 = vpop.f32.mrf.mxu0
        %2380 = vmatprep.mubr.bf16.mxu0 0
        %2381 = vmatmul.mubr.bf16.gmra.mxu0 %v2322
        %v2382 = vpop.f32.mrf.mxu0
        %v2383 = vadd.f32 %v2298, %v2382
        %v2384 = vpop.f32.mrf.mxu0
        %v2385 = vpop.f32.mrf.mxu0
        %v2386 = vadd.f32 %v2298, %v2385
        %v2387 = vpop.f32.mrf.mxu0
        %2388 = vdwg.mxu0
        %v2389 = vadd.f32 %v484, %v2359
        %v2390 = vadd.f32 %v485, %v2362
        %v2391 = vadd.f32 %v486, %v2367
        %v2392 = vadd.f32 %v487, %v2370
        %v2393 = vadd.f32 %v488, %v2375
        %v2394 = vadd.f32 %v489, %v2378
        %v2395 = vadd.f32 %v490, %v2383
        %v2396 = vadd.f32 %v491, %v2386
        %v2397 = vld [vmem:[%s7] sm:$0x1]
        %v2398 = vld [vmem:[%s8] sm:$0x1]
        %v2399 = vsel %vm494, %v2389, 0.0
        %2400 = vadd.xlane.f32.xlu0 %v2399
        %v2401 = vpop.xlane.xlu0 %2400
        %v2402 = vsel %vm494, %v2390, 0.0
        %2403 = vadd.xlane.f32.xlu0 %v2402
        %v2404 = vpop.xlane.xlu0 %2403
        %v2405 = vsel %vm494, %v2391, 0.0
        %2406 = vadd.xlane.f32.xlu0 %v2405
        %v2407 = vpop.xlane.xlu0 %2406
        %v2408 = vsel %vm494, %v2392, 0.0
        %2409 = vadd.xlane.f32.xlu0 %v2408
        %v2410 = vpop.xlane.xlu0 %2409
        %v2411 = vsel %vm494, %v2393, 0.0
        %2412 = vadd.xlane.f32.xlu0 %v2411
        %v2413 = vpop.xlane.xlu0 %2412
        %v2414 = vsel %vm494, %v2394, 0.0
        %2415 = vadd.xlane.f32.xlu0 %v2414
        %v2416 = vpop.xlane.xlu0 %2415
        %v2417 = vsel %vm494, %v2395, 0.0
        %2418 = vadd.xlane.f32.xlu0 %v2417
        %v2419 = vpop.xlane.xlu0 %2418
        %v2420 = vsel %vm494, %v2396, 0.0
        %2421 = vadd.xlane.f32.xlu0 %v2420
        %v2422 = vpop.xlane.xlu0 %2421
        %v2423 = vmul.f32 %v2401, %v519
        %v2424 = vmul.f32 %v2404, %v519
        %v2425 = vmul.f32 %v2407, %v519
        %v2426 = vmul.f32 %v2410, %v519
        %v2427 = vmul.f32 %v2413, %v519
        %v2428 = vmul.f32 %v2416, %v519
        %v2429 = vmul.f32 %v2419, %v519
        %v2430 = vmul.f32 %v2422, %v519
        %v2431 = vsub.f32 %v2389, %v2423
        %v2432 = vsub.f32 %v2390, %v2424
        %v2433 = vsub.f32 %v2391, %v2425
        %v2434 = vsub.f32 %v2392, %v2426
        %v2435 = vsub.f32 %v2393, %v2427
        %v2436 = vsub.f32 %v2394, %v2428
        %v2437 = vsub.f32 %v2395, %v2429
        %v2438 = vsub.f32 %v2396, %v2430
        %v2439 = vmul.f32 %v2431, %v2431
        %v2440 = vmul.f32 %v2432, %v2432
        %v2441 = vmul.f32 %v2433, %v2433
        %v2442 = vmul.f32 %v2434, %v2434
        %v2443 = vmul.f32 %v2435, %v2435
        %v2444 = vmul.f32 %v2436, %v2436
        %v2445 = vmul.f32 %v2437, %v2437
        %v2446 = vmul.f32 %v2438, %v2438
        %v2447 = vsel %vm494, %v2439, 0.0
        %2448 = vadd.xlane.f32.xlu0 %v2447
        %v2449 = vpop.xlane.xlu0 %2448
        %v2450 = vsel %vm494, %v2440, 0.0
        %2451 = vadd.xlane.f32.xlu0 %v2450
        %v2452 = vpop.xlane.xlu0 %2451
        %v2453 = vsel %vm494, %v2441, 0.0
        %2454 = vadd.xlane.f32.xlu0 %v2453
        %v2455 = vpop.xlane.xlu0 %2454
        %v2456 = vsel %vm494, %v2442, 0.0
        %2457 = vadd.xlane.f32.xlu0 %v2456
        %v2458 = vpop.xlane.xlu0 %2457
        %v2459 = vsel %vm494, %v2443, 0.0
        %2460 = vadd.xlane.f32.xlu0 %v2459
        %v2461 = vpop.xlane.xlu0 %2460
        %v2462 = vsel %vm494, %v2444, 0.0
        %2463 = vadd.xlane.f32.xlu0 %v2462
        %v2464 = vpop.xlane.xlu0 %2463
        %v2465 = vsel %vm494, %v2445, 0.0
        %2466 = vadd.xlane.f32.xlu0 %v2465
        %v2467 = vpop.xlane.xlu0 %2466
        %v2468 = vsel %vm494, %v2446, 0.0
        %2469 = vadd.xlane.f32.xlu0 %v2468
        %v2470 = vpop.xlane.xlu0 %2469
        %v2471 = vmul.f32 %v2449, %v519
        %v2472 = vmul.f32 %v2452, %v519
        %v2473 = vmul.f32 %v2455, %v519
        %v2474 = vmul.f32 %v2458, %v519
        %v2475 = vmul.f32 %v2461, %v519
        %v2476 = vmul.f32 %v2464, %v519
        %v2477 = vmul.f32 %v2467, %v519
        %v2478 = vmul.f32 %v2470, %v519
        %v2479 = vadd.f32 %v2471, 1e-05
        %v2480 = vadd.f32 %v2472, 1e-05
        %v2481 = vadd.f32 %v2473, 1e-05
        %v2482 = vadd.f32 %v2474, 1e-05
        %v2483 = vadd.f32 %v2475, 1e-05
        %v2484 = vadd.f32 %v2476, 1e-05
        %v2485 = vadd.f32 %v2477, 1e-05
        %v2486 = vadd.f32 %v2478, 1e-05
        %v2487 = vrsqrt.pop %v2479
        %v2488 = vrsqrt.pop %v2480
        %v2489 = vrsqrt.pop %v2481
        %v2490 = vrsqrt.pop %v2482
        %v2491 = vrsqrt.pop %v2483
        %v2492 = vrsqrt.pop %v2484
        %v2493 = vrsqrt.pop %v2485
        %v2494 = vrsqrt.pop %v2486
        %v2495 = vmul.f32 %v2431, %v2487
        %v2496 = vmul.f32 %v2432, %v2488
        %v2497 = vmul.f32 %v2433, %v2489
        %v2498 = vmul.f32 %v2434, %v2490
        %v2499 = vmul.f32 %v2435, %v2491
        %v2500 = vmul.f32 %v2436, %v2492
        %v2501 = vmul.f32 %v2437, %v2493
        %v2502 = vmul.f32 %v2438, %v2494
        %v2504 = vlaneseq
        %v2505 = vshrl.u32 %v2504, 7
        %v2506 = vsub.s32 0, %v2505
        %v2507 = vrot.slane %v2397, %v2506
        %v2509 = vmul.f32 %v2495, %v2507
        %v2510 = vmul.f32 %v2496, %v2507
        %v2511 = vmul.f32 %v2497, %v2507
        %v2512 = vmul.f32 %v2498, %v2507
        %v2513 = vmul.f32 %v2499, %v2507
        %v2514 = vmul.f32 %v2500, %v2507
        %v2515 = vmul.f32 %v2501, %v2507
        %v2516 = vmul.f32 %v2502, %v2507
        %v2518 = vlaneseq
        %v2519 = vshrl.u32 %v2518, 7
        %v2520 = vsub.s32 0, %v2519
        %v2521 = vrot.slane %v2398, %v2520
        %v2523 = vadd.f32 %v2509, %v2521
        %v2524 = vadd.f32 %v2510, %v2521
        %v2525 = vadd.f32 %v2511, %v2521
        %v2526 = vadd.f32 %v2512, %v2521
        %v2527 = vadd.f32 %v2513, %v2521
        %v2528 = vadd.f32 %v2514, %v2521
        %v2529 = vadd.f32 %v2515, %v2521
        %v2530 = vadd.f32 %v2516, %v2521
        %v2531 = vpack.c.bf16 %v2524, %v2523
        %v2532 = vpack.c.bf16 %v2526, %v2525
        %v2533 = vpack.c.bf16 %v2528, %v2527
        %v2534 = vpack.c.bf16 %v2530, %v2529
        %v2535 = vld [vmem:[%s9] sm:$0xf]
        %v2536 = vld [vmem:[%s9 + $0x4] sm:$0xf]
        %v2537 = vld [vmem:[%s9 + $0x8] sm:$0xf]
        %v2538 = vld [vmem:[%s9 + $0xc] sm:$0xf]
        %v2539 = vld [vmem:[%s10] sm:$0x1]
        %v2541 = vlaneseq
        %v2542 = vshrl.u32 %v2541, 7
        %v2543 = vsub.s32 0, %v2542
        %v2544 = vrot.slane %v2539, %v2543
        %v2550 = vunpack.c.l.b16 %v2535
        %v2551 = vunpack.c.l.b16 %v2536
        %v2552 = vunpack.c.l.b16 %v2537
        %v2553 = vunpack.c.l.b16 %v2538
        %v2554 = vpack.c.b16 %v2551, %v2550
        %v2555 = vpack.c.b16 %v2553, %v2552
        %v2559 = vsel %vm494, %v2531, 0
        %v2562 = vsel %vm494, %v2532, 0
        %v2565 = vsel %vm494, %v2533, 0
        %v2568 = vsel %vm494, %v2534, 0
        %2570 = vmatprep.subr.bf16.mxu0 0
        %2571 = vmatpush1.bf16.msra.mxu0 0
        %2572 = vmatprep.subr.bf16.mxu0 0
        %2573 = vmatpush1.bf16.msra.mxu0 0
        %2574 = vmatprep.subr.bf16.mxu0 0
        %2575 = vmatpush1.bf16.msra.mxu0 0
        %2576 = vmatprep.subr.bf16.mxu0 0
        %2577 = vmatpush1.bf16.msra.mxu0 0
        %2578 = vmatprep.subr.bf16.mxu0 0
        %2579 = vmatpush1.bf16.msra.mxu0 0
        %2580 = vmatprep.subr.bf16.mxu0 0
        %2581 = vmatpush1.bf16.msra.mxu0 0
        %2582 = vmatprep.subr.bf16.mxu0 0
        %2583 = vmatpush1.bf16.msra.mxu0 %v2555
        %2584 = vmatprep.subr.bf16.mxu0 0
        %2585 = vmatpush1.bf16.msra.mxu0 %v2554
        %2586 = vmatprep.subr.bf16.mxu0 0
        %2587 = vmatpush2.bf16.msra.mxu0 0
        %2588 = vmatprep.subr.bf16.mxu0 0
        %2589 = vmatpush2.bf16.msra.mxu0 0
        %2590 = vmatprep.subr.bf16.mxu0 0
        %2591 = vmatpush2.bf16.msra.mxu0 0
        %2592 = vmatprep.subr.bf16.mxu0 0
        %2593 = vmatpush2.bf16.msra.mxu0 0
        %2594 = vmatprep.subr.bf16.mxu0 0
        %2595 = vmatpush2.bf16.msra.mxu0 0
        %2596 = vmatprep.subr.bf16.mxu0 0
        %2597 = vmatpush2.bf16.msra.mxu0 0
        %2598 = vmatprep.subr.bf16.mxu0 0
        %2599 = vmatpush2.bf16.msra.mxu0 0
        %2600 = vmatprep.subr.bf16.mxu0 0
        %2601 = vmatpush2.bf16.msra.mxu0 0
        %2602 = vmatprep.mubr.bf16.mxu0 0
        %2603 = vmatmul.mubr.bf16.gmra.mxu0 %v2559
        %v2604 = vpop.f32.mrf.mxu0
        %v2605 = vadd.f32 %v2544, %v2604
        %v2606 = vpop.f32.mrf.mxu0
        %v2607 = vpop.f32.mrf.mxu0
        %v2608 = vadd.f32 %v2544, %v2607
        %v2609 = vpop.f32.mrf.mxu0
        %2610 = vmatprep.mubr.bf16.mxu0 0
        %2611 = vmatmul.mubr.bf16.gmra.mxu0 %v2562
        %v2612 = vpop.f32.mrf.mxu0
        %v2613 = vadd.f32 %v2544, %v2612
        %v2614 = vpop.f32.mrf.mxu0
        %v2615 = vpop.f32.mrf.mxu0
        %v2616 = vadd.f32 %v2544, %v2615
        %v2617 = vpop.f32.mrf.mxu0
        %2618 = vmatprep.mubr.bf16.mxu0 0
        %2619 = vmatmul.mubr.bf16.gmra.mxu0 %v2565
        %v2620 = vpop.f32.mrf.mxu0
        %v2621 = vadd.f32 %v2544, %v2620
        %v2622 = vpop.f32.mrf.mxu0
        %v2623 = vpop.f32.mrf.mxu0
        %v2624 = vadd.f32 %v2544, %v2623
        %v2625 = vpop.f32.mrf.mxu0
        %2626 = vmatprep.mubr.bf16.mxu0 0
        %2627 = vmatmul.mubr.bf16.gmra.mxu0 %v2568
        %v2628 = vpop.f32.mrf.mxu0
        %v2629 = vadd.f32 %v2544, %v2628
        %v2630 = vpop.f32.mrf.mxu0
        %v2631 = vpop.f32.mrf.mxu0
        %v2632 = vadd.f32 %v2544, %v2631
        %v2633 = vpop.f32.mrf.mxu0
        %2634 = vdwg.mxu0
        %v2635 = vmul.f32 %v2605, 0.70710677
        %v2636 = vmul.f32 %v2608, 0.70710677
        %v2637 = vmul.f32 %v2613, 0.70710677
        %v2638 = vmul.f32 %v2616, 0.70710677
        %v2639 = vmul.f32 %v2621, 0.70710677
        %v2640 = vmul.f32 %v2624, 0.70710677
        %v2641 = vmul.f32 %v2629, 0.70710677
        %v2642 = vmul.f32 %v2632, 0.70710677
        %v2643 = vand.u32 2147483647, %v2635
        %v2644 = vand.u32 2147483647, %v2636
        %v2645 = vand.u32 2147483647, %v2637
        %v2646 = vand.u32 2147483647, %v2638
        %v2647 = vand.u32 2147483647, %v2639
        %v2648 = vand.u32 2147483647, %v2640
        %v2649 = vand.u32 2147483647, %v2641
        %v2650 = vand.u32 2147483647, %v2642
        %v2651 = vmul.f32 %v2643, 0.3275911
        %v2652 = vmul.f32 %v2644, 0.3275911
        %v2653 = vmul.f32 %v2645, 0.3275911
        %v2654 = vmul.f32 %v2646, 0.3275911
        %v2655 = vmul.f32 %v2647, 0.3275911
        %v2656 = vmul.f32 %v2648, 0.3275911
        %v2657 = vmul.f32 %v2649, 0.3275911
        %v2658 = vmul.f32 %v2650, 0.3275911
        %v2659 = vadd.f32 %v2651, 1.0
        %v2660 = vadd.f32 %v2652, 1.0
        %v2661 = vadd.f32 %v2653, 1.0
        %v2662 = vadd.f32 %v2654, 1.0
        %v2663 = vadd.f32 %v2655, 1.0
        %v2664 = vadd.f32 %v2656, 1.0
        %v2665 = vadd.f32 %v2657, 1.0
        %v2666 = vadd.f32 %v2658, 1.0
        %v2667 = vrcp.pop %v2659
        %v2668 = vmul.f32 1.0, %v2667
        %v2669 = vrcp.pop %v2660
        %v2670 = vmul.f32 1.0, %v2669
        %v2671 = vrcp.pop %v2661
        %v2672 = vmul.f32 1.0, %v2671
        %v2673 = vrcp.pop %v2662
        %v2674 = vmul.f32 1.0, %v2673
        %v2675 = vrcp.pop %v2663
        %v2676 = vmul.f32 1.0, %v2675
        %v2677 = vrcp.pop %v2664
        %v2678 = vmul.f32 1.0, %v2677
        %v2679 = vrcp.pop %v2665
        %v2680 = vmul.f32 1.0, %v2679
        %v2681 = vrcp.pop %v2666
        %v2682 = vmul.f32 1.0, %v2681
        %v2683 = vmul.f32 %v2668, 1.0614054
        %v2684 = vmul.f32 %v2670, 1.0614054
        %v2685 = vmul.f32 %v2672, 1.0614054
        %v2686 = vmul.f32 %v2674, 1.0614054
        %v2687 = vmul.f32 %v2676, 1.0614054
        %v2688 = vmul.f32 %v2678, 1.0614054
        %v2689 = vmul.f32 %v2680, 1.0614054
        %v2690 = vmul.f32 %v2682, 1.0614054
        %v2691 = vadd.f32 %v2683, -1.4531521
        %v2692 = vadd.f32 %v2684, -1.4531521
        %v2693 = vadd.f32 %v2685, -1.4531521
        %v2694 = vadd.f32 %v2686, -1.4531521
        %v2695 = vadd.f32 %v2687, -1.4531521
        %v2696 = vadd.f32 %v2688, -1.4531521
        %v2697 = vadd.f32 %v2689, -1.4531521
        %v2698 = vadd.f32 %v2690, -1.4531521
        %v2699 = vmul.f32 %v2691, %v2668
        %v2700 = vmul.f32 %v2692, %v2670
        %v2701 = vmul.f32 %v2693, %v2672
        %v2702 = vmul.f32 %v2694, %v2674
        %v2703 = vmul.f32 %v2695, %v2676
        %v2704 = vmul.f32 %v2696, %v2678
        %v2705 = vmul.f32 %v2697, %v2680
        %v2706 = vmul.f32 %v2698, %v2682
        %v2707 = vadd.f32 %v2699, 1.4214138
        %v2708 = vadd.f32 %v2700, 1.4214138
        %v2709 = vadd.f32 %v2701, 1.4214138
        %v2710 = vadd.f32 %v2702, 1.4214138
        %v2711 = vadd.f32 %v2703, 1.4214138
        %v2712 = vadd.f32 %v2704, 1.4214138
        %v2713 = vadd.f32 %v2705, 1.4214138
        %v2714 = vadd.f32 %v2706, 1.4214138
        %v2715 = vmul.f32 %v2707, %v2668
        %v2716 = vmul.f32 %v2708, %v2670
        %v2717 = vmul.f32 %v2709, %v2672
        %v2718 = vmul.f32 %v2710, %v2674
        %v2719 = vmul.f32 %v2711, %v2676
        %v2720 = vmul.f32 %v2712, %v2678
        %v2721 = vmul.f32 %v2713, %v2680
        %v2722 = vmul.f32 %v2714, %v2682
        %v2723 = vadd.f32 %v2715, -0.28449672
        %v2724 = vadd.f32 %v2716, -0.28449672
        %v2725 = vadd.f32 %v2717, -0.28449672
        %v2726 = vadd.f32 %v2718, -0.28449672
        %v2727 = vadd.f32 %v2719, -0.28449672
        %v2728 = vadd.f32 %v2720, -0.28449672
        %v2729 = vadd.f32 %v2721, -0.28449672
        %v2730 = vadd.f32 %v2722, -0.28449672
        %v2731 = vmul.f32 %v2723, %v2668
        %v2732 = vmul.f32 %v2724, %v2670
        %v2733 = vmul.f32 %v2725, %v2672
        %v2734 = vmul.f32 %v2726, %v2674
        %v2735 = vmul.f32 %v2727, %v2676
        %v2736 = vmul.f32 %v2728, %v2678
        %v2737 = vmul.f32 %v2729, %v2680
        %v2738 = vmul.f32 %v2730, %v2682
        %v2739 = vadd.f32 %v2731, 0.2548296
        %v2740 = vadd.f32 %v2732, 0.2548296
        %v2741 = vadd.f32 %v2733, 0.2548296
        %v2742 = vadd.f32 %v2734, 0.2548296
        %v2743 = vadd.f32 %v2735, 0.2548296
        %v2744 = vadd.f32 %v2736, 0.2548296
        %v2745 = vadd.f32 %v2737, 0.2548296
        %v2746 = vadd.f32 %v2738, 0.2548296
        %v2747 = vmul.f32 %v2739, %v2668
        %v2748 = vmul.f32 %v2740, %v2670
        %v2749 = vmul.f32 %v2741, %v2672
        %v2750 = vmul.f32 %v2742, %v2674
        %v2751 = vmul.f32 %v2743, %v2676
        %v2752 = vmul.f32 %v2744, %v2678
        %v2753 = vmul.f32 %v2745, %v2680
        %v2754 = vmul.f32 %v2746, %v2682
        %v2755 = vsub.f32 0.0, %v2643
        %v2756 = vsub.f32 0.0, %v2644
        %v2757 = vsub.f32 0.0, %v2645
        %v2758 = vsub.f32 0.0, %v2646
        %v2759 = vsub.f32 0.0, %v2647
        %v2760 = vsub.f32 0.0, %v2648
        %v2761 = vsub.f32 0.0, %v2649
        %v2762 = vsub.f32 0.0, %v2650
        %v2763 = vmul.f32 %v2755, %v2643
        %v2764 = vmul.f32 %v2756, %v2644
        %v2765 = vmul.f32 %v2757, %v2645
        %v2766 = vmul.f32 %v2758, %v2646
        %v2767 = vmul.f32 %v2759, %v2647
        %v2768 = vmul.f32 %v2760, %v2648
        %v2769 = vmul.f32 %v2761, %v2649
        %v2770 = vmul.f32 %v2762, %v2650
        %v2771 = vmul.f32 %v2763, 1.442695
        %v2772 = vpow.pop %v2771
        %v2773 = vmul.f32 %v2764, 1.442695
        %v2774 = vpow.pop %v2773
        %v2775 = vmul.f32 %v2765, 1.442695
        %v2776 = vpow.pop %v2775
        %v2777 = vmul.f32 %v2766, 1.442695
        %v2778 = vpow.pop %v2777
        %v2779 = vmul.f32 %v2767, 1.442695
        %v2780 = vpow.pop %v2779
        %v2781 = vmul.f32 %v2768, 1.442695
        %v2782 = vpow.pop %v2781
        %v2783 = vmul.f32 %v2769, 1.442695
        %v2784 = vpow.pop %v2783
        %v2785 = vmul.f32 %v2770, 1.442695
        %v2786 = vpow.pop %v2785
        %v2787 = vmul.f32 %v2747, %v2772
        %v2788 = vmul.f32 %v2748, %v2774
        %v2789 = vmul.f32 %v2749, %v2776
        %v2790 = vmul.f32 %v2750, %v2778
        %v2791 = vmul.f32 %v2751, %v2780
        %v2792 = vmul.f32 %v2752, %v2782
        %v2793 = vmul.f32 %v2753, %v2784
        %v2794 = vmul.f32 %v2754, %v2786
        %v2795 = vsub.f32 1.0, %v2787
        %v2796 = vsub.f32 1.0, %v2788
        %v2797 = vsub.f32 1.0, %v2789
        %v2798 = vsub.f32 1.0, %v2790
        %v2799 = vsub.f32 1.0, %v2791
        %v2800 = vsub.f32 1.0, %v2792
        %v2801 = vsub.f32 1.0, %v2793
        %v2802 = vsub.f32 1.0, %v2794
        %vm2803 = vcmp.ge.f32.partialorder %v2635, 0.0
        %vm2804 = vcmp.ge.f32.partialorder %v2636, 0.0
        %vm2805 = vcmp.ge.f32.partialorder %v2637, 0.0
        %vm2806 = vcmp.ge.f32.partialorder %v2638, 0.0
        %vm2807 = vcmp.ge.f32.partialorder %v2639, 0.0
        %vm2808 = vcmp.ge.f32.partialorder %v2640, 0.0
        %vm2809 = vcmp.ge.f32.partialorder %v2641, 0.0
        %vm2810 = vcmp.ge.f32.partialorder %v2642, 0.0
        %v2811 = vsub.f32 0.0, %v2795
        %v2812 = vsub.f32 0.0, %v2796
        %v2813 = vsub.f32 0.0, %v2797
        %v2814 = vsub.f32 0.0, %v2798
        %v2815 = vsub.f32 0.0, %v2799
        %v2816 = vsub.f32 0.0, %v2800
        %v2817 = vsub.f32 0.0, %v2801
        %v2818 = vsub.f32 0.0, %v2802
        %v2819 = vsel %vm2803, %v2795, %v2811
        %v2820 = vsel %vm2804, %v2796, %v2812
        %v2821 = vsel %vm2805, %v2797, %v2813
        %v2822 = vsel %vm2806, %v2798, %v2814
        %v2823 = vsel %vm2807, %v2799, %v2815
        %v2824 = vsel %vm2808, %v2800, %v2816
        %v2825 = vsel %vm2809, %v2801, %v2817
        %v2826 = vsel %vm2810, %v2802, %v2818
        %v2827 = vmul.f32 %v2605, 0.5
        %v2828 = vmul.f32 %v2608, 0.5
        %v2829 = vmul.f32 %v2613, 0.5
        %v2830 = vmul.f32 %v2616, 0.5
        %v2831 = vmul.f32 %v2621, 0.5
        %v2832 = vmul.f32 %v2624, 0.5
        %v2833 = vmul.f32 %v2629, 0.5
        %v2834 = vmul.f32 %v2632, 0.5
        %v2835 = vadd.f32 %v2819, 1.0
        %v2836 = vadd.f32 %v2820, 1.0
        %v2837 = vadd.f32 %v2821, 1.0
        %v2838 = vadd.f32 %v2822, 1.0
        %v2839 = vadd.f32 %v2823, 1.0
        %v2840 = vadd.f32 %v2824, 1.0
        %v2841 = vadd.f32 %v2825, 1.0
        %v2842 = vadd.f32 %v2826, 1.0
        %v2843 = vmul.f32 %v2827, %v2835
        %v2844 = vmul.f32 %v2828, %v2836
        %v2845 = vmul.f32 %v2829, %v2837
        %v2846 = vmul.f32 %v2830, %v2838
        %v2847 = vmul.f32 %v2831, %v2839
        %v2848 = vmul.f32 %v2832, %v2840
        %v2849 = vmul.f32 %v2833, %v2841
        %v2850 = vmul.f32 %v2834, %v2842
        %v2851 = vpack.c.bf16 %v2844, %v2843
        %v2852 = vpack.c.bf16 %v2846, %v2845
        %v2853 = vpack.c.bf16 %v2848, %v2847
        %v2854 = vpack.c.bf16 %v2850, %v2849
        %v2855 = vld [vmem:[%s11] sm:$0xf]
        %v2856 = vld [vmem:[%s11 + $0x4] sm:$0xf]
        %v2857 = vld [vmem:[%s11 + $0x8] sm:$0xf]
        %v2858 = vld [vmem:[%s11 + $0xc] sm:$0xf]
        %v2859 = vld [vmem:[%s11 + $0x10] sm:$0xf]
        %v2860 = vld [vmem:[%s11 + $0x14] sm:$0xf]
        %v2861 = vld [vmem:[%s11 + $0x18] sm:$0xf]
        %v2862 = vld [vmem:[%s11 + $0x1c] sm:$0xf]
        %v2863 = vld [vmem:[%s11 + $0x20] sm:$0xf]
        %v2864 = vld [vmem:[%s11 + $0x24] sm:$0xf]
        %v2865 = vld [vmem:[%s11 + $0x28] sm:$0xf]
        %v2866 = vld [vmem:[%s11 + $0x2c] sm:$0xf]
        %v2867 = vld [vmem:[%s11 + $0x30] sm:$0xf]
        %v2868 = vld [vmem:[%s11 + $0x34] sm:$0xf]
        %v2869 = vld [vmem:[%s11 + $0x38] sm:$0xf]
        %v2870 = vld [vmem:[%s11 + $0x3c] sm:$0xf]
        %v2871 = vld [vmem:[%s12] sm:$0x1]
        %v2873 = vlaneseq
        %v2874 = vshrl.u32 %v2873, 7
        %v2875 = vsub.s32 0, %v2874
        %v2876 = vrot.slane %v2871, %v2875
        %v2894 = vunpack.c.l.b16 %v2855
        %v2895 = vunpack.c.l.b16 %v2856
        %v2896 = vunpack.c.l.b16 %v2857
        %v2897 = vunpack.c.l.b16 %v2858
        %v2898 = vunpack.c.l.b16 %v2859
        %v2899 = vunpack.c.l.b16 %v2860
        %v2900 = vunpack.c.l.b16 %v2861
        %v2901 = vunpack.c.l.b16 %v2862
        %v2902 = vunpack.c.l.b16 %v2863
        %v2903 = vunpack.c.l.b16 %v2864
        %v2904 = vunpack.c.l.b16 %v2865
        %v2905 = vunpack.c.l.b16 %v2866
        %v2906 = vunpack.c.l.b16 %v2867
        %v2907 = vunpack.c.l.b16 %v2868
        %v2908 = vunpack.c.l.b16 %v2869
        %v2909 = vunpack.c.l.b16 %v2870
        %v2910 = vpack.c.b16 %v2895, %v2894
        %v2911 = vpack.c.b16 %v2897, %v2896
        %v2912 = vpack.c.b16 %v2899, %v2898
        %v2913 = vpack.c.b16 %v2901, %v2900
        %v2914 = vpack.c.b16 %v2903, %v2902
        %v2915 = vpack.c.b16 %v2905, %v2904
        %v2916 = vpack.c.b16 %v2907, %v2906
        %v2917 = vpack.c.b16 %v2909, %v2908
        %2926 = vmatprep.subr.bf16.mxu0 0
        %2927 = vmatpush1.bf16.msra.mxu0 %v2917
        %2928 = vmatprep.subr.bf16.mxu0 0
        %2929 = vmatpush1.bf16.msra.mxu0 %v2916
        %2930 = vmatprep.subr.bf16.mxu0 0
        %2931 = vmatpush1.bf16.msra.mxu0 %v2915
        %2932 = vmatprep.subr.bf16.mxu0 0
        %2933 = vmatpush1.bf16.msra.mxu0 %v2914
        %2934 = vmatprep.subr.bf16.mxu0 0
        %2935 = vmatpush1.bf16.msra.mxu0 %v2913
        %2936 = vmatprep.subr.bf16.mxu0 0
        %2937 = vmatpush1.bf16.msra.mxu0 %v2912
        %2938 = vmatprep.subr.bf16.mxu0 0
        %2939 = vmatpush1.bf16.msra.mxu0 %v2911
        %2940 = vmatprep.subr.bf16.mxu0 0
        %2941 = vmatpush1.bf16.msra.mxu0 %v2910
        %2942 = vmatprep.subr.bf16.mxu0 0
        %2943 = vmatpush2.bf16.msra.mxu0 0
        %2944 = vmatprep.subr.bf16.mxu0 0
        %2945 = vmatpush2.bf16.msra.mxu0 0
        %2946 = vmatprep.subr.bf16.mxu0 0
        %2947 = vmatpush2.bf16.msra.mxu0 0
        %2948 = vmatprep.subr.bf16.mxu0 0
        %2949 = vmatpush2.bf16.msra.mxu0 0
        %2950 = vmatprep.subr.bf16.mxu0 0
        %2951 = vmatpush2.bf16.msra.mxu0 0
        %2952 = vmatprep.subr.bf16.mxu0 0
        %2953 = vmatpush2.bf16.msra.mxu0 0
        %2954 = vmatprep.subr.bf16.mxu0 0
        %2955 = vmatpush2.bf16.msra.mxu0 0
        %2956 = vmatprep.subr.bf16.mxu0 0
        %2957 = vmatpush2.bf16.msra.mxu0 0
        %2958 = vmatprep.mubr.bf16.mxu0 0
        %2959 = vmatmul.mubr.bf16.gmra.mxu0 %v2851
        %v2960 = vpop.f32.mrf.mxu0
        %v2961 = vadd.f32 %v2876, %v2960
        %v2962 = vpop.f32.mrf.mxu0
        %v2963 = vpop.f32.mrf.mxu0
        %v2964 = vadd.f32 %v2876, %v2963
        %v2965 = vpop.f32.mrf.mxu0
        %2966 = vmatprep.mubr.bf16.mxu0 0
        %2967 = vmatmul.mubr.bf16.gmra.mxu0 %v2852
        %v2968 = vpop.f32.mrf.mxu0
        %v2969 = vadd.f32 %v2876, %v2968
        %v2970 = vpop.f32.mrf.mxu0
        %v2971 = vpop.f32.mrf.mxu0
        %v2972 = vadd.f32 %v2876, %v2971
        %v2973 = vpop.f32.mrf.mxu0
        %2974 = vmatprep.mubr.bf16.mxu0 0
        %2975 = vmatmul.mubr.bf16.gmra.mxu0 %v2853
        %v2976 = vpop.f32.mrf.mxu0
        %v2977 = vadd.f32 %v2876, %v2976
        %v2978 = vpop.f32.mrf.mxu0
        %v2979 = vpop.f32.mrf.mxu0
        %v2980 = vadd.f32 %v2876, %v2979
        %v2981 = vpop.f32.mrf.mxu0
        %2982 = vmatprep.mubr.bf16.mxu0 0
        %2983 = vmatmul.mubr.bf16.gmra.mxu0 %v2854
        %v2984 = vpop.f32.mrf.mxu0
        %v2985 = vadd.f32 %v2876, %v2984
        %v2986 = vpop.f32.mrf.mxu0
        %v2987 = vpop.f32.mrf.mxu0
        %v2988 = vadd.f32 %v2876, %v2987
        %v2989 = vpop.f32.mrf.mxu0
        %2990 = vdwg.mxu0
        %v2991 = vadd.f32 %v2389, %v2961
        %v2992 = vadd.f32 %v2390, %v2964
        %v2993 = vadd.f32 %v2391, %v2969
        %v2994 = vadd.f32 %v2392, %v2972
        %v2995 = vadd.f32 %v2393, %v2977
        %v2996 = vadd.f32 %v2394, %v2980
        %v2997 = vadd.f32 %v2395, %v2985
        %v2998 = vadd.f32 %v2396, %v2988
        %s2999 = scalar_lea.vmem %s1, 1
        %v3000 = vld [vmem:[%s2999] sm:$0x1]
        %s3001 = scalar_lea.vmem %s2, 1
        %v3002 = vld [vmem:[%s3001] sm:$0x1]
        %v3003 = vsel %vm494, %v2991, 0.0
        %3004 = vadd.xlane.f32.xlu0 %v3003
        %v3005 = vpop.xlane.xlu0 %3004
        %v3006 = vsel %vm494, %v2992, 0.0
        %3007 = vadd.xlane.f32.xlu0 %v3006
        %v3008 = vpop.xlane.xlu0 %3007
        %v3009 = vsel %vm494, %v2993, 0.0
        %3010 = vadd.xlane.f32.xlu0 %v3009
        %v3011 = vpop.xlane.xlu0 %3010
        %v3012 = vsel %vm494, %v2994, 0.0
        %3013 = vadd.xlane.f32.xlu0 %v3012
        %v3014 = vpop.xlane.xlu0 %3013
        %v3015 = vsel %vm494, %v2995, 0.0
        %3016 = vadd.xlane.f32.xlu0 %v3015
        %v3017 = vpop.xlane.xlu0 %3016
        %v3018 = vsel %vm494, %v2996, 0.0
        %3019 = vadd.xlane.f32.xlu0 %v3018
        %v3020 = vpop.xlane.xlu0 %3019
        %v3021 = vsel %vm494, %v2997, 0.0
        %3022 = vadd.xlane.f32.xlu0 %v3021
        %v3023 = vpop.xlane.xlu0 %3022
        %v3024 = vsel %vm494, %v2998, 0.0
        %3025 = vadd.xlane.f32.xlu0 %v3024
        %v3026 = vpop.xlane.xlu0 %3025
        %v3027 = vmul.f32 %v3005, %v519
        %v3028 = vmul.f32 %v3008, %v519
        %v3029 = vmul.f32 %v3011, %v519
        %v3030 = vmul.f32 %v3014, %v519
        %v3031 = vmul.f32 %v3017, %v519
        %v3032 = vmul.f32 %v3020, %v519
        %v3033 = vmul.f32 %v3023, %v519
        %v3034 = vmul.f32 %v3026, %v519
        %v3035 = vsub.f32 %v2991, %v3027
        %v3036 = vsub.f32 %v2992, %v3028
        %v3037 = vsub.f32 %v2993, %v3029
        %v3038 = vsub.f32 %v2994, %v3030
        %v3039 = vsub.f32 %v2995, %v3031
        %v3040 = vsub.f32 %v2996, %v3032
        %v3041 = vsub.f32 %v2997, %v3033
        %v3042 = vsub.f32 %v2998, %v3034
        %v3043 = vmul.f32 %v3035, %v3035
        %v3044 = vmul.f32 %v3036, %v3036
        %v3045 = vmul.f32 %v3037, %v3037
        %v3046 = vmul.f32 %v3038, %v3038
        %v3047 = vmul.f32 %v3039, %v3039
        %v3048 = vmul.f32 %v3040, %v3040
        %v3049 = vmul.f32 %v3041, %v3041
        %v3050 = vmul.f32 %v3042, %v3042
        %v3051 = vsel %vm494, %v3043, 0.0
        %3052 = vadd.xlane.f32.xlu0 %v3051
        %v3053 = vpop.xlane.xlu0 %3052
        %v3054 = vsel %vm494, %v3044, 0.0
        %3055 = vadd.xlane.f32.xlu0 %v3054
        %v3056 = vpop.xlane.xlu0 %3055
        %v3057 = vsel %vm494, %v3045, 0.0
        %3058 = vadd.xlane.f32.xlu0 %v3057
        %v3059 = vpop.xlane.xlu0 %3058
        %v3060 = vsel %vm494, %v3046, 0.0
        %3061 = vadd.xlane.f32.xlu0 %v3060
        %v3062 = vpop.xlane.xlu0 %3061
        %v3063 = vsel %vm494, %v3047, 0.0
        %3064 = vadd.xlane.f32.xlu0 %v3063
        %v3065 = vpop.xlane.xlu0 %3064
        %v3066 = vsel %vm494, %v3048, 0.0
        %3067 = vadd.xlane.f32.xlu0 %v3066
        %v3068 = vpop.xlane.xlu0 %3067
        %v3069 = vsel %vm494, %v3049, 0.0
        %3070 = vadd.xlane.f32.xlu0 %v3069
        %v3071 = vpop.xlane.xlu0 %3070
        %v3072 = vsel %vm494, %v3050, 0.0
        %3073 = vadd.xlane.f32.xlu0 %v3072
        %v3074 = vpop.xlane.xlu0 %3073
        %v3075 = vmul.f32 %v3053, %v519
        %v3076 = vmul.f32 %v3056, %v519
        %v3077 = vmul.f32 %v3059, %v519
        %v3078 = vmul.f32 %v3062, %v519
        %v3079 = vmul.f32 %v3065, %v519
        %v3080 = vmul.f32 %v3068, %v519
        %v3081 = vmul.f32 %v3071, %v519
        %v3082 = vmul.f32 %v3074, %v519
        %v3083 = vadd.f32 %v3075, 1e-05
        %v3084 = vadd.f32 %v3076, 1e-05
        %v3085 = vadd.f32 %v3077, 1e-05
        %v3086 = vadd.f32 %v3078, 1e-05
        %v3087 = vadd.f32 %v3079, 1e-05
        %v3088 = vadd.f32 %v3080, 1e-05
        %v3089 = vadd.f32 %v3081, 1e-05
        %v3090 = vadd.f32 %v3082, 1e-05
        %v3091 = vrsqrt.pop %v3083
        %v3092 = vrsqrt.pop %v3084
        %v3093 = vrsqrt.pop %v3085
        %v3094 = vrsqrt.pop %v3086
        %v3095 = vrsqrt.pop %v3087
        %v3096 = vrsqrt.pop %v3088
        %v3097 = vrsqrt.pop %v3089
        %v3098 = vrsqrt.pop %v3090
        %v3099 = vmul.f32 %v3035, %v3091
        %v3100 = vmul.f32 %v3036, %v3092
        %v3101 = vmul.f32 %v3037, %v3093
        %v3102 = vmul.f32 %v3038, %v3094
        %v3103 = vmul.f32 %v3039, %v3095
        %v3104 = vmul.f32 %v3040, %v3096
        %v3105 = vmul.f32 %v3041, %v3097
        %v3106 = vmul.f32 %v3042, %v3098
        %v3108 = vlaneseq
        %v3109 = vshrl.u32 %v3108, 7
        %v3110 = vsub.s32 0, %v3109
        %v3111 = vrot.slane %v3000, %v3110
        %v3113 = vmul.f32 %v3099, %v3111
        %v3114 = vmul.f32 %v3100, %v3111
        %v3115 = vmul.f32 %v3101, %v3111
        %v3116 = vmul.f32 %v3102, %v3111
        %v3117 = vmul.f32 %v3103, %v3111
        %v3118 = vmul.f32 %v3104, %v3111
        %v3119 = vmul.f32 %v3105, %v3111
        %v3120 = vmul.f32 %v3106, %v3111
        %v3122 = vlaneseq
        %v3123 = vshrl.u32 %v3122, 7
        %v3124 = vsub.s32 0, %v3123
        %v3125 = vrot.slane %v3002, %v3124
        %v3127 = vadd.f32 %v3113, %v3125
        %v3128 = vadd.f32 %v3114, %v3125
        %v3129 = vadd.f32 %v3115, %v3125
        %v3130 = vadd.f32 %v3116, %v3125
        %v3131 = vadd.f32 %v3117, %v3125
        %v3132 = vadd.f32 %v3118, %v3125
        %v3133 = vadd.f32 %v3119, %v3125
        %v3134 = vadd.f32 %v3120, %v3125
        %v3135 = vpack.c.bf16 %v3128, %v3127
        %v3136 = vpack.c.bf16 %v3130, %v3129
        %v3137 = vpack.c.bf16 %v3132, %v3131
        %v3138 = vpack.c.bf16 %v3134, %v3133
        %s3139 = scalar_lea.vmem %s3, 16
        %v3140 = vld [vmem:[%s3139] sm:$0xf]
        %v3141 = vld [vmem:[%s3139 + $0x4] sm:$0xf]
        %v3142 = vld [vmem:[%s3139 + $0x8] sm:$0xf]
        %v3143 = vld [vmem:[%s3139 + $0xc] sm:$0xf]
        %s3144 = scalar_lea.vmem %s4, 1
        %v3145 = vld [vmem:[%s3144] sm:$0x1]
        %v3147 = vlaneseq
        %v3148 = vshrl.u32 %v3147, 7
        %v3149 = vsub.s32 0, %v3148
        %v3150 = vrot.slane %v3145, %v3149
        %v3156 = vunpack.c.l.b16 %v3140
        %v3157 = vunpack.c.l.b16 %v3141
        %v3158 = vunpack.c.l.b16 %v3142
        %v3159 = vunpack.c.l.b16 %v3143
        %v3160 = vpack.c.b16 %v3157, %v3156
        %v3161 = vpack.c.b16 %v3159, %v3158
        %v3165 = vsel %vm494, %v3135, 0
        %v3168 = vsel %vm494, %v3136, 0
        %v3171 = vsel %vm494, %v3137, 0
        %v3174 = vsel %vm494, %v3138, 0
        %3176 = vmatprep.subr.bf16.mxu0 0
        %3177 = vmatpush1.bf16.msra.mxu0 0
        %3178 = vmatprep.subr.bf16.mxu0 0
        %3179 = vmatpush1.bf16.msra.mxu0 0
        %3180 = vmatprep.subr.bf16.mxu0 0
        %3181 = vmatpush1.bf16.msra.mxu0 0
        %3182 = vmatprep.subr.bf16.mxu0 0
        %3183 = vmatpush1.bf16.msra.mxu0 0
        %3184 = vmatprep.subr.bf16.mxu0 0
        %3185 = vmatpush1.bf16.msra.mxu0 0
        %3186 = vmatprep.subr.bf16.mxu0 0
        %3187 = vmatpush1.bf16.msra.mxu0 0
        %3188 = vmatprep.subr.bf16.mxu0 0
        %3189 = vmatpush1.bf16.msra.mxu0 %v3161
        %3190 = vmatprep.subr.bf16.mxu0 0
        %3191 = vmatpush1.bf16.msra.mxu0 %v3160
        %3192 = vmatprep.subr.bf16.mxu0 0
        %3193 = vmatpush2.bf16.msra.mxu0 0
        %3194 = vmatprep.subr.bf16.mxu0 0
        %3195 = vmatpush2.bf16.msra.mxu0 0
        %3196 = vmatprep.subr.bf16.mxu0 0
        %3197 = vmatpush2.bf16.msra.mxu0 0
        %3198 = vmatprep.subr.bf16.mxu0 0
        %3199 = vmatpush2.bf16.msra.mxu0 0
        %3200 = vmatprep.subr.bf16.mxu0 0
        %3201 = vmatpush2.bf16.msra.mxu0 0
        %3202 = vmatprep.subr.bf16.mxu0 0
        %3203 = vmatpush2.bf16.msra.mxu0 0
        %3204 = vmatprep.subr.bf16.mxu0 0
        %3205 = vmatpush2.bf16.msra.mxu0 0
        %3206 = vmatprep.subr.bf16.mxu0 0
        %3207 = vmatpush2.bf16.msra.mxu0 0
        %3208 = vmatprep.mubr.bf16.mxu0 0
        %3209 = vmatmul.mubr.bf16.gmra.mxu0 %v3165
        %v3210 = vpop.f32.mrf.mxu0
        %v3211 = vadd.f32 %v3150, %v3210
        %v3212 = vpop.f32.mrf.mxu0
        %v3213 = vpop.f32.mrf.mxu0
        %v3214 = vadd.f32 %v3150, %v3213
        %v3215 = vpop.f32.mrf.mxu0
        %3216 = vmatprep.mubr.bf16.mxu0 0
        %3217 = vmatmul.mubr.bf16.gmra.mxu0 %v3168
        %v3218 = vpop.f32.mrf.mxu0
        %v3219 = vadd.f32 %v3150, %v3218
        %v3220 = vpop.f32.mrf.mxu0
        %v3221 = vpop.f32.mrf.mxu0
        %v3222 = vadd.f32 %v3150, %v3221
        %v3223 = vpop.f32.mrf.mxu0
        %3224 = vmatprep.mubr.bf16.mxu0 0
        %3225 = vmatmul.mubr.bf16.gmra.mxu0 %v3171
        %v3226 = vpop.f32.mrf.mxu0
        %v3227 = vadd.f32 %v3150, %v3226
        %v3228 = vpop.f32.mrf.mxu0
        %v3229 = vpop.f32.mrf.mxu0
        %v3230 = vadd.f32 %v3150, %v3229
        %v3231 = vpop.f32.mrf.mxu0
        %3232 = vmatprep.mubr.bf16.mxu0 0
        %3233 = vmatmul.mubr.bf16.gmra.mxu0 %v3174
        %v3234 = vpop.f32.mrf.mxu0
        %v3235 = vadd.f32 %v3150, %v3234
        %v3236 = vpop.f32.mrf.mxu0
        %v3237 = vpop.f32.mrf.mxu0
        %v3238 = vadd.f32 %v3150, %v3237
        %v3239 = vpop.f32.mrf.mxu0
        %3240 = vdwg.mxu0
        %v3241 = vpack.c.bf16 %v3214, %v3211
        %v3242 = vpack.c.bf16 %v3222, %v3219
        %v3243 = vpack.c.bf16 %v3230, %v3227
        %v3244 = vpack.c.bf16 %v3238, %v3235
        %3253 = vrot.lane.b32.xlu0 %v3211, 96
        %v3254 = vpop.permute.xlu0 %3253
        %3255 = vrot.lane.b32.xlu0 %v3214, 96
        %v3256 = vpop.permute.xlu0 %3255
        %3257 = vrot.lane.b32.xlu0 %v3219, 96
        %v3258 = vpop.permute.xlu0 %3257
        %3259 = vrot.lane.b32.xlu0 %v3222, 96
        %v3260 = vpop.permute.xlu0 %3259
        %3261 = vrot.lane.b32.xlu0 %v3227, 96
        %v3262 = vpop.permute.xlu0 %3261
        %3263 = vrot.lane.b32.xlu0 %v3230, 96
        %v3264 = vpop.permute.xlu0 %3263
        %3265 = vrot.lane.b32.xlu0 %v3235, 96
        %v3266 = vpop.permute.xlu0 %3265
        %3267 = vrot.lane.b32.xlu0 %v3238, 96
        %v3268 = vpop.permute.xlu0 %3267
        %3277 = vxpose.xlu0.b32.start [1/16] %v3254, 128
        %3278 = vxpose.xlu0.b32.cont [2/16] %v3256, 128
        %3279 = vxpose.xlu0.b32.cont [3/16] %v3258, 128
        %3280 = vxpose.xlu0.b32.cont [4/16] %v3260, 128
        %3281 = vxpose.xlu0.b32.cont [5/16] %v3262, 128
        %3282 = vxpose.xlu0.b32.cont [6/16] %v3264, 128
        %3283 = vxpose.xlu0.b32.cont [7/16] %v3266, 128
        %3284 = vxpose.xlu0.b32.cont [8/16] %v3268, 128
        %3285 = vxpose.xlu0.b32.cont [9/16] 0.0, 128
        %3286 = vxpose.xlu0.b32.cont [10/16] 0.0, 128
        %3287 = vxpose.xlu0.b32.cont [11/16] 0.0, 128
        %3288 = vxpose.xlu0.b32.cont [12/16] 0.0, 128
        %3289 = vxpose.xlu0.b32.cont [13/16] 0.0, 128
        %3290 = vxpose.xlu0.b32.cont [14/16] 0.0, 128
        %3291 = vxpose.xlu0.b32.cont [15/16] 0.0, 128
        %3292 = vxpose.xlu0.b32.end [16/16] 0.0, 128
        %v3293 = vpop.trf.xlu0
        %v3294 = vpop.trf.xlu0
        %v3295 = vpop.trf.xlu0
        %v3296 = vpop.trf.xlu0
        %v3297 = vpop.trf.xlu0
        %v3298 = vpop.trf.xlu0
        %v3299 = vpop.trf.xlu0
        %v3300 = vpop.trf.xlu0
        %v3301 = vpop.trf.xlu0
        %v3302 = vpop.trf.xlu0
        %v3303 = vpop.trf.xlu0
        %v3304 = vpop.trf.xlu0
        %v3305 = vpop.trf.xlu0
        %v3306 = vpop.trf.xlu0
        %v3307 = vpop.trf.xlu0
        %v3308 = vpop.trf.xlu0
        %v3309 = vpack.c.bf16 %v3293, %v3293
        %v3311 = vsel %vm801, %v3241, 0
        %v3314 = vsel %vm801, %v3242, 0
        %v3317 = vsel %vm801, %v3243, 0
        %v3320 = vsel %vm801, %v3244, 0
        %v3323 = vsel %vm814, %v3309, 0
        %3325 = vmatprep.subr.bf16.mxu0 0
        %3326 = vmatpush1.bf16.msra.mxu0 0
        %3327 = vmatprep.subr.bf16.mxu0 0
        %3328 = vmatpush1.bf16.msra.mxu0 0
        %3329 = vmatprep.subr.bf16.mxu0 0
        %3330 = vmatpush1.bf16.msra.mxu0 0
        %3331 = vmatprep.subr.bf16.mxu0 0
        %3332 = vmatpush1.bf16.msra.mxu0 0
        %3333 = vmatprep.subr.bf16.mxu0 0
        %3334 = vmatpush1.bf16.msra.mxu0 0
        %3335 = vmatprep.subr.bf16.mxu0 0
        %3336 = vmatpush1.bf16.msra.mxu0 0
        %3337 = vmatprep.subr.bf16.mxu0 0
        %3338 = vmatpush1.bf16.msra.mxu0 0
        %3339 = vmatprep.subr.bf16.mxu0 0
        %3340 = vmatpush1.bf16.msra.mxu0 %v3323
        %3341 = vmatprep.subr.bf16.mxu0 0
        %3342 = vmatpush2.bf16.msra.mxu0 0
        %3343 = vmatprep.subr.bf16.mxu0 0
        %3344 = vmatpush2.bf16.msra.mxu0 0
        %3345 = vmatprep.subr.bf16.mxu0 0
        %3346 = vmatpush2.bf16.msra.mxu0 0
        %3347 = vmatprep.subr.bf16.mxu0 0
        %3348 = vmatpush2.bf16.msra.mxu0 0
        %3349 = vmatprep.subr.bf16.mxu0 0
        %3350 = vmatpush2.bf16.msra.mxu0 0
        %3351 = vmatprep.subr.bf16.mxu0 0
        %3352 = vmatpush2.bf16.msra.mxu0 0
        %3353 = vmatprep.subr.bf16.mxu0 0
        %3354 = vmatpush2.bf16.msra.mxu0 0
        %3355 = vmatprep.subr.bf16.mxu0 0
        %3356 = vmatpush2.bf16.msra.mxu0 0
        %3357 = vmatprep.mubr.bf16.mxu0 0
        %3358 = vmatmul.mubr.bf16.gmra.mxu0 %v3311
        %v3359 = vpop.f32.mrf.mxu0
        %v3360 = vadd.f32 0.0, %v3359
        %v3361 = vpop.f32.mrf.mxu0
        %v3362 = vpop.f32.mrf.mxu0
        %v3363 = vadd.f32 0.0, %v3362
        %v3364 = vpop.f32.mrf.mxu0
        %3365 = vmatprep.mubr.bf16.mxu0 0
        %3366 = vmatmul.mubr.bf16.gmra.mxu0 %v3314
        %v3367 = vpop.f32.mrf.mxu0
        %v3368 = vadd.f32 0.0, %v3367
        %v3369 = vpop.f32.mrf.mxu0
        %v3370 = vpop.f32.mrf.mxu0
        %v3371 = vadd.f32 0.0, %v3370
        %v3372 = vpop.f32.mrf.mxu0
        %3373 = vmatprep.mubr.bf16.mxu0 0
        %3374 = vmatmul.mubr.bf16.gmra.mxu0 %v3317
        %v3375 = vpop.f32.mrf.mxu0
        %v3376 = vadd.f32 0.0, %v3375
        %v3377 = vpop.f32.mrf.mxu0
        %v3378 = vpop.f32.mrf.mxu0
        %v3379 = vadd.f32 0.0, %v3378
        %v3380 = vpop.f32.mrf.mxu0
        %3381 = vmatprep.mubr.bf16.mxu0 0
        %3382 = vmatmul.mubr.bf16.gmra.mxu0 %v3320
        %v3383 = vpop.f32.mrf.mxu0
        %v3384 = vadd.f32 0.0, %v3383
        %v3385 = vpop.f32.mrf.mxu0
        %v3386 = vpop.f32.mrf.mxu0
        %v3387 = vadd.f32 0.0, %v3386
        %v3388 = vpop.f32.mrf.mxu0
        %3389 = vdwg.mxu0
        %v3390 = vmul.f32 %v3360, 0.35355338
        %v3391 = vmul.f32 %v3363, 0.35355338
        %v3392 = vmul.f32 %v3368, 0.35355338
        %v3393 = vmul.f32 %v3371, 0.35355338
        %v3394 = vmul.f32 %v3376, 0.35355338
        %v3395 = vmul.f32 %v3379, 0.35355338
        %v3396 = vmul.f32 %v3384, 0.35355338
        %v3397 = vmul.f32 %v3387, 0.35355338
        %s3398 = scalar_lea.vmem [#allocation3], 256
        %v3399 = vld [vmem:[%s3398] sm:$0xff]
        %v3400 = vld [vmem:[%s3398 + $0x8] sm:$0xff]
        %v3401 = vld [vmem:[%s3398 + $0x10] sm:$0xff]
        %v3402 = vld [vmem:[%s3398 + $0x18] sm:$0xff]
        %v3403 = vld [vmem:[%s3398 + $0x20] sm:$0xff]
        %v3404 = vld [vmem:[%s3398 + $0x28] sm:$0xff]
        %v3405 = vld [vmem:[%s3398 + $0x30] sm:$0xff]
        %v3406 = vld [vmem:[%s3398 + $0x38] sm:$0xff]
        %v3407 = vadd.f32 %v3390, %v3399
        %v3408 = vadd.f32 %v3391, %v3400
        %v3409 = vadd.f32 %v3392, %v3401
        %v3410 = vadd.f32 %v3393, %v3402
        %v3411 = vadd.f32 %v3394, %v3403
        %v3412 = vadd.f32 %v3395, %v3404
        %v3413 = vadd.f32 %v3396, %v3405
        %v3414 = vadd.f32 %v3397, %v3406
        %v3415 = vsel %vm907, %v3407, -inf
        %3416 = vmax.xlane.f32.xlu0 %v3415
        %v3417 = vpop.xlane.xlu0 %3416
        %v3418 = vsel %vm907, %v3408, -inf
        %3419 = vmax.xlane.f32.xlu0 %v3418
        %v3420 = vpop.xlane.xlu0 %3419
        %v3421 = vsel %vm907, %v3409, -inf
        %3422 = vmax.xlane.f32.xlu0 %v3421
        %v3423 = vpop.xlane.xlu0 %3422
        %v3424 = vsel %vm907, %v3410, -inf
        %3425 = vmax.xlane.f32.xlu0 %v3424
        %v3426 = vpop.xlane.xlu0 %3425
        %v3427 = vsel %vm907, %v3411, -inf
        %3428 = vmax.xlane.f32.xlu0 %v3427
        %v3429 = vpop.xlane.xlu0 %3428
        %v3430 = vsel %vm907, %v3412, -inf
        %3431 = vmax.xlane.f32.xlu0 %v3430
        %v3432 = vpop.xlane.xlu0 %3431
        %v3433 = vsel %vm907, %v3413, -inf
        %3434 = vmax.xlane.f32.xlu0 %v3433
        %v3435 = vpop.xlane.xlu0 %3434
        %v3436 = vsel %vm907, %v3414, -inf
        %3437 = vmax.xlane.f32.xlu0 %v3436
        %v3438 = vpop.xlane.xlu0 %3437
        %v3439 = vsub.f32 %v3407, %v3417
        %v3440 = vsub.f32 %v3408, %v3420
        %v3441 = vsub.f32 %v3409, %v3423
        %v3442 = vsub.f32 %v3410, %v3426
        %v3443 = vsub.f32 %v3411, %v3429
        %v3444 = vsub.f32 %v3412, %v3432
        %v3445 = vsub.f32 %v3413, %v3435
        %v3446 = vsub.f32 %v3414, %v3438
        %v3447 = vmul.f32 %v3439, 1.442695
        %v3448 = vpow.pop %v3447
        %v3449 = vmul.f32 %v3440, 1.442695
        %v3450 = vpow.pop %v3449
        %v3451 = vmul.f32 %v3441, 1.442695
        %v3452 = vpow.pop %v3451
        %v3453 = vmul.f32 %v3442, 1.442695
        %v3454 = vpow.pop %v3453
        %v3455 = vmul.f32 %v3443, 1.442695
        %v3456 = vpow.pop %v3455
        %v3457 = vmul.f32 %v3444, 1.442695
        %v3458 = vpow.pop %v3457
        %v3459 = vmul.f32 %v3445, 1.442695
        %v3460 = vpow.pop %v3459
        %v3461 = vmul.f32 %v3446, 1.442695
        %v3462 = vpow.pop %v3461
        %v3463 = vsel %vm907, %v3448, 0.0
        %3464 = vadd.xlane.f32.xlu0 %v3463
        %v3465 = vpop.xlane.xlu0 %3464
        %v3466 = vsel %vm907, %v3450, 0.0
        %3467 = vadd.xlane.f32.xlu0 %v3466
        %v3468 = vpop.xlane.xlu0 %3467
        %v3469 = vsel %vm907, %v3452, 0.0
        %3470 = vadd.xlane.f32.xlu0 %v3469
        %v3471 = vpop.xlane.xlu0 %3470
        %v3472 = vsel %vm907, %v3454, 0.0
        %3473 = vadd.xlane.f32.xlu0 %v3472
        %v3474 = vpop.xlane.xlu0 %3473
        %v3475 = vsel %vm907, %v3456, 0.0
        %3476 = vadd.xlane.f32.xlu0 %v3475
        %v3477 = vpop.xlane.xlu0 %3476
        %v3478 = vsel %vm907, %v3458, 0.0
        %3479 = vadd.xlane.f32.xlu0 %v3478
        %v3480 = vpop.xlane.xlu0 %3479
        %v3481 = vsel %vm907, %v3460, 0.0
        %3482 = vadd.xlane.f32.xlu0 %v3481
        %v3483 = vpop.xlane.xlu0 %3482
        %v3484 = vsel %vm907, %v3462, 0.0
        %3485 = vadd.xlane.f32.xlu0 %v3484
        %v3486 = vpop.xlane.xlu0 %3485
        %v3487 = vrcp.pop %v3465
        %v3488 = vrcp.pop %v3468
        %v3489 = vrcp.pop %v3471
        %v3490 = vrcp.pop %v3474
        %v3491 = vrcp.pop %v3477
        %v3492 = vrcp.pop %v3480
        %v3493 = vrcp.pop %v3483
        %v3494 = vrcp.pop %v3486
        %v3495 = vmul.f32 %v3448, %v3487
        %v3496 = vmul.f32 %v3450, %v3488
        %v3497 = vmul.f32 %v3452, %v3489
        %v3498 = vmul.f32 %v3454, %v3490
        %v3499 = vmul.f32 %v3456, %v3491
        %v3500 = vmul.f32 %v3458, %v3492
        %v3501 = vmul.f32 %v3460, %v3493
        %v3502 = vmul.f32 %v3462, %v3494
        %v3503 = vpack.c.bf16 %v3496, %v3495
        %v3504 = vpack.c.bf16 %v3498, %v3497
        %v3505 = vpack.c.bf16 %v3500, %v3499
        %v3506 = vpack.c.bf16 %v3502, %v3501
        %3511 = vrot.lane.b32.xlu0 %v3241, 64
        %v3512 = vpop.permute.xlu0 %3511
        %3513 = vrot.lane.b32.xlu0 %v3242, 64
        %v3514 = vpop.permute.xlu0 %3513
        %3515 = vrot.lane.b32.xlu0 %v3243, 64
        %v3516 = vpop.permute.xlu0 %3515
        %3517 = vrot.lane.b32.xlu0 %v3244, 64
        %v3518 = vpop.permute.xlu0 %3517
        %v3524 = vsel %vm907, %v3503, 0
        %v3527 = vsel %vm907, %v3504, 0
        %v3530 = vsel %vm907, %v3505, 0
        %v3533 = vsel %vm907, %v3506, 0
        %3535 = vmatprep.subr.bf16.mxu0 0
        %3536 = vmatpush1.bf16.msra.mxu0 0
        %3537 = vmatprep.subr.bf16.mxu0 0
        %3538 = vmatpush1.bf16.msra.mxu0 0
        %3539 = vmatprep.subr.bf16.mxu0 0
        %3540 = vmatpush1.bf16.msra.mxu0 0
        %3541 = vmatprep.subr.bf16.mxu0 0
        %3542 = vmatpush1.bf16.msra.mxu0 0
        %3543 = vmatprep.subr.bf16.mxu0 0
        %3544 = vmatpush1.bf16.msra.mxu0 %v3518
        %3545 = vmatprep.subr.bf16.mxu0 0
        %3546 = vmatpush1.bf16.msra.mxu0 %v3516
        %3547 = vmatprep.subr.bf16.mxu0 0
        %3548 = vmatpush1.bf16.msra.mxu0 %v3514
        %3549 = vmatprep.subr.bf16.mxu0 0
        %3550 = vmatpush1.bf16.msra.mxu0 %v3512
        %3551 = vmatprep.subr.bf16.mxu0 0
        %3552 = vmatpush2.bf16.msra.mxu0 0
        %3553 = vmatprep.subr.bf16.mxu0 0
        %3554 = vmatpush2.bf16.msra.mxu0 0
        %3555 = vmatprep.subr.bf16.mxu0 0
        %3556 = vmatpush2.bf16.msra.mxu0 0
        %3557 = vmatprep.subr.bf16.mxu0 0
        %3558 = vmatpush2.bf16.msra.mxu0 0
        %3559 = vmatprep.subr.bf16.mxu0 0
        %3560 = vmatpush2.bf16.msra.mxu0 0
        %3561 = vmatprep.subr.bf16.mxu0 0
        %3562 = vmatpush2.bf16.msra.mxu0 0
        %3563 = vmatprep.subr.bf16.mxu0 0
        %3564 = vmatpush2.bf16.msra.mxu0 0
        %3565 = vmatprep.subr.bf16.mxu0 0
        %3566 = vmatpush2.bf16.msra.mxu0 0
        %3567 = vmatprep.mubr.bf16.mxu0 0
        %3568 = vmatmul.mubr.bf16.gmra.mxu0 %v3524
        %v3569 = vpop.f32.mrf.mxu0
        %v3570 = vadd.f32 0.0, %v3569
        %v3571 = vpop.f32.mrf.mxu0
        %v3572 = vpop.f32.mrf.mxu0
        %v3573 = vadd.f32 0.0, %v3572
        %v3574 = vpop.f32.mrf.mxu0
        %3575 = vmatprep.mubr.bf16.mxu0 0
        %3576 = vmatmul.mubr.bf16.gmra.mxu0 %v3527
        %v3577 = vpop.f32.mrf.mxu0
        %v3578 = vadd.f32 0.0, %v3577
        %v3579 = vpop.f32.mrf.mxu0
        %v3580 = vpop.f32.mrf.mxu0
        %v3581 = vadd.f32 0.0, %v3580
        %v3582 = vpop.f32.mrf.mxu0
        %3583 = vmatprep.mubr.bf16.mxu0 0
        %3584 = vmatmul.mubr.bf16.gmra.mxu0 %v3530
        %v3585 = vpop.f32.mrf.mxu0
        %v3586 = vadd.f32 0.0, %v3585
        %v3587 = vpop.f32.mrf.mxu0
        %v3588 = vpop.f32.mrf.mxu0
        %v3589 = vadd.f32 0.0, %v3588
        %v3590 = vpop.f32.mrf.mxu0
        %3591 = vmatprep.mubr.bf16.mxu0 0
        %3592 = vmatmul.mubr.bf16.gmra.mxu0 %v3533
        %v3593 = vpop.f32.mrf.mxu0
        %v3594 = vadd.f32 0.0, %v3593
        %v3595 = vpop.f32.mrf.mxu0
        %v3596 = vpop.f32.mrf.mxu0
        %v3597 = vadd.f32 0.0, %v3596
        %v3598 = vpop.f32.mrf.mxu0
        %3599 = vdwg.mxu0
        %3600 = vst.msk [vmem:[#allocation2] sm:$0xff] %vm801, %v3570
        %3601 = vst.msk [vmem:[#allocation2 + $0x8] sm:$0xff] %vm801, %v3573
        %3602 = vst.msk [vmem:[#allocation2 + $0x10] sm:$0xff] %vm801, %v3578
        %3603 = vst.msk [vmem:[#allocation2 + $0x18] sm:$0xff] %vm801, %v3581
        %3604 = vst.msk [vmem:[#allocation2 + $0x20] sm:$0xff] %vm801, %v3586
        %3605 = vst.msk [vmem:[#allocation2 + $0x28] sm:$0xff] %vm801, %v3589
        %3606 = vst.msk [vmem:[#allocation2 + $0x30] sm:$0xff] %vm801, %v3594
        %3607 = vst.msk [vmem:[#allocation2 + $0x38] sm:$0xff] %vm801, %v3597
        %3608 = vrot.lane.b32.xlu0 %v3211, 88
        %v3609 = vpop.permute.xlu0 %3608
        %3610 = vrot.lane.b32.xlu0 %v3214, 88
        %v3611 = vpop.permute.xlu0 %3610
        %3612 = vrot.lane.b32.xlu0 %v3219, 88
        %v3613 = vpop.permute.xlu0 %3612
        %3614 = vrot.lane.b32.xlu0 %v3222, 88
        %v3615 = vpop.permute.xlu0 %3614
        %3616 = vrot.lane.b32.xlu0 %v3227, 88
        %v3617 = vpop.permute.xlu0 %3616
        %3618 = vrot.lane.b32.xlu0 %v3230, 88
        %v3619 = vpop.permute.xlu0 %3618
        %3620 = vrot.lane.b32.xlu0 %v3235, 88
        %v3621 = vpop.permute.xlu0 %3620
        %3622 = vrot.lane.b32.xlu0 %v3238, 88
        %v3623 = vpop.permute.xlu0 %3622
        %3632 = vxpose.xlu0.b32.start [1/16] %v3609, 128
        %3633 = vxpose.xlu0.b32.cont [2/16] %v3611, 128
        %3634 = vxpose.xlu0.b32.cont [3/16] %v3613, 128
        %3635 = vxpose.xlu0.b32.cont [4/16] %v3615, 128
        %3636 = vxpose.xlu0.b32.cont [5/16] %v3617, 128
        %3637 = vxpose.xlu0.b32.cont [6/16] %v3619, 128
        %3638 = vxpose.xlu0.b32.cont [7/16] %v3621, 128
        %3639 = vxpose.xlu0.b32.cont [8/16] %v3623, 128
        %3640 = vxpose.xlu0.b32.cont [9/16] 0.0, 128
        %3641 = vxpose.xlu0.b32.cont [10/16] 0.0, 128
        %3642 = vxpose.xlu0.b32.cont [11/16] 0.0, 128
        %3643 = vxpose.xlu0.b32.cont [12/16] 0.0, 128
        %3644 = vxpose.xlu0.b32.cont [13/16] 0.0, 128
        %3645 = vxpose.xlu0.b32.cont [14/16] 0.0, 128
        %3646 = vxpose.xlu0.b32.cont [15/16] 0.0, 128
        %3647 = vxpose.xlu0.b32.end [16/16] 0.0, 128
        %v3648 = vpop.trf.xlu0
        %v3649 = vpop.trf.xlu0
        %v3650 = vpop.trf.xlu0
        %v3651 = vpop.trf.xlu0
        %v3652 = vpop.trf.xlu0
        %v3653 = vpop.trf.xlu0
        %v3654 = vpop.trf.xlu0
        %v3655 = vpop.trf.xlu0
        %v3656 = vpop.trf.xlu0
        %v3657 = vpop.trf.xlu0
        %v3658 = vpop.trf.xlu0
        %v3659 = vpop.trf.xlu0
        %v3660 = vpop.trf.xlu0
        %v3661 = vpop.trf.xlu0
        %v3662 = vpop.trf.xlu0
        %v3663 = vpop.trf.xlu0
        %v3664 = vpack.c.bf16 %v3648, %v3648
        %3665 = vrot.lane.b32.xlu0 %v3241, 120
        %v3666 = vpop.permute.xlu0 %3665
        %3667 = vrot.lane.b32.xlu0 %v3242, 120
        %v3668 = vpop.permute.xlu0 %3667
        %3669 = vrot.lane.b32.xlu0 %v3243, 120
        %v3670 = vpop.permute.xlu0 %3669
        %3671 = vrot.lane.b32.xlu0 %v3244, 120
        %v3672 = vpop.permute.xlu0 %3671
        %v3674 = vsel %vm801, %v3666, 0
        %v3677 = vsel %vm801, %v3668, 0
        %v3680 = vsel %vm801, %v3670, 0
        %v3683 = vsel %vm801, %v3672, 0
        %v3686 = vsel %vm814, %v3664, 0
        %3688 = vmatprep.subr.bf16.mxu0 0
        %3689 = vmatpush1.bf16.msra.mxu0 0
        %3690 = vmatprep.subr.bf16.mxu0 0
        %3691 = vmatpush1.bf16.msra.mxu0 0
        %3692 = vmatprep.subr.bf16.mxu0 0
        %3693 = vmatpush1.bf16.msra.mxu0 0
        %3694 = vmatprep.subr.bf16.mxu0 0
        %3695 = vmatpush1.bf16.msra.mxu0 0
        %3696 = vmatprep.subr.bf16.mxu0 0
        %3697 = vmatpush1.bf16.msra.mxu0 0
        %3698 = vmatprep.subr.bf16.mxu0 0
        %3699 = vmatpush1.bf16.msra.mxu0 0
        %3700 = vmatprep.subr.bf16.mxu0 0
        %3701 = vmatpush1.bf16.msra.mxu0 0
        %3702 = vmatprep.subr.bf16.mxu0 0
        %3703 = vmatpush1.bf16.msra.mxu0 %v3686
        %3704 = vmatprep.subr.bf16.mxu0 0
        %3705 = vmatpush2.bf16.msra.mxu0 0
        %3706 = vmatprep.subr.bf16.mxu0 0
        %3707 = vmatpush2.bf16.msra.mxu0 0
        %3708 = vmatprep.subr.bf16.mxu0 0
        %3709 = vmatpush2.bf16.msra.mxu0 0
        %3710 = vmatprep.subr.bf16.mxu0 0
        %3711 = vmatpush2.bf16.msra.mxu0 0
        %3712 = vmatprep.subr.bf16.mxu0 0
        %3713 = vmatpush2.bf16.msra.mxu0 0
        %3714 = vmatprep.subr.bf16.mxu0 0
        %3715 = vmatpush2.bf16.msra.mxu0 0
        %3716 = vmatprep.subr.bf16.mxu0 0
        %3717 = vmatpush2.bf16.msra.mxu0 0
        %3718 = vmatprep.subr.bf16.mxu0 0
        %3719 = vmatpush2.bf16.msra.mxu0 0
        %3720 = vmatprep.mubr.bf16.mxu0 0
        %3721 = vmatmul.mubr.bf16.gmra.mxu0 %v3674
        %v3722 = vpop.f32.mrf.mxu0
        %v3723 = vadd.f32 0.0, %v3722
        %v3724 = vpop.f32.mrf.mxu0
        %v3725 = vpop.f32.mrf.mxu0
        %v3726 = vadd.f32 0.0, %v3725
        %v3727 = vpop.f32.mrf.mxu0
        %3728 = vmatprep.mubr.bf16.mxu0 0
        %3729 = vmatmul.mubr.bf16.gmra.mxu0 %v3677
        %v3730 = vpop.f32.mrf.mxu0
        %v3731 = vadd.f32 0.0, %v3730
        %v3732 = vpop.f32.mrf.mxu0
        %v3733 = vpop.f32.mrf.mxu0
        %v3734 = vadd.f32 0.0, %v3733
        %v3735 = vpop.f32.mrf.mxu0
        %3736 = vmatprep.mubr.bf16.mxu0 0
        %3737 = vmatmul.mubr.bf16.gmra.mxu0 %v3680
        %v3738 = vpop.f32.mrf.mxu0
        %v3739 = vadd.f32 0.0, %v3738
        %v3740 = vpop.f32.mrf.mxu0
        %v3741 = vpop.f32.mrf.mxu0
        %v3742 = vadd.f32 0.0, %v3741
        %v3743 = vpop.f32.mrf.mxu0
        %3744 = vmatprep.mubr.bf16.mxu0 0
        %3745 = vmatmul.mubr.bf16.gmra.mxu0 %v3683
        %v3746 = vpop.f32.mrf.mxu0
        %v3747 = vadd.f32 0.0, %v3746
        %v3748 = vpop.f32.mrf.mxu0
        %v3749 = vpop.f32.mrf.mxu0
        %v3750 = vadd.f32 0.0, %v3749
        %v3751 = vpop.f32.mrf.mxu0
        %3752 = vdwg.mxu0
        %v3753 = vmul.f32 %v3723, 0.35355338
        %v3754 = vmul.f32 %v3726, 0.35355338
        %v3755 = vmul.f32 %v3731, 0.35355338
        %v3756 = vmul.f32 %v3734, 0.35355338
        %v3757 = vmul.f32 %v3739, 0.35355338
        %v3758 = vmul.f32 %v3742, 0.35355338
        %v3759 = vmul.f32 %v3747, 0.35355338
        %v3760 = vmul.f32 %v3750, 0.35355338
        %s3761 = scalar_lea.vmem [#allocation3], 320
        %v3762 = vld [vmem:[%s3761] sm:$0xff]
        %v3763 = vld [vmem:[%s3761 + $0x8] sm:$0xff]
        %v3764 = vld [vmem:[%s3761 + $0x10] sm:$0xff]
        %v3765 = vld [vmem:[%s3761 + $0x18] sm:$0xff]
        %v3766 = vld [vmem:[%s3761 + $0x20] sm:$0xff]
        %v3767 = vld [vmem:[%s3761 + $0x28] sm:$0xff]
        %v3768 = vld [vmem:[%s3761 + $0x30] sm:$0xff]
        %v3769 = vld [vmem:[%s3761 + $0x38] sm:$0xff]
        %v3770 = vadd.f32 %v3753, %v3762
        %v3771 = vadd.f32 %v3754, %v3763
        %v3772 = vadd.f32 %v3755, %v3764
        %v3773 = vadd.f32 %v3756, %v3765
        %v3774 = vadd.f32 %v3757, %v3766
        %v3775 = vadd.f32 %v3758, %v3767
        %v3776 = vadd.f32 %v3759, %v3768
        %v3777 = vadd.f32 %v3760, %v3769
        %v3778 = vsel %vm907, %v3770, -inf
        %3779 = vmax.xlane.f32.xlu0 %v3778
        %v3780 = vpop.xlane.xlu0 %3779
        %v3781 = vsel %vm907, %v3771, -inf
        %3782 = vmax.xlane.f32.xlu0 %v3781
        %v3783 = vpop.xlane.xlu0 %3782
        %v3784 = vsel %vm907, %v3772, -inf
        %3785 = vmax.xlane.f32.xlu0 %v3784
        %v3786 = vpop.xlane.xlu0 %3785
        %v3787 = vsel %vm907, %v3773, -inf
        %3788 = vmax.xlane.f32.xlu0 %v3787
        %v3789 = vpop.xlane.xlu0 %3788
        %v3790 = vsel %vm907, %v3774, -inf
        %3791 = vmax.xlane.f32.xlu0 %v3790
        %v3792 = vpop.xlane.xlu0 %3791
        %v3793 = vsel %vm907, %v3775, -inf
        %3794 = vmax.xlane.f32.xlu0 %v3793
        %v3795 = vpop.xlane.xlu0 %3794
        %v3796 = vsel %vm907, %v3776, -inf
        %3797 = vmax.xlane.f32.xlu0 %v3796
        %v3798 = vpop.xlane.xlu0 %3797
        %v3799 = vsel %vm907, %v3777, -inf
        %3800 = vmax.xlane.f32.xlu0 %v3799
        %v3801 = vpop.xlane.xlu0 %3800
        %v3802 = vsub.f32 %v3770, %v3780
        %v3803 = vsub.f32 %v3771, %v3783
        %v3804 = vsub.f32 %v3772, %v3786
        %v3805 = vsub.f32 %v3773, %v3789
        %v3806 = vsub.f32 %v3774, %v3792
        %v3807 = vsub.f32 %v3775, %v3795
        %v3808 = vsub.f32 %v3776, %v3798
        %v3809 = vsub.f32 %v3777, %v3801
        %v3810 = vmul.f32 %v3802, 1.442695
        %v3811 = vpow.pop %v3810
        %v3812 = vmul.f32 %v3803, 1.442695
        %v3813 = vpow.pop %v3812
        %v3814 = vmul.f32 %v3804, 1.442695
        %v3815 = vpow.pop %v3814
        %v3816 = vmul.f32 %v3805, 1.442695
        %v3817 = vpow.pop %v3816
        %v3818 = vmul.f32 %v3806, 1.442695
        %v3819 = vpow.pop %v3818
        %v3820 = vmul.f32 %v3807, 1.442695
        %v3821 = vpow.pop %v3820
        %v3822 = vmul.f32 %v3808, 1.442695
        %v3823 = vpow.pop %v3822
        %v3824 = vmul.f32 %v3809, 1.442695
        %v3825 = vpow.pop %v3824
        %v3826 = vsel %vm907, %v3811, 0.0
        %3827 = vadd.xlane.f32.xlu0 %v3826
        %v3828 = vpop.xlane.xlu0 %3827
        %v3829 = vsel %vm907, %v3813, 0.0
        %3830 = vadd.xlane.f32.xlu0 %v3829
        %v3831 = vpop.xlane.xlu0 %3830
        %v3832 = vsel %vm907, %v3815, 0.0
        %3833 = vadd.xlane.f32.xlu0 %v3832
        %v3834 = vpop.xlane.xlu0 %3833
        %v3835 = vsel %vm907, %v3817, 0.0
        %3836 = vadd.xlane.f32.xlu0 %v3835
        %v3837 = vpop.xlane.xlu0 %3836
        %v3838 = vsel %vm907, %v3819, 0.0
        %3839 = vadd.xlane.f32.xlu0 %v3838
        %v3840 = vpop.xlane.xlu0 %3839
        %v3841 = vsel %vm907, %v3821, 0.0
        %3842 = vadd.xlane.f32.xlu0 %v3841
        %v3843 = vpop.xlane.xlu0 %3842
        %v3844 = vsel %vm907, %v3823, 0.0
        %3845 = vadd.xlane.f32.xlu0 %v3844
        %v3846 = vpop.xlane.xlu0 %3845
        %v3847 = vsel %vm907, %v3825, 0.0
        %3848 = vadd.xlane.f32.xlu0 %v3847
        %v3849 = vpop.xlane.xlu0 %3848
        %v3850 = vrcp.pop %v3828
        %v3851 = vrcp.pop %v3831
        %v3852 = vrcp.pop %v3834
        %v3853 = vrcp.pop %v3837
        %v3854 = vrcp.pop %v3840
        %v3855 = vrcp.pop %v3843
        %v3856 = vrcp.pop %v3846
        %v3857 = vrcp.pop %v3849
        %v3858 = vmul.f32 %v3811, %v3850
        %v3859 = vmul.f32 %v3813, %v3851
        %v3860 = vmul.f32 %v3815, %v3852
        %v3861 = vmul.f32 %v3817, %v3853
        %v3862 = vmul.f32 %v3819, %v3854
        %v3863 = vmul.f32 %v3821, %v3855
        %v3864 = vmul.f32 %v3823, %v3856
        %v3865 = vmul.f32 %v3825, %v3857
        %v3866 = vpack.c.bf16 %v3859, %v3858
        %v3867 = vpack.c.bf16 %v3861, %v3860
        %v3868 = vpack.c.bf16 %v3863, %v3862
        %v3869 = vpack.c.bf16 %v3865, %v3864
        %3870 = vrot.lane.b32.xlu0 %v3241, 56
        %v3871 = vpop.permute.xlu0 %3870
        %3872 = vrot.lane.b32.xlu0 %v3242, 56
        %v3873 = vpop.permute.xlu0 %3872
        %3874 = vrot.lane.b32.xlu0 %v3243, 56
        %v3875 = vpop.permute.xlu0 %3874
        %3876 = vrot.lane.b32.xlu0 %v3244, 56
        %v3877 = vpop.permute.xlu0 %3876
        %v3883 = vsel %vm907, %v3866, 0
        %v3886 = vsel %vm907, %v3867, 0
        %v3889 = vsel %vm907, %v3868, 0
        %v3892 = vsel %vm907, %v3869, 0
        %3894 = vmatprep.subr.bf16.mxu0 0
        %3895 = vmatpush1.bf16.msra.mxu0 0
        %3896 = vmatprep.subr.bf16.mxu0 0
        %3897 = vmatpush1.bf16.msra.mxu0 0
        %3898 = vmatprep.subr.bf16.mxu0 0
        %3899 = vmatpush1.bf16.msra.mxu0 0
        %3900 = vmatprep.subr.bf16.mxu0 0
        %3901 = vmatpush1.bf16.msra.mxu0 0
        %3902 = vmatprep.subr.bf16.mxu0 0
        %3903 = vmatpush1.bf16.msra.mxu0 %v3877
        %3904 = vmatprep.subr.bf16.mxu0 0
        %3905 = vmatpush1.bf16.msra.mxu0 %v3875
        %3906 = vmatprep.subr.bf16.mxu0 0
        %3907 = vmatpush1.bf16.msra.mxu0 %v3873
        %3908 = vmatprep.subr.bf16.mxu0 0
        %3909 = vmatpush1.bf16.msra.mxu0 %v3871
        %3910 = vmatprep.subr.bf16.mxu0 0
        %3911 = vmatpush2.bf16.msra.mxu0 0
        %3912 = vmatprep.subr.bf16.mxu0 0
        %3913 = vmatpush2.bf16.msra.mxu0 0
        %3914 = vmatprep.subr.bf16.mxu0 0
        %3915 = vmatpush2.bf16.msra.mxu0 0
        %3916 = vmatprep.subr.bf16.mxu0 0
        %3917 = vmatpush2.bf16.msra.mxu0 0
        %3918 = vmatprep.subr.bf16.mxu0 0
        %3919 = vmatpush2.bf16.msra.mxu0 0
        %3920 = vmatprep.subr.bf16.mxu0 0
        %3921 = vmatpush2.bf16.msra.mxu0 0
        %3922 = vmatprep.subr.bf16.mxu0 0
        %3923 = vmatpush2.bf16.msra.mxu0 0
        %3924 = vmatprep.subr.bf16.mxu0 0
        %3925 = vmatpush2.bf16.msra.mxu0 0
        %3926 = vmatprep.mubr.bf16.mxu0 0
        %3927 = vmatmul.mubr.bf16.gmra.mxu0 %v3883
        %v3928 = vpop.f32.mrf.mxu0
        %v3929 = vadd.f32 0.0, %v3928
        %v3930 = vpop.f32.mrf.mxu0
        %v3931 = vpop.f32.mrf.mxu0
        %v3932 = vadd.f32 0.0, %v3931
        %v3933 = vpop.f32.mrf.mxu0
        %3934 = vmatprep.mubr.bf16.mxu0 0
        %3935 = vmatmul.mubr.bf16.gmra.mxu0 %v3886
        %v3936 = vpop.f32.mrf.mxu0
        %v3937 = vadd.f32 0.0, %v3936
        %v3938 = vpop.f32.mrf.mxu0
        %v3939 = vpop.f32.mrf.mxu0
        %v3940 = vadd.f32 0.0, %v3939
        %v3941 = vpop.f32.mrf.mxu0
        %3942 = vmatprep.mubr.bf16.mxu0 0
        %3943 = vmatmul.mubr.bf16.gmra.mxu0 %v3889
        %v3944 = vpop.f32.mrf.mxu0
        %v3945 = vadd.f32 0.0, %v3944
        %v3946 = vpop.f32.mrf.mxu0
        %v3947 = vpop.f32.mrf.mxu0
        %v3948 = vadd.f32 0.0, %v3947
        %v3949 = vpop.f32.mrf.mxu0
        %3950 = vmatprep.mubr.bf16.mxu0 0
        %3951 = vmatmul.mubr.bf16.gmra.mxu0 %v3892
        %v3952 = vpop.f32.mrf.mxu0
        %v3953 = vadd.f32 0.0, %v3952
        %v3954 = vpop.f32.mrf.mxu0
        %v3955 = vpop.f32.mrf.mxu0
        %v3956 = vadd.f32 0.0, %v3955
        %v3957 = vpop.f32.mrf.mxu0
        %3958 = vdwg.mxu0
        %3967 = vrot.lane.b32.xlu0 %v3929, 8
        %v3968 = vpop.permute.xlu0 %3967
        %3969 = vrot.lane.b32.xlu0 %v3932, 8
        %v3970 = vpop.permute.xlu0 %3969
        %3971 = vrot.lane.b32.xlu0 %v3937, 8
        %v3972 = vpop.permute.xlu0 %3971
        %3973 = vrot.lane.b32.xlu0 %v3940, 8
        %v3974 = vpop.permute.xlu0 %3973
        %3975 = vrot.lane.b32.xlu0 %v3945, 8
        %v3976 = vpop.permute.xlu0 %3975
        %3977 = vrot.lane.b32.xlu0 %v3948, 8
        %v3978 = vpop.permute.xlu0 %3977
        %3979 = vrot.lane.b32.xlu0 %v3953, 8
        %v3980 = vpop.permute.xlu0 %3979
        %3981 = vrot.lane.b32.xlu0 %v3956, 8
        %v3982 = vpop.permute.xlu0 %3981
        %3991 = vst.msk [vmem:[#allocation2] sm:$0xff] %vm1484, %v3968
        %3992 = vst.msk [vmem:[#allocation2 + $0x8] sm:$0xff] %vm1484, %v3970
        %3993 = vst.msk [vmem:[#allocation2 + $0x10] sm:$0xff] %vm1484, %v3972
        %3994 = vst.msk [vmem:[#allocation2 + $0x18] sm:$0xff] %vm1484, %v3974
        %3995 = vst.msk [vmem:[#allocation2 + $0x20] sm:$0xff] %vm1484, %v3976
        %3996 = vst.msk [vmem:[#allocation2 + $0x28] sm:$0xff] %vm1484, %v3978
        %3997 = vst.msk [vmem:[#allocation2 + $0x30] sm:$0xff] %vm1484, %v3980
        %3998 = vst.msk [vmem:[#allocation2 + $0x38] sm:$0xff] %vm1484, %v3982
        %3999 = vrot.lane.b32.xlu0 %v3211, 80
        %v4000 = vpop.permute.xlu0 %3999
        %4001 = vrot.lane.b32.xlu0 %v3214, 80
        %v4002 = vpop.permute.xlu0 %4001
        %4003 = vrot.lane.b32.xlu0 %v3219, 80
        %v4004 = vpop.permute.xlu0 %4003
        %4005 = vrot.lane.b32.xlu0 %v3222, 80
        %v4006 = vpop.permute.xlu0 %4005
        %4007 = vrot.lane.b32.xlu0 %v3227, 80
        %v4008 = vpop.permute.xlu0 %4007
        %4009 = vrot.lane.b32.xlu0 %v3230, 80
        %v4010 = vpop.permute.xlu0 %4009
        %4011 = vrot.lane.b32.xlu0 %v3235, 80
        %v4012 = vpop.permute.xlu0 %4011
        %4013 = vrot.lane.b32.xlu0 %v3238, 80
        %v4014 = vpop.permute.xlu0 %4013
        %4023 = vxpose.xlu0.b32.start [1/16] %v4000, 128
        %4024 = vxpose.xlu0.b32.cont [2/16] %v4002, 128
        %4025 = vxpose.xlu0.b32.cont [3/16] %v4004, 128
        %4026 = vxpose.xlu0.b32.cont [4/16] %v4006, 128
        %4027 = vxpose.xlu0.b32.cont [5/16] %v4008, 128
        %4028 = vxpose.xlu0.b32.cont [6/16] %v4010, 128
        %4029 = vxpose.xlu0.b32.cont [7/16] %v4012, 128
        %4030 = vxpose.xlu0.b32.cont [8/16] %v4014, 128
        %4031 = vxpose.xlu0.b32.cont [9/16] 0.0, 128
        %4032 = vxpose.xlu0.b32.cont [10/16] 0.0, 128
        %4033 = vxpose.xlu0.b32.cont [11/16] 0.0, 128
        %4034 = vxpose.xlu0.b32.cont [12/16] 0.0, 128
        %4035 = vxpose.xlu0.b32.cont [13/16] 0.0, 128
        %4036 = vxpose.xlu0.b32.cont [14/16] 0.0, 128
        %4037 = vxpose.xlu0.b32.cont [15/16] 0.0, 128
        %4038 = vxpose.xlu0.b32.end [16/16] 0.0, 128
        %v4039 = vpop.trf.xlu0
        %v4040 = vpop.trf.xlu0
        %v4041 = vpop.trf.xlu0
        %v4042 = vpop.trf.xlu0
        %v4043 = vpop.trf.xlu0
        %v4044 = vpop.trf.xlu0
        %v4045 = vpop.trf.xlu0
        %v4046 = vpop.trf.xlu0
        %v4047 = vpop.trf.xlu0
        %v4048 = vpop.trf.xlu0
        %v4049 = vpop.trf.xlu0
        %v4050 = vpop.trf.xlu0
        %v4051 = vpop.trf.xlu0
        %v4052 = vpop.trf.xlu0
        %v4053 = vpop.trf.xlu0
        %v4054 = vpop.trf.xlu0
        %v4055 = vpack.c.bf16 %v4039, %v4039
        %4056 = vrot.lane.b32.xlu0 %v3241, 112
        %v4057 = vpop.permute.xlu0 %4056
        %4058 = vrot.lane.b32.xlu0 %v3242, 112
        %v4059 = vpop.permute.xlu0 %4058
        %4060 = vrot.lane.b32.xlu0 %v3243, 112
        %v4061 = vpop.permute.xlu0 %4060
        %4062 = vrot.lane.b32.xlu0 %v3244, 112
        %v4063 = vpop.permute.xlu0 %4062
        %v4065 = vsel %vm801, %v4057, 0
        %v4068 = vsel %vm801, %v4059, 0
        %v4071 = vsel %vm801, %v4061, 0
        %v4074 = vsel %vm801, %v4063, 0
        %v4077 = vsel %vm814, %v4055, 0
        %4079 = vmatprep.subr.bf16.mxu0 0
        %4080 = vmatpush1.bf16.msra.mxu0 0
        %4081 = vmatprep.subr.bf16.mxu0 0
        %4082 = vmatpush1.bf16.msra.mxu0 0
        %4083 = vmatprep.subr.bf16.mxu0 0
        %4084 = vmatpush1.bf16.msra.mxu0 0
        %4085 = vmatprep.subr.bf16.mxu0 0
        %4086 = vmatpush1.bf16.msra.mxu0 0
        %4087 = vmatprep.subr.bf16.mxu0 0
        %4088 = vmatpush1.bf16.msra.mxu0 0
        %4089 = vmatprep.subr.bf16.mxu0 0
        %4090 = vmatpush1.bf16.msra.mxu0 0
        %4091 = vmatprep.subr.bf16.mxu0 0
        %4092 = vmatpush1.bf16.msra.mxu0 0
        %4093 = vmatprep.subr.bf16.mxu0 0
        %4094 = vmatpush1.bf16.msra.mxu0 %v4077
        %4095 = vmatprep.subr.bf16.mxu0 0
        %4096 = vmatpush2.bf16.msra.mxu0 0
        %4097 = vmatprep.subr.bf16.mxu0 0
        %4098 = vmatpush2.bf16.msra.mxu0 0
        %4099 = vmatprep.subr.bf16.mxu0 0
        %4100 = vmatpush2.bf16.msra.mxu0 0
        %4101 = vmatprep.subr.bf16.mxu0 0
        %4102 = vmatpush2.bf16.msra.mxu0 0
        %4103 = vmatprep.subr.bf16.mxu0 0
        %4104 = vmatpush2.bf16.msra.mxu0 0
        %4105 = vmatprep.subr.bf16.mxu0 0
        %4106 = vmatpush2.bf16.msra.mxu0 0
        %4107 = vmatprep.subr.bf16.mxu0 0
        %4108 = vmatpush2.bf16.msra.mxu0 0
        %4109 = vmatprep.subr.bf16.mxu0 0
        %4110 = vmatpush2.bf16.msra.mxu0 0
        %4111 = vmatprep.mubr.bf16.mxu0 0
        %4112 = vmatmul.mubr.bf16.gmra.mxu0 %v4065
        %v4113 = vpop.f32.mrf.mxu0
        %v4114 = vadd.f32 0.0, %v4113
        %v4115 = vpop.f32.mrf.mxu0
        %v4116 = vpop.f32.mrf.mxu0
        %v4117 = vadd.f32 0.0, %v4116
        %v4118 = vpop.f32.mrf.mxu0
        %4119 = vmatprep.mubr.bf16.mxu0 0
        %4120 = vmatmul.mubr.bf16.gmra.mxu0 %v4068
        %v4121 = vpop.f32.mrf.mxu0
        %v4122 = vadd.f32 0.0, %v4121
        %v4123 = vpop.f32.mrf.mxu0
        %v4124 = vpop.f32.mrf.mxu0
        %v4125 = vadd.f32 0.0, %v4124
        %v4126 = vpop.f32.mrf.mxu0
        %4127 = vmatprep.mubr.bf16.mxu0 0
        %4128 = vmatmul.mubr.bf16.gmra.mxu0 %v4071
        %v4129 = vpop.f32.mrf.mxu0
        %v4130 = vadd.f32 0.0, %v4129
        %v4131 = vpop.f32.mrf.mxu0
        %v4132 = vpop.f32.mrf.mxu0
        %v4133 = vadd.f32 0.0, %v4132
        %v4134 = vpop.f32.mrf.mxu0
        %4135 = vmatprep.mubr.bf16.mxu0 0
        %4136 = vmatmul.mubr.bf16.gmra.mxu0 %v4074
        %v4137 = vpop.f32.mrf.mxu0
        %v4138 = vadd.f32 0.0, %v4137
        %v4139 = vpop.f32.mrf.mxu0
        %v4140 = vpop.f32.mrf.mxu0
        %v4141 = vadd.f32 0.0, %v4140
        %v4142 = vpop.f32.mrf.mxu0
        %4143 = vdwg.mxu0
        %v4144 = vmul.f32 %v4114, 0.35355338
        %v4145 = vmul.f32 %v4117, 0.35355338
        %v4146 = vmul.f32 %v4122, 0.35355338
        %v4147 = vmul.f32 %v4125, 0.35355338
        %v4148 = vmul.f32 %v4130, 0.35355338
        %v4149 = vmul.f32 %v4133, 0.35355338
        %v4150 = vmul.f32 %v4138, 0.35355338
        %v4151 = vmul.f32 %v4141, 0.35355338
        %s4152 = scalar_lea.vmem [#allocation3], 384
        %v4153 = vld [vmem:[%s4152] sm:$0xff]
        %v4154 = vld [vmem:[%s4152 + $0x8] sm:$0xff]
        %v4155 = vld [vmem:[%s4152 + $0x10] sm:$0xff]
        %v4156 = vld [vmem:[%s4152 + $0x18] sm:$0xff]
        %v4157 = vld [vmem:[%s4152 + $0x20] sm:$0xff]
        %v4158 = vld [vmem:[%s4152 + $0x28] sm:$0xff]
        %v4159 = vld [vmem:[%s4152 + $0x30] sm:$0xff]
        %v4160 = vld [vmem:[%s4152 + $0x38] sm:$0xff]
        %v4161 = vadd.f32 %v4144, %v4153
        %v4162 = vadd.f32 %v4145, %v4154
        %v4163 = vadd.f32 %v4146, %v4155
        %v4164 = vadd.f32 %v4147, %v4156
        %v4165 = vadd.f32 %v4148, %v4157
        %v4166 = vadd.f32 %v4149, %v4158
        %v4167 = vadd.f32 %v4150, %v4159
        %v4168 = vadd.f32 %v4151, %v4160
        %v4169 = vsel %vm907, %v4161, -inf
        %4170 = vmax.xlane.f32.xlu0 %v4169
        %v4171 = vpop.xlane.xlu0 %4170
        %v4172 = vsel %vm907, %v4162, -inf
        %4173 = vmax.xlane.f32.xlu0 %v4172
        %v4174 = vpop.xlane.xlu0 %4173
        %v4175 = vsel %vm907, %v4163, -inf
        %4176 = vmax.xlane.f32.xlu0 %v4175
        %v4177 = vpop.xlane.xlu0 %4176
        %v4178 = vsel %vm907, %v4164, -inf
        %4179 = vmax.xlane.f32.xlu0 %v4178
        %v4180 = vpop.xlane.xlu0 %4179
        %v4181 = vsel %vm907, %v4165, -inf
        %4182 = vmax.xlane.f32.xlu0 %v4181
        %v4183 = vpop.xlane.xlu0 %4182
        %v4184 = vsel %vm907, %v4166, -inf
        %4185 = vmax.xlane.f32.xlu0 %v4184
        %v4186 = vpop.xlane.xlu0 %4185
        %v4187 = vsel %vm907, %v4167, -inf
        %4188 = vmax.xlane.f32.xlu0 %v4187
        %v4189 = vpop.xlane.xlu0 %4188
        %v4190 = vsel %vm907, %v4168, -inf
        %4191 = vmax.xlane.f32.xlu0 %v4190
        %v4192 = vpop.xlane.xlu0 %4191
        %v4193 = vsub.f32 %v4161, %v4171
        %v4194 = vsub.f32 %v4162, %v4174
        %v4195 = vsub.f32 %v4163, %v4177
        %v4196 = vsub.f32 %v4164, %v4180
        %v4197 = vsub.f32 %v4165, %v4183
        %v4198 = vsub.f32 %v4166, %v4186
        %v4199 = vsub.f32 %v4167, %v4189
        %v4200 = vsub.f32 %v4168, %v4192
        %v4201 = vmul.f32 %v4193, 1.442695
        %v4202 = vpow.pop %v4201
        %v4203 = vmul.f32 %v4194, 1.442695
        %v4204 = vpow.pop %v4203
        %v4205 = vmul.f32 %v4195, 1.442695
        %v4206 = vpow.pop %v4205
        %v4207 = vmul.f32 %v4196, 1.442695
        %v4208 = vpow.pop %v4207
        %v4209 = vmul.f32 %v4197, 1.442695
        %v4210 = vpow.pop %v4209
        %v4211 = vmul.f32 %v4198, 1.442695
        %v4212 = vpow.pop %v4211
        %v4213 = vmul.f32 %v4199, 1.442695
        %v4214 = vpow.pop %v4213
        %v4215 = vmul.f32 %v4200, 1.442695
        %v4216 = vpow.pop %v4215
        %v4217 = vsel %vm907, %v4202, 0.0
        %4218 = vadd.xlane.f32.xlu0 %v4217
        %v4219 = vpop.xlane.xlu0 %4218
        %v4220 = vsel %vm907, %v4204, 0.0
        %4221 = vadd.xlane.f32.xlu0 %v4220
        %v4222 = vpop.xlane.xlu0 %4221
        %v4223 = vsel %vm907, %v4206, 0.0
        %4224 = vadd.xlane.f32.xlu0 %v4223
        %v4225 = vpop.xlane.xlu0 %4224
        %v4226 = vsel %vm907, %v4208, 0.0
        %4227 = vadd.xlane.f32.xlu0 %v4226
        %v4228 = vpop.xlane.xlu0 %4227
        %v4229 = vsel %vm907, %v4210, 0.0
        %4230 = vadd.xlane.f32.xlu0 %v4229
        %v4231 = vpop.xlane.xlu0 %4230
        %v4232 = vsel %vm907, %v4212, 0.0
        %4233 = vadd.xlane.f32.xlu0 %v4232
        %v4234 = vpop.xlane.xlu0 %4233
        %v4235 = vsel %vm907, %v4214, 0.0
        %4236 = vadd.xlane.f32.xlu0 %v4235
        %v4237 = vpop.xlane.xlu0 %4236
        %v4238 = vsel %vm907, %v4216, 0.0
        %4239 = vadd.xlane.f32.xlu0 %v4238
        %v4240 = vpop.xlane.xlu0 %4239
        %v4241 = vrcp.pop %v4219
        %v4242 = vrcp.pop %v4222
        %v4243 = vrcp.pop %v4225
        %v4244 = vrcp.pop %v4228
        %v4245 = vrcp.pop %v4231
        %v4246 = vrcp.pop %v4234
        %v4247 = vrcp.pop %v4237
        %v4248 = vrcp.pop %v4240
        %v4249 = vmul.f32 %v4202, %v4241
        %v4250 = vmul.f32 %v4204, %v4242
        %v4251 = vmul.f32 %v4206, %v4243
        %v4252 = vmul.f32 %v4208, %v4244
        %v4253 = vmul.f32 %v4210, %v4245
        %v4254 = vmul.f32 %v4212, %v4246
        %v4255 = vmul.f32 %v4214, %v4247
        %v4256 = vmul.f32 %v4216, %v4248
        %v4257 = vpack.c.bf16 %v4250, %v4249
        %v4258 = vpack.c.bf16 %v4252, %v4251
        %v4259 = vpack.c.bf16 %v4254, %v4253
        %v4260 = vpack.c.bf16 %v4256, %v4255
        %4261 = vrot.lane.b32.xlu0 %v3241, 48
        %v4262 = vpop.permute.xlu0 %4261
        %4263 = vrot.lane.b32.xlu0 %v3242, 48
        %v4264 = vpop.permute.xlu0 %4263
        %4265 = vrot.lane.b32.xlu0 %v3243, 48
        %v4266 = vpop.permute.xlu0 %4265
        %4267 = vrot.lane.b32.xlu0 %v3244, 48
        %v4268 = vpop.permute.xlu0 %4267
        %v4274 = vsel %vm907, %v4257, 0
        %v4277 = vsel %vm907, %v4258, 0
        %v4280 = vsel %vm907, %v4259, 0
        %v4283 = vsel %vm907, %v4260, 0
        %4285 = vmatprep.subr.bf16.mxu0 0
        %4286 = vmatpush1.bf16.msra.mxu0 0
        %4287 = vmatprep.subr.bf16.mxu0 0
        %4288 = vmatpush1.bf16.msra.mxu0 0
        %4289 = vmatprep.subr.bf16.mxu0 0
        %4290 = vmatpush1.bf16.msra.mxu0 0
        %4291 = vmatprep.subr.bf16.mxu0 0
        %4292 = vmatpush1.bf16.msra.mxu0 0
        %4293 = vmatprep.subr.bf16.mxu0 0
        %4294 = vmatpush1.bf16.msra.mxu0 %v4268
        %4295 = vmatprep.subr.bf16.mxu0 0
        %4296 = vmatpush1.bf16.msra.mxu0 %v4266
        %4297 = vmatprep.subr.bf16.mxu0 0
        %4298 = vmatpush1.bf16.msra.mxu0 %v4264
        %4299 = vmatprep.subr.bf16.mxu0 0
        %4300 = vmatpush1.bf16.msra.mxu0 %v4262
        %4301 = vmatprep.subr.bf16.mxu0 0
        %4302 = vmatpush2.bf16.msra.mxu0 0
        %4303 = vmatprep.subr.bf16.mxu0 0
        %4304 = vmatpush2.bf16.msra.mxu0 0
        %4305 = vmatprep.subr.bf16.mxu0 0
        %4306 = vmatpush2.bf16.msra.mxu0 0
        %4307 = vmatprep.subr.bf16.mxu0 0
        %4308 = vmatpush2.bf16.msra.mxu0 0
        %4309 = vmatprep.subr.bf16.mxu0 0
        %4310 = vmatpush2.bf16.msra.mxu0 0
        %4311 = vmatprep.subr.bf16.mxu0 0
        %4312 = vmatpush2.bf16.msra.mxu0 0
        %4313 = vmatprep.subr.bf16.mxu0 0
        %4314 = vmatpush2.bf16.msra.mxu0 0
        %4315 = vmatprep.subr.bf16.mxu0 0
        %4316 = vmatpush2.bf16.msra.mxu0 0
        %4317 = vmatprep.mubr.bf16.mxu0 0
        %4318 = vmatmul.mubr.bf16.gmra.mxu0 %v4274
        %v4319 = vpop.f32.mrf.mxu0
        %v4320 = vadd.f32 0.0, %v4319
        %v4321 = vpop.f32.mrf.mxu0
        %v4322 = vpop.f32.mrf.mxu0
        %v4323 = vadd.f32 0.0, %v4322
        %v4324 = vpop.f32.mrf.mxu0
        %4325 = vmatprep.mubr.bf16.mxu0 0
        %4326 = vmatmul.mubr.bf16.gmra.mxu0 %v4277
        %v4327 = vpop.f32.mrf.mxu0
        %v4328 = vadd.f32 0.0, %v4327
        %v4329 = vpop.f32.mrf.mxu0
        %v4330 = vpop.f32.mrf.mxu0
        %v4331 = vadd.f32 0.0, %v4330
        %v4332 = vpop.f32.mrf.mxu0
        %4333 = vmatprep.mubr.bf16.mxu0 0
        %4334 = vmatmul.mubr.bf16.gmra.mxu0 %v4280
        %v4335 = vpop.f32.mrf.mxu0
        %v4336 = vadd.f32 0.0, %v4335
        %v4337 = vpop.f32.mrf.mxu0
        %v4338 = vpop.f32.mrf.mxu0
        %v4339 = vadd.f32 0.0, %v4338
        %v4340 = vpop.f32.mrf.mxu0
        %4341 = vmatprep.mubr.bf16.mxu0 0
        %4342 = vmatmul.mubr.bf16.gmra.mxu0 %v4283
        %v4343 = vpop.f32.mrf.mxu0
        %v4344 = vadd.f32 0.0, %v4343
        %v4345 = vpop.f32.mrf.mxu0
        %v4346 = vpop.f32.mrf.mxu0
        %v4347 = vadd.f32 0.0, %v4346
        %v4348 = vpop.f32.mrf.mxu0
        %4349 = vdwg.mxu0
        %4358 = vrot.lane.b32.xlu0 %v4320, 16
        %v4359 = vpop.permute.xlu0 %4358
        %4360 = vrot.lane.b32.xlu0 %v4323, 16
        %v4361 = vpop.permute.xlu0 %4360
        %4362 = vrot.lane.b32.xlu0 %v4328, 16
        %v4363 = vpop.permute.xlu0 %4362
        %4364 = vrot.lane.b32.xlu0 %v4331, 16
        %v4365 = vpop.permute.xlu0 %4364
        %4366 = vrot.lane.b32.xlu0 %v4336, 16
        %v4367 = vpop.permute.xlu0 %4366
        %4368 = vrot.lane.b32.xlu0 %v4339, 16
        %v4369 = vpop.permute.xlu0 %4368
        %4370 = vrot.lane.b32.xlu0 %v4344, 16
        %v4371 = vpop.permute.xlu0 %4370
        %4372 = vrot.lane.b32.xlu0 %v4347, 16
        %v4373 = vpop.permute.xlu0 %4372
        %4382 = vst.msk [vmem:[#allocation2] sm:$0xff] %vm1876, %v4359
        %4383 = vst.msk [vmem:[#allocation2 + $0x8] sm:$0xff] %vm1876, %v4361
        %4384 = vst.msk [vmem:[#allocation2 + $0x10] sm:$0xff] %vm1876, %v4363
        %4385 = vst.msk [vmem:[#allocation2 + $0x18] sm:$0xff] %vm1876, %v4365
        %4386 = vst.msk [vmem:[#allocation2 + $0x20] sm:$0xff] %vm1876, %v4367
        %4387 = vst.msk [vmem:[#allocation2 + $0x28] sm:$0xff] %vm1876, %v4369
        %4388 = vst.msk [vmem:[#allocation2 + $0x30] sm:$0xff] %vm1876, %v4371
        %4389 = vst.msk [vmem:[#allocation2 + $0x38] sm:$0xff] %vm1876, %v4373
        %4390 = vrot.lane.b32.xlu0 %v3211, 72
        %v4391 = vpop.permute.xlu0 %4390
        %4392 = vrot.lane.b32.xlu0 %v3214, 72
        %v4393 = vpop.permute.xlu0 %4392
        %4394 = vrot.lane.b32.xlu0 %v3219, 72
        %v4395 = vpop.permute.xlu0 %4394
        %4396 = vrot.lane.b32.xlu0 %v3222, 72
        %v4397 = vpop.permute.xlu0 %4396
        %4398 = vrot.lane.b32.xlu0 %v3227, 72
        %v4399 = vpop.permute.xlu0 %4398
        %4400 = vrot.lane.b32.xlu0 %v3230, 72
        %v4401 = vpop.permute.xlu0 %4400
        %4402 = vrot.lane.b32.xlu0 %v3235, 72
        %v4403 = vpop.permute.xlu0 %4402
        %4404 = vrot.lane.b32.xlu0 %v3238, 72
        %v4405 = vpop.permute.xlu0 %4404
        %4414 = vxpose.xlu0.b32.start [1/16] %v4391, 128
        %4415 = vxpose.xlu0.b32.cont [2/16] %v4393, 128
        %4416 = vxpose.xlu0.b32.cont [3/16] %v4395, 128
        %4417 = vxpose.xlu0.b32.cont [4/16] %v4397, 128
        %4418 = vxpose.xlu0.b32.cont [5/16] %v4399, 128
        %4419 = vxpose.xlu0.b32.cont [6/16] %v4401, 128
        %4420 = vxpose.xlu0.b32.cont [7/16] %v4403, 128
        %4421 = vxpose.xlu0.b32.cont [8/16] %v4405, 128
        %4422 = vxpose.xlu0.b32.cont [9/16] 0.0, 128
        %4423 = vxpose.xlu0.b32.cont [10/16] 0.0, 128
        %4424 = vxpose.xlu0.b32.cont [11/16] 0.0, 128
        %4425 = vxpose.xlu0.b32.cont [12/16] 0.0, 128
        %4426 = vxpose.xlu0.b32.cont [13/16] 0.0, 128
        %4427 = vxpose.xlu0.b32.cont [14/16] 0.0, 128
        %4428 = vxpose.xlu0.b32.cont [15/16] 0.0, 128
        %4429 = vxpose.xlu0.b32.end [16/16] 0.0, 128
        %v4430 = vpop.trf.xlu0
        %v4431 = vpop.trf.xlu0
        %v4432 = vpop.trf.xlu0
        %v4433 = vpop.trf.xlu0
        %v4434 = vpop.trf.xlu0
        %v4435 = vpop.trf.xlu0
        %v4436 = vpop.trf.xlu0
        %v4437 = vpop.trf.xlu0
        %v4438 = vpop.trf.xlu0
        %v4439 = vpop.trf.xlu0
        %v4440 = vpop.trf.xlu0
        %v4441 = vpop.trf.xlu0
        %v4442 = vpop.trf.xlu0
        %v4443 = vpop.trf.xlu0
        %v4444 = vpop.trf.xlu0
        %v4445 = vpop.trf.xlu0
        %v4446 = vpack.c.bf16 %v4430, %v4430
        %4447 = vrot.lane.b32.xlu0 %v3241, 104
        %v4448 = vpop.permute.xlu0 %4447
        %4449 = vrot.lane.b32.xlu0 %v3242, 104
        %v4450 = vpop.permute.xlu0 %4449
        %4451 = vrot.lane.b32.xlu0 %v3243, 104
        %v4452 = vpop.permute.xlu0 %4451
        %4453 = vrot.lane.b32.xlu0 %v3244, 104
        %v4454 = vpop.permute.xlu0 %4453
        %v4456 = vsel %vm801, %v4448, 0
        %v4459 = vsel %vm801, %v4450, 0
        %v4462 = vsel %vm801, %v4452, 0
        %v4465 = vsel %vm801, %v4454, 0
        %v4468 = vsel %vm814, %v4446, 0
        %4470 = vmatprep.subr.bf16.mxu0 0
        %4471 = vmatpush1.bf16.msra.mxu0 0
        %4472 = vmatprep.subr.bf16.mxu0 0
        %4473 = vmatpush1.bf16.msra.mxu0 0
        %4474 = vmatprep.subr.bf16.mxu0 0
        %4475 = vmatpush1.bf16.msra.mxu0 0
        %4476 = vmatprep.subr.bf16.mxu0 0
        %4477 = vmatpush1.bf16.msra.mxu0 0
        %4478 = vmatprep.subr.bf16.mxu0 0
        %4479 = vmatpush1.bf16.msra.mxu0 0
        %4480 = vmatprep.subr.bf16.mxu0 0
        %4481 = vmatpush1.bf16.msra.mxu0 0
        %4482 = vmatprep.subr.bf16.mxu0 0
        %4483 = vmatpush1.bf16.msra.mxu0 0
        %4484 = vmatprep.subr.bf16.mxu0 0
        %4485 = vmatpush1.bf16.msra.mxu0 %v4468
        %4486 = vmatprep.subr.bf16.mxu0 0
        %4487 = vmatpush2.bf16.msra.mxu0 0
        %4488 = vmatprep.subr.bf16.mxu0 0
        %4489 = vmatpush2.bf16.msra.mxu0 0
        %4490 = vmatprep.subr.bf16.mxu0 0
        %4491 = vmatpush2.bf16.msra.mxu0 0
        %4492 = vmatprep.subr.bf16.mxu0 0
        %4493 = vmatpush2.bf16.msra.mxu0 0
        %4494 = vmatprep.subr.bf16.mxu0 0
        %4495 = vmatpush2.bf16.msra.mxu0 0
        %4496 = vmatprep.subr.bf16.mxu0 0
        %4497 = vmatpush2.bf16.msra.mxu0 0
        %4498 = vmatprep.subr.bf16.mxu0 0
        %4499 = vmatpush2.bf16.msra.mxu0 0
        %4500 = vmatprep.subr.bf16.mxu0 0
        %4501 = vmatpush2.bf16.msra.mxu0 0
        %4502 = vmatprep.mubr.bf16.mxu0 0
        %4503 = vmatmul.mubr.bf16.gmra.mxu0 %v4456
        %v4504 = vpop.f32.mrf.mxu0
        %v4505 = vadd.f32 0.0, %v4504
        %v4506 = vpop.f32.mrf.mxu0
        %v4507 = vpop.f32.mrf.mxu0
        %v4508 = vadd.f32 0.0, %v4507
        %v4509 = vpop.f32.mrf.mxu0
        %4510 = vmatprep.mubr.bf16.mxu0 0
        %4511 = vmatmul.mubr.bf16.gmra.mxu0 %v4459
        %v4512 = vpop.f32.mrf.mxu0
        %v4513 = vadd.f32 0.0, %v4512
        %v4514 = vpop.f32.mrf.mxu0
        %v4515 = vpop.f32.mrf.mxu0
        %v4516 = vadd.f32 0.0, %v4515
        %v4517 = vpop.f32.mrf.mxu0
        %4518 = vmatprep.mubr.bf16.mxu0 0
        %4519 = vmatmul.mubr.bf16.gmra.mxu0 %v4462
        %v4520 = vpop.f32.mrf.mxu0
        %v4521 = vadd.f32 0.0, %v4520
        %v4522 = vpop.f32.mrf.mxu0
        %v4523 = vpop.f32.mrf.mxu0
        %v4524 = vadd.f32 0.0, %v4523
        %v4525 = vpop.f32.mrf.mxu0
        %4526 = vmatprep.mubr.bf16.mxu0 0
        %4527 = vmatmul.mubr.bf16.gmra.mxu0 %v4465
        %v4528 = vpop.f32.mrf.mxu0
        %v4529 = vadd.f32 0.0, %v4528
        %v4530 = vpop.f32.mrf.mxu0
        %v4531 = vpop.f32.mrf.mxu0
        %v4532 = vadd.f32 0.0, %v4531
        %v4533 = vpop.f32.mrf.mxu0
        %4534 = vdwg.mxu0
        %v4535 = vmul.f32 %v4505, 0.35355338
        %v4536 = vmul.f32 %v4508, 0.35355338
        %v4537 = vmul.f32 %v4513, 0.35355338
        %v4538 = vmul.f32 %v4516, 0.35355338
        %v4539 = vmul.f32 %v4521, 0.35355338
        %v4540 = vmul.f32 %v4524, 0.35355338
        %v4541 = vmul.f32 %v4529, 0.35355338
        %v4542 = vmul.f32 %v4532, 0.35355338
        %s4543 = scalar_lea.vmem [#allocation3], 448
        %v4544 = vld [vmem:[%s4543] sm:$0xff]
        %v4545 = vld [vmem:[%s4543 + $0x8] sm:$0xff]
        %v4546 = vld [vmem:[%s4543 + $0x10] sm:$0xff]
        %v4547 = vld [vmem:[%s4543 + $0x18] sm:$0xff]
        %v4548 = vld [vmem:[%s4543 + $0x20] sm:$0xff]
        %v4549 = vld [vmem:[%s4543 + $0x28] sm:$0xff]
        %v4550 = vld [vmem:[%s4543 + $0x30] sm:$0xff]
        %v4551 = vld [vmem:[%s4543 + $0x38] sm:$0xff]
        %v4552 = vadd.f32 %v4535, %v4544
        %v4553 = vadd.f32 %v4536, %v4545
        %v4554 = vadd.f32 %v4537, %v4546
        %v4555 = vadd.f32 %v4538, %v4547
        %v4556 = vadd.f32 %v4539, %v4548
        %v4557 = vadd.f32 %v4540, %v4549
        %v4558 = vadd.f32 %v4541, %v4550
        %v4559 = vadd.f32 %v4542, %v4551
        %v4560 = vsel %vm907, %v4552, -inf
        %4561 = vmax.xlane.f32.xlu0 %v4560
        %v4562 = vpop.xlane.xlu0 %4561
        %v4563 = vsel %vm907, %v4553, -inf
        %4564 = vmax.xlane.f32.xlu0 %v4563
        %v4565 = vpop.xlane.xlu0 %4564
        %v4566 = vsel %vm907, %v4554, -inf
        %4567 = vmax.xlane.f32.xlu0 %v4566
        %v4568 = vpop.xlane.xlu0 %4567
        %v4569 = vsel %vm907, %v4555, -inf
        %4570 = vmax.xlane.f32.xlu0 %v4569
        %v4571 = vpop.xlane.xlu0 %4570
        %v4572 = vsel %vm907, %v4556, -inf
        %4573 = vmax.xlane.f32.xlu0 %v4572
        %v4574 = vpop.xlane.xlu0 %4573
        %v4575 = vsel %vm907, %v4557, -inf
        %4576 = vmax.xlane.f32.xlu0 %v4575
        %v4577 = vpop.xlane.xlu0 %4576
        %v4578 = vsel %vm907, %v4558, -inf
        %4579 = vmax.xlane.f32.xlu0 %v4578
        %v4580 = vpop.xlane.xlu0 %4579
        %v4581 = vsel %vm907, %v4559, -inf
        %4582 = vmax.xlane.f32.xlu0 %v4581
        %v4583 = vpop.xlane.xlu0 %4582
        %v4584 = vsub.f32 %v4552, %v4562
        %v4585 = vsub.f32 %v4553, %v4565
        %v4586 = vsub.f32 %v4554, %v4568
        %v4587 = vsub.f32 %v4555, %v4571
        %v4588 = vsub.f32 %v4556, %v4574
        %v4589 = vsub.f32 %v4557, %v4577
        %v4590 = vsub.f32 %v4558, %v4580
        %v4591 = vsub.f32 %v4559, %v4583
        %v4592 = vmul.f32 %v4584, 1.442695
        %v4593 = vpow.pop %v4592
        %v4594 = vmul.f32 %v4585, 1.442695
        %v4595 = vpow.pop %v4594
        %v4596 = vmul.f32 %v4586, 1.442695
        %v4597 = vpow.pop %v4596
        %v4598 = vmul.f32 %v4587, 1.442695
        %v4599 = vpow.pop %v4598
        %v4600 = vmul.f32 %v4588, 1.442695
        %v4601 = vpow.pop %v4600
        %v4602 = vmul.f32 %v4589, 1.442695
        %v4603 = vpow.pop %v4602
        %v4604 = vmul.f32 %v4590, 1.442695
        %v4605 = vpow.pop %v4604
        %v4606 = vmul.f32 %v4591, 1.442695
        %v4607 = vpow.pop %v4606
        %v4608 = vsel %vm907, %v4593, 0.0
        %4609 = vadd.xlane.f32.xlu0 %v4608
        %v4610 = vpop.xlane.xlu0 %4609
        %v4611 = vsel %vm907, %v4595, 0.0
        %4612 = vadd.xlane.f32.xlu0 %v4611
        %v4613 = vpop.xlane.xlu0 %4612
        %v4614 = vsel %vm907, %v4597, 0.0
        %4615 = vadd.xlane.f32.xlu0 %v4614
        %v4616 = vpop.xlane.xlu0 %4615
        %v4617 = vsel %vm907, %v4599, 0.0
        %4618 = vadd.xlane.f32.xlu0 %v4617
        %v4619 = vpop.xlane.xlu0 %4618
        %v4620 = vsel %vm907, %v4601, 0.0
        %4621 = vadd.xlane.f32.xlu0 %v4620
        %v4622 = vpop.xlane.xlu0 %4621
        %v4623 = vsel %vm907, %v4603, 0.0
        %4624 = vadd.xlane.f32.xlu0 %v4623
        %v4625 = vpop.xlane.xlu0 %4624
        %v4626 = vsel %vm907, %v4605, 0.0
        %4627 = vadd.xlane.f32.xlu0 %v4626
        %v4628 = vpop.xlane.xlu0 %4627
        %v4629 = vsel %vm907, %v4607, 0.0
        %4630 = vadd.xlane.f32.xlu0 %v4629
        %v4631 = vpop.xlane.xlu0 %4630
        %v4632 = vrcp.pop %v4610
        %v4633 = vrcp.pop %v4613
        %v4634 = vrcp.pop %v4616
        %v4635 = vrcp.pop %v4619
        %v4636 = vrcp.pop %v4622
        %v4637 = vrcp.pop %v4625
        %v4638 = vrcp.pop %v4628
        %v4639 = vrcp.pop %v4631
        %v4640 = vmul.f32 %v4593, %v4632
        %v4641 = vmul.f32 %v4595, %v4633
        %v4642 = vmul.f32 %v4597, %v4634
        %v4643 = vmul.f32 %v4599, %v4635
        %v4644 = vmul.f32 %v4601, %v4636
        %v4645 = vmul.f32 %v4603, %v4637
        %v4646 = vmul.f32 %v4605, %v4638
        %v4647 = vmul.f32 %v4607, %v4639
        %v4648 = vpack.c.bf16 %v4641, %v4640
        %v4649 = vpack.c.bf16 %v4643, %v4642
        %v4650 = vpack.c.bf16 %v4645, %v4644
        %v4651 = vpack.c.bf16 %v4647, %v4646
        %4652 = vrot.lane.b32.xlu0 %v3241, 40
        %v4653 = vpop.permute.xlu0 %4652
        %4654 = vrot.lane.b32.xlu0 %v3242, 40
        %v4655 = vpop.permute.xlu0 %4654
        %4656 = vrot.lane.b32.xlu0 %v3243, 40
        %v4657 = vpop.permute.xlu0 %4656
        %4658 = vrot.lane.b32.xlu0 %v3244, 40
        %v4659 = vpop.permute.xlu0 %4658
        %v4665 = vsel %vm907, %v4648, 0
        %v4668 = vsel %vm907, %v4649, 0
        %v4671 = vsel %vm907, %v4650, 0
        %v4674 = vsel %vm907, %v4651, 0
        %4676 = vmatprep.subr.bf16.mxu0 0
        %4677 = vmatpush1.bf16.msra.mxu0 0
        %4678 = vmatprep.subr.bf16.mxu0 0
        %4679 = vmatpush1.bf16.msra.mxu0 0
        %4680 = vmatprep.subr.bf16.mxu0 0
        %4681 = vmatpush1.bf16.msra.mxu0 0
        %4682 = vmatprep.subr.bf16.mxu0 0
        %4683 = vmatpush1.bf16.msra.mxu0 0
        %4684 = vmatprep.subr.bf16.mxu0 0
        %4685 = vmatpush1.bf16.msra.mxu0 %v4659
        %4686 = vmatprep.subr.bf16.mxu0 0
        %4687 = vmatpush1.bf16.msra.mxu0 %v4657
        %4688 = vmatprep.subr.bf16.mxu0 0
        %4689 = vmatpush1.bf16.msra.mxu0 %v4655
        %4690 = vmatprep.subr.bf16.mxu0 0
        %4691 = vmatpush1.bf16.msra.mxu0 %v4653
        %4692 = vmatprep.subr.bf16.mxu0 0
        %4693 = vmatpush2.bf16.msra.mxu0 0
        %4694 = vmatprep.subr.bf16.mxu0 0
        %4695 = vmatpush2.bf16.msra.mxu0 0
        %4696 = vmatprep.subr.bf16.mxu0 0
        %4697 = vmatpush2.bf16.msra.mxu0 0
        %4698 = vmatprep.subr.bf16.mxu0 0
        %4699 = vmatpush2.bf16.msra.mxu0 0
        %4700 = vmatprep.subr.bf16.mxu0 0
        %4701 = vmatpush2.bf16.msra.mxu0 0
        %4702 = vmatprep.subr.bf16.mxu0 0
        %4703 = vmatpush2.bf16.msra.mxu0 0
        %4704 = vmatprep.subr.bf16.mxu0 0
        %4705 = vmatpush2.bf16.msra.mxu0 0
        %4706 = vmatprep.subr.bf16.mxu0 0
        %4707 = vmatpush2.bf16.msra.mxu0 0
        %4708 = vmatprep.mubr.bf16.mxu0 0
        %4709 = vmatmul.mubr.bf16.gmra.mxu0 %v4665
        %v4710 = vpop.f32.mrf.mxu0
        %v4711 = vadd.f32 0.0, %v4710
        %v4712 = vpop.f32.mrf.mxu0
        %v4713 = vpop.f32.mrf.mxu0
        %v4714 = vadd.f32 0.0, %v4713
        %v4715 = vpop.f32.mrf.mxu0
        %4716 = vmatprep.mubr.bf16.mxu0 0
        %4717 = vmatmul.mubr.bf16.gmra.mxu0 %v4668
        %v4718 = vpop.f32.mrf.mxu0
        %v4719 = vadd.f32 0.0, %v4718
        %v4720 = vpop.f32.mrf.mxu0
        %v4721 = vpop.f32.mrf.mxu0
        %v4722 = vadd.f32 0.0, %v4721
        %v4723 = vpop.f32.mrf.mxu0
        %4724 = vmatprep.mubr.bf16.mxu0 0
        %4725 = vmatmul.mubr.bf16.gmra.mxu0 %v4671
        %v4726 = vpop.f32.mrf.mxu0
        %v4727 = vadd.f32 0.0, %v4726
        %v4728 = vpop.f32.mrf.mxu0
        %v4729 = vpop.f32.mrf.mxu0
        %v4730 = vadd.f32 0.0, %v4729
        %v4731 = vpop.f32.mrf.mxu0
        %4732 = vmatprep.mubr.bf16.mxu0 0
        %4733 = vmatmul.mubr.bf16.gmra.mxu0 %v4674
        %v4734 = vpop.f32.mrf.mxu0
        %v4735 = vadd.f32 0.0, %v4734
        %v4736 = vpop.f32.mrf.mxu0
        %v4737 = vpop.f32.mrf.mxu0
        %v4738 = vadd.f32 0.0, %v4737
        %v4739 = vpop.f32.mrf.mxu0
        %4740 = vdwg.mxu0
        %4749 = vrot.lane.b32.xlu0 %v4711, 24
        %v4750 = vpop.permute.xlu0 %4749
        %4751 = vrot.lane.b32.xlu0 %v4714, 24
        %v4752 = vpop.permute.xlu0 %4751
        %4753 = vrot.lane.b32.xlu0 %v4719, 24
        %v4754 = vpop.permute.xlu0 %4753
        %4755 = vrot.lane.b32.xlu0 %v4722, 24
        %v4756 = vpop.permute.xlu0 %4755
        %4757 = vrot.lane.b32.xlu0 %v4727, 24
        %v4758 = vpop.permute.xlu0 %4757
        %4759 = vrot.lane.b32.xlu0 %v4730, 24
        %v4760 = vpop.permute.xlu0 %4759
        %4761 = vrot.lane.b32.xlu0 %v4735, 24
        %v4762 = vpop.permute.xlu0 %4761
        %4763 = vrot.lane.b32.xlu0 %v4738, 24
        %v4764 = vpop.permute.xlu0 %4763
        %4773 = vst.msk [vmem:[#allocation2] sm:$0xff] %vm2268, %v4750
        %4774 = vst.msk [vmem:[#allocation2 + $0x8] sm:$0xff] %vm2268, %v4752
        %4775 = vst.msk [vmem:[#allocation2 + $0x10] sm:$0xff] %vm2268, %v4754
        %4776 = vst.msk [vmem:[#allocation2 + $0x18] sm:$0xff] %vm2268, %v4756
        %4777 = vst.msk [vmem:[#allocation2 + $0x20] sm:$0xff] %vm2268, %v4758
        %4778 = vst.msk [vmem:[#allocation2 + $0x28] sm:$0xff] %vm2268, %v4760
        %4779 = vst.msk [vmem:[#allocation2 + $0x30] sm:$0xff] %vm2268, %v4762
        %4780 = vst.msk [vmem:[#allocation2 + $0x38] sm:$0xff] %vm2268, %v4764
        %v4781 = vld [vmem:[#allocation2] sm:$0xff]
        %v4782 = vld [vmem:[#allocation2 + $0x8] sm:$0xff]
        %v4783 = vld [vmem:[#allocation2 + $0x10] sm:$0xff]
        %v4784 = vld [vmem:[#allocation2 + $0x18] sm:$0xff]
        %v4785 = vld [vmem:[#allocation2 + $0x20] sm:$0xff]
        %v4786 = vld [vmem:[#allocation2 + $0x28] sm:$0xff]
        %v4787 = vld [vmem:[#allocation2 + $0x30] sm:$0xff]
        %v4788 = vld [vmem:[#allocation2 + $0x38] sm:$0xff]
        %v4789 = vpack.c.bf16 %v4782, %v4781
        %v4790 = vpack.c.bf16 %v4784, %v4783
        %v4791 = vpack.c.bf16 %v4786, %v4785
        %v4792 = vpack.c.bf16 %v4788, %v4787
        %s4793 = scalar_lea.vmem %s5, 16
        %v4794 = vld [vmem:[%s4793] sm:$0xf]
        %v4795 = vld [vmem:[%s4793 + $0x4] sm:$0xf]
        %v4796 = vld [vmem:[%s4793 + $0x8] sm:$0xf]
        %v4797 = vld [vmem:[%s4793 + $0xc] sm:$0xf]
        %s4798 = scalar_lea.vmem %s6, 1
        %v4799 = vld [vmem:[%s4798] sm:$0x1]
        %v4801 = vlaneseq
        %v4802 = vshrl.u32 %v4801, 7
        %v4803 = vsub.s32 0, %v4802
        %v4804 = vrot.slane %v4799, %v4803
        %v4810 = vunpack.c.l.b16 %v4794
        %v4811 = vunpack.c.l.b16 %v4795
        %v4812 = vunpack.c.l.b16 %v4796
        %v4813 = vunpack.c.l.b16 %v4797
        %v4814 = vpack.c.b16 %v4811, %v4810
        %v4815 = vpack.c.b16 %v4813, %v4812
        %v4819 = vsel %vm494, %v4789, 0
        %v4822 = vsel %vm494, %v4790, 0
        %v4825 = vsel %vm494, %v4791, 0
        %v4828 = vsel %vm494, %v4792, 0
        %4830 = vmatprep.subr.bf16.mxu0 0
        %4831 = vmatpush1.bf16.msra.mxu0 0
        %4832 = vmatprep.subr.bf16.mxu0 0
        %4833 = vmatpush1.bf16.msra.mxu0 0
        %4834 = vmatprep.subr.bf16.mxu0 0
        %4835 = vmatpush1.bf16.msra.mxu0 0
        %4836 = vmatprep.subr.bf16.mxu0 0
        %4837 = vmatpush1.bf16.msra.mxu0 0
        %4838 = vmatprep.subr.bf16.mxu0 0
        %4839 = vmatpush1.bf16.msra.mxu0 0
        %4840 = vmatprep.subr.bf16.mxu0 0
        %4841 = vmatpush1.bf16.msra.mxu0 0
        %4842 = vmatprep.subr.bf16.mxu0 0
        %4843 = vmatpush1.bf16.msra.mxu0 %v4815
        %4844 = vmatprep.subr.bf16.mxu0 0
        %4845 = vmatpush1.bf16.msra.mxu0 %v4814
        %4846 = vmatprep.subr.bf16.mxu0 0
        %4847 = vmatpush2.bf16.msra.mxu0 0
        %4848 = vmatprep.subr.bf16.mxu0 0
        %4849 = vmatpush2.bf16.msra.mxu0 0
        %4850 = vmatprep.subr.bf16.mxu0 0
        %4851 = vmatpush2.bf16.msra.mxu0 0
        %4852 = vmatprep.subr.bf16.mxu0 0
        %4853 = vmatpush2.bf16.msra.mxu0 0
        %4854 = vmatprep.subr.bf16.mxu0 0
        %4855 = vmatpush2.bf16.msra.mxu0 0
        %4856 = vmatprep.subr.bf16.mxu0 0
        %4857 = vmatpush2.bf16.msra.mxu0 0
        %4858 = vmatprep.subr.bf16.mxu0 0
        %4859 = vmatpush2.bf16.msra.mxu0 0
        %4860 = vmatprep.subr.bf16.mxu0 0
        %4861 = vmatpush2.bf16.msra.mxu0 0
        %4862 = vmatprep.mubr.bf16.mxu0 0
        %4863 = vmatmul.mubr.bf16.gmra.mxu0 %v4819
        %v4864 = vpop.f32.mrf.mxu0
        %v4865 = vadd.f32 %v4804, %v4864
        %v4866 = vpop.f32.mrf.mxu0
        %v4867 = vpop.f32.mrf.mxu0
        %v4868 = vadd.f32 %v4804, %v4867
        %v4869 = vpop.f32.mrf.mxu0
        %4870 = vmatprep.mubr.bf16.mxu0 0
        %4871 = vmatmul.mubr.bf16.gmra.mxu0 %v4822
        %v4872 = vpop.f32.mrf.mxu0
        %v4873 = vadd.f32 %v4804, %v4872
        %v4874 = vpop.f32.mrf.mxu0
        %v4875 = vpop.f32.mrf.mxu0
        %v4876 = vadd.f32 %v4804, %v4875
        %v4877 = vpop.f32.mrf.mxu0
        %4878 = vmatprep.mubr.bf16.mxu0 0
        %4879 = vmatmul.mubr.bf16.gmra.mxu0 %v4825
        %v4880 = vpop.f32.mrf.mxu0
        %v4881 = vadd.f32 %v4804, %v4880
        %v4882 = vpop.f32.mrf.mxu0
        %v4883 = vpop.f32.mrf.mxu0
        %v4884 = vadd.f32 %v4804, %v4883
        %v4885 = vpop.f32.mrf.mxu0
        %4886 = vmatprep.mubr.bf16.mxu0 0
        %4887 = vmatmul.mubr.bf16.gmra.mxu0 %v4828
        %v4888 = vpop.f32.mrf.mxu0
        %v4889 = vadd.f32 %v4804, %v4888
        %v4890 = vpop.f32.mrf.mxu0
        %v4891 = vpop.f32.mrf.mxu0
        %v4892 = vadd.f32 %v4804, %v4891
        %v4893 = vpop.f32.mrf.mxu0
        %4894 = vdwg.mxu0
        %v4895 = vadd.f32 %v2991, %v4865
        %v4896 = vadd.f32 %v2992, %v4868
        %v4897 = vadd.f32 %v2993, %v4873
        %v4898 = vadd.f32 %v2994, %v4876
        %v4899 = vadd.f32 %v2995, %v4881
        %v4900 = vadd.f32 %v2996, %v4884
        %v4901 = vadd.f32 %v2997, %v4889
        %v4902 = vadd.f32 %v2998, %v4892
        %s4903 = scalar_lea.vmem %s7, 1
        %v4904 = vld [vmem:[%s4903] sm:$0x1]
        %s4905 = scalar_lea.vmem %s8, 1
        %v4906 = vld [vmem:[%s4905] sm:$0x1]
        %v4907 = vsel %vm494, %v4895, 0.0
        %4908 = vadd.xlane.f32.xlu0 %v4907
        %v4909 = vpop.xlane.xlu0 %4908
        %v4910 = vsel %vm494, %v4896, 0.0
        %4911 = vadd.xlane.f32.xlu0 %v4910
        %v4912 = vpop.xlane.xlu0 %4911
        %v4913 = vsel %vm494, %v4897, 0.0
        %4914 = vadd.xlane.f32.xlu0 %v4913
        %v4915 = vpop.xlane.xlu0 %4914
        %v4916 = vsel %vm494, %v4898, 0.0
        %4917 = vadd.xlane.f32.xlu0 %v4916
        %v4918 = vpop.xlane.xlu0 %4917
        %v4919 = vsel %vm494, %v4899, 0.0
        %4920 = vadd.xlane.f32.xlu0 %v4919
        %v4921 = vpop.xlane.xlu0 %4920
        %v4922 = vsel %vm494, %v4900, 0.0
        %4923 = vadd.xlane.f32.xlu0 %v4922
        %v4924 = vpop.xlane.xlu0 %4923
        %v4925 = vsel %vm494, %v4901, 0.0
        %4926 = vadd.xlane.f32.xlu0 %v4925
        %v4927 = vpop.xlane.xlu0 %4926
        %v4928 = vsel %vm494, %v4902, 0.0
        %4929 = vadd.xlane.f32.xlu0 %v4928
        %v4930 = vpop.xlane.xlu0 %4929
        %v4931 = vmul.f32 %v4909, %v519
        %v4932 = vmul.f32 %v4912, %v519
        %v4933 = vmul.f32 %v4915, %v519
        %v4934 = vmul.f32 %v4918, %v519
        %v4935 = vmul.f32 %v4921, %v519
        %v4936 = vmul.f32 %v4924, %v519
        %v4937 = vmul.f32 %v4927, %v519
        %v4938 = vmul.f32 %v4930, %v519
        %v4939 = vsub.f32 %v4895, %v4931
        %v4940 = vsub.f32 %v4896, %v4932
        %v4941 = vsub.f32 %v4897, %v4933
        %v4942 = vsub.f32 %v4898, %v4934
        %v4943 = vsub.f32 %v4899, %v4935
        %v4944 = vsub.f32 %v4900, %v4936
        %v4945 = vsub.f32 %v4901, %v4937
        %v4946 = vsub.f32 %v4902, %v4938
        %v4947 = vmul.f32 %v4939, %v4939
        %v4948 = vmul.f32 %v4940, %v4940
        %v4949 = vmul.f32 %v4941, %v4941
        %v4950 = vmul.f32 %v4942, %v4942
        %v4951 = vmul.f32 %v4943, %v4943
        %v4952 = vmul.f32 %v4944, %v4944
        %v4953 = vmul.f32 %v4945, %v4945
        %v4954 = vmul.f32 %v4946, %v4946
        %v4955 = vsel %vm494, %v4947, 0.0
        %4956 = vadd.xlane.f32.xlu0 %v4955
        %v4957 = vpop.xlane.xlu0 %4956
        %v4958 = vsel %vm494, %v4948, 0.0
        %4959 = vadd.xlane.f32.xlu0 %v4958
        %v4960 = vpop.xlane.xlu0 %4959
        %v4961 = vsel %vm494, %v4949, 0.0
        %4962 = vadd.xlane.f32.xlu0 %v4961
        %v4963 = vpop.xlane.xlu0 %4962
        %v4964 = vsel %vm494, %v4950, 0.0
        %4965 = vadd.xlane.f32.xlu0 %v4964
        %v4966 = vpop.xlane.xlu0 %4965
        %v4967 = vsel %vm494, %v4951, 0.0
        %4968 = vadd.xlane.f32.xlu0 %v4967
        %v4969 = vpop.xlane.xlu0 %4968
        %v4970 = vsel %vm494, %v4952, 0.0
        %4971 = vadd.xlane.f32.xlu0 %v4970
        %v4972 = vpop.xlane.xlu0 %4971
        %v4973 = vsel %vm494, %v4953, 0.0
        %4974 = vadd.xlane.f32.xlu0 %v4973
        %v4975 = vpop.xlane.xlu0 %4974
        %v4976 = vsel %vm494, %v4954, 0.0
        %4977 = vadd.xlane.f32.xlu0 %v4976
        %v4978 = vpop.xlane.xlu0 %4977
        %v4979 = vmul.f32 %v4957, %v519
        %v4980 = vmul.f32 %v4960, %v519
        %v4981 = vmul.f32 %v4963, %v519
        %v4982 = vmul.f32 %v4966, %v519
        %v4983 = vmul.f32 %v4969, %v519
        %v4984 = vmul.f32 %v4972, %v519
        %v4985 = vmul.f32 %v4975, %v519
        %v4986 = vmul.f32 %v4978, %v519
        %v4987 = vadd.f32 %v4979, 1e-05
        %v4988 = vadd.f32 %v4980, 1e-05
        %v4989 = vadd.f32 %v4981, 1e-05
        %v4990 = vadd.f32 %v4982, 1e-05
        %v4991 = vadd.f32 %v4983, 1e-05
        %v4992 = vadd.f32 %v4984, 1e-05
        %v4993 = vadd.f32 %v4985, 1e-05
        %v4994 = vadd.f32 %v4986, 1e-05
        %v4995 = vrsqrt.pop %v4987
        %v4996 = vrsqrt.pop %v4988
        %v4997 = vrsqrt.pop %v4989
        %v4998 = vrsqrt.pop %v4990
        %v4999 = vrsqrt.pop %v4991
        %v5000 = vrsqrt.pop %v4992
        %v5001 = vrsqrt.pop %v4993
        %v5002 = vrsqrt.pop %v4994
        %v5003 = vmul.f32 %v4939, %v4995
        %v5004 = vmul.f32 %v4940, %v4996
        %v5005 = vmul.f32 %v4941, %v4997
        %v5006 = vmul.f32 %v4942, %v4998
        %v5007 = vmul.f32 %v4943, %v4999
        %v5008 = vmul.f32 %v4944, %v5000
        %v5009 = vmul.f32 %v4945, %v5001
        %v5010 = vmul.f32 %v4946, %v5002
        %v5012 = vlaneseq
        %v5013 = vshrl.u32 %v5012, 7
        %v5014 = vsub.s32 0, %v5013
        %v5015 = vrot.slane %v4904, %v5014
        %v5017 = vmul.f32 %v5003, %v5015
        %v5018 = vmul.f32 %v5004, %v5015
        %v5019 = vmul.f32 %v5005, %v5015
        %v5020 = vmul.f32 %v5006, %v5015
        %v5021 = vmul.f32 %v5007, %v5015
        %v5022 = vmul.f32 %v5008, %v5015
        %v5023 = vmul.f32 %v5009, %v5015
        %v5024 = vmul.f32 %v5010, %v5015
        %v5026 = vlaneseq
        %v5027 = vshrl.u32 %v5026, 7
        %v5028 = vsub.s32 0, %v5027
        %v5029 = vrot.slane %v4906, %v5028
        %v5031 = vadd.f32 %v5017, %v5029
        %v5032 = vadd.f32 %v5018, %v5029
        %v5033 = vadd.f32 %v5019, %v5029
        %v5034 = vadd.f32 %v5020, %v5029
        %v5035 = vadd.f32 %v5021, %v5029
        %v5036 = vadd.f32 %v5022, %v5029
        %v5037 = vadd.f32 %v5023, %v5029
        %v5038 = vadd.f32 %v5024, %v5029
        %v5039 = vpack.c.bf16 %v5032, %v5031
        %v5040 = vpack.c.bf16 %v5034, %v5033
        %v5041 = vpack.c.bf16 %v5036, %v5035
        %v5042 = vpack.c.bf16 %v5038, %v5037
        %s5043 = scalar_lea.vmem %s9, 16
        %v5044 = vld [vmem:[%s5043] sm:$0xf]
        %v5045 = vld [vmem:[%s5043 + $0x4] sm:$0xf]
        %v5046 = vld [vmem:[%s5043 + $0x8] sm:$0xf]
        %v5047 = vld [vmem:[%s5043 + $0xc] sm:$0xf]
        %s5048 = scalar_lea.vmem %s10, 1
        %v5049 = vld [vmem:[%s5048] sm:$0x1]
        %v5051 = vlaneseq
        %v5052 = vshrl.u32 %v5051, 7
        %v5053 = vsub.s32 0, %v5052
        %v5054 = vrot.slane %v5049, %v5053
        %v5060 = vunpack.c.l.b16 %v5044
        %v5061 = vunpack.c.l.b16 %v5045
        %v5062 = vunpack.c.l.b16 %v5046
        %v5063 = vunpack.c.l.b16 %v5047
        %v5064 = vpack.c.b16 %v5061, %v5060
        %v5065 = vpack.c.b16 %v5063, %v5062
        %v5069 = vsel %vm494, %v5039, 0
        %v5072 = vsel %vm494, %v5040, 0
        %v5075 = vsel %vm494, %v5041, 0
        %v5078 = vsel %vm494, %v5042, 0
        %5080 = vmatprep.subr.bf16.mxu0 0
        %5081 = vmatpush1.bf16.msra.mxu0 0
        %5082 = vmatprep.subr.bf16.mxu0 0
        %5083 = vmatpush1.bf16.msra.mxu0 0
        %5084 = vmatprep.subr.bf16.mxu0 0
        %5085 = vmatpush1.bf16.msra.mxu0 0
        %5086 = vmatprep.subr.bf16.mxu0 0
        %5087 = vmatpush1.bf16.msra.mxu0 0
        %5088 = vmatprep.subr.bf16.mxu0 0
        %5089 = vmatpush1.bf16.msra.mxu0 0
        %5090 = vmatprep.subr.bf16.mxu0 0
        %5091 = vmatpush1.bf16.msra.mxu0 0
        %5092 = vmatprep.subr.bf16.mxu0 0
        %5093 = vmatpush1.bf16.msra.mxu0 %v5065
        %5094 = vmatprep.subr.bf16.mxu0 0
        %5095 = vmatpush1.bf16.msra.mxu0 %v5064
        %5096 = vmatprep.subr.bf16.mxu0 0
        %5097 = vmatpush2.bf16.msra.mxu0 0
        %5098 = vmatprep.subr.bf16.mxu0 0
        %5099 = vmatpush2.bf16.msra.mxu0 0
        %5100 = vmatprep.subr.bf16.mxu0 0
        %5101 = vmatpush2.bf16.msra.mxu0 0
        %5102 = vmatprep.subr.bf16.mxu0 0
        %5103 = vmatpush2.bf16.msra.mxu0 0
        %5104 = vmatprep.subr.bf16.mxu0 0
        %5105 = vmatpush2.bf16.msra.mxu0 0
        %5106 = vmatprep.subr.bf16.mxu0 0
        %5107 = vmatpush2.bf16.msra.mxu0 0
        %5108 = vmatprep.subr.bf16.mxu0 0
        %5109 = vmatpush2.bf16.msra.mxu0 0
        %5110 = vmatprep.subr.bf16.mxu0 0
        %5111 = vmatpush2.bf16.msra.mxu0 0
        %5112 = vmatprep.mubr.bf16.mxu0 0
        %5113 = vmatmul.mubr.bf16.gmra.mxu0 %v5069
        %v5114 = vpop.f32.mrf.mxu0
        %v5115 = vadd.f32 %v5054, %v5114
        %v5116 = vpop.f32.mrf.mxu0
        %v5117 = vpop.f32.mrf.mxu0
        %v5118 = vadd.f32 %v5054, %v5117
        %v5119 = vpop.f32.mrf.mxu0
        %5120 = vmatprep.mubr.bf16.mxu0 0
        %5121 = vmatmul.mubr.bf16.gmra.mxu0 %v5072
        %v5122 = vpop.f32.mrf.mxu0
        %v5123 = vadd.f32 %v5054, %v5122
        %v5124 = vpop.f32.mrf.mxu0
        %v5125 = vpop.f32.mrf.mxu0
        %v5126 = vadd.f32 %v5054, %v5125
        %v5127 = vpop.f32.mrf.mxu0
        %5128 = vmatprep.mubr.bf16.mxu0 0
        %5129 = vmatmul.mubr.bf16.gmra.mxu0 %v5075
        %v5130 = vpop.f32.mrf.mxu0
        %v5131 = vadd.f32 %v5054, %v5130
        %v5132 = vpop.f32.mrf.mxu0
        %v5133 = vpop.f32.mrf.mxu0
        %v5134 = vadd.f32 %v5054, %v5133
        %v5135 = vpop.f32.mrf.mxu0
        %5136 = vmatprep.mubr.bf16.mxu0 0
        %5137 = vmatmul.mubr.bf16.gmra.mxu0 %v5078
        %v5138 = vpop.f32.mrf.mxu0
        %v5139 = vadd.f32 %v5054, %v5138
        %v5140 = vpop.f32.mrf.mxu0
        %v5141 = vpop.f32.mrf.mxu0
        %v5142 = vadd.f32 %v5054, %v5141
        %v5143 = vpop.f32.mrf.mxu0
        %5144 = vdwg.mxu0
        %v5145 = vmul.f32 %v5115, 0.70710677
        %v5146 = vmul.f32 %v5118, 0.70710677
        %v5147 = vmul.f32 %v5123, 0.70710677
        %v5148 = vmul.f32 %v5126, 0.70710677
        %v5149 = vmul.f32 %v5131, 0.70710677
        %v5150 = vmul.f32 %v5134, 0.70710677
        %v5151 = vmul.f32 %v5139, 0.70710677
        %v5152 = vmul.f32 %v5142, 0.70710677
        %v5153 = vand.u32 2147483647, %v5145
        %v5154 = vand.u32 2147483647, %v5146
        %v5155 = vand.u32 2147483647, %v5147
        %v5156 = vand.u32 2147483647, %v5148
        %v5157 = vand.u32 2147483647, %v5149
        %v5158 = vand.u32 2147483647, %v5150
        %v5159 = vand.u32 2147483647, %v5151
        %v5160 = vand.u32 2147483647, %v5152
        %v5161 = vmul.f32 %v5153, 0.3275911
        %v5162 = vmul.f32 %v5154, 0.3275911
        %v5163 = vmul.f32 %v5155, 0.3275911
        %v5164 = vmul.f32 %v5156, 0.3275911
        %v5165 = vmul.f32 %v5157, 0.3275911
        %v5166 = vmul.f32 %v5158, 0.3275911
        %v5167 = vmul.f32 %v5159, 0.3275911
        %v5168 = vmul.f32 %v5160, 0.3275911
        %v5169 = vadd.f32 %v5161, 1.0
        %v5170 = vadd.f32 %v5162, 1.0
        %v5171 = vadd.f32 %v5163, 1.0
        %v5172 = vadd.f32 %v5164, 1.0
        %v5173 = vadd.f32 %v5165, 1.0
        %v5174 = vadd.f32 %v5166, 1.0
        %v5175 = vadd.f32 %v5167, 1.0
        %v5176 = vadd.f32 %v5168, 1.0
        %v5177 = vrcp.pop %v5169
        %v5178 = vmul.f32 1.0, %v5177
        %v5179 = vrcp.pop %v5170
        %v5180 = vmul.f32 1.0, %v5179
        %v5181 = vrcp.pop %v5171
        %v5182 = vmul.f32 1.0, %v5181
        %v5183 = vrcp.pop %v5172
        %v5184 = vmul.f32 1.0, %v5183
        %v5185 = vrcp.pop %v5173
        %v5186 = vmul.f32 1.0, %v5185
        %v5187 = vrcp.pop %v5174
        %v5188 = vmul.f32 1.0, %v5187
        %v5189 = vrcp.pop %v5175
        %v5190 = vmul.f32 1.0, %v5189
        %v5191 = vrcp.pop %v5176
        %v5192 = vmul.f32 1.0, %v5191
        %v5193 = vmul.f32 %v5178, 1.0614054
        %v5194 = vmul.f32 %v5180, 1.0614054
        %v5195 = vmul.f32 %v5182, 1.0614054
        %v5196 = vmul.f32 %v5184, 1.0614054
        %v5197 = vmul.f32 %v5186, 1.0614054
        %v5198 = vmul.f32 %v5188, 1.0614054
        %v5199 = vmul.f32 %v5190, 1.0614054
        %v5200 = vmul.f32 %v5192, 1.0614054
        %v5201 = vadd.f32 %v5193, -1.4531521
        %v5202 = vadd.f32 %v5194, -1.4531521
        %v5203 = vadd.f32 %v5195, -1.4531521
        %v5204 = vadd.f32 %v5196, -1.4531521
        %v5205 = vadd.f32 %v5197, -1.4531521
        %v5206 = vadd.f32 %v5198, -1.4531521
        %v5207 = vadd.f32 %v5199, -1.4531521
        %v5208 = vadd.f32 %v5200, -1.4531521
        %v5209 = vmul.f32 %v5201, %v5178
        %v5210 = vmul.f32 %v5202, %v5180
        %v5211 = vmul.f32 %v5203, %v5182
        %v5212 = vmul.f32 %v5204, %v5184
        %v5213 = vmul.f32 %v5205, %v5186
        %v5214 = vmul.f32 %v5206, %v5188
        %v5215 = vmul.f32 %v5207, %v5190
        %v5216 = vmul.f32 %v5208, %v5192
        %v5217 = vadd.f32 %v5209, 1.4214138
        %v5218 = vadd.f32 %v5210, 1.4214138
        %v5219 = vadd.f32 %v5211, 1.4214138
        %v5220 = vadd.f32 %v5212, 1.4214138
        %v5221 = vadd.f32 %v5213, 1.4214138
        %v5222 = vadd.f32 %v5214, 1.4214138
        %v5223 = vadd.f32 %v5215, 1.4214138
        %v5224 = vadd.f32 %v5216, 1.4214138
        %v5225 = vmul.f32 %v5217, %v5178
        %v5226 = vmul.f32 %v5218, %v5180
        %v5227 = vmul.f32 %v5219, %v5182
        %v5228 = vmul.f32 %v5220, %v5184
        %v5229 = vmul.f32 %v5221, %v5186
        %v5230 = vmul.f32 %v5222, %v5188
        %v5231 = vmul.f32 %v5223, %v5190
        %v5232 = vmul.f32 %v5224, %v5192
        %v5233 = vadd.f32 %v5225, -0.28449672
        %v5234 = vadd.f32 %v5226, -0.28449672
        %v5235 = vadd.f32 %v5227, -0.28449672
        %v5236 = vadd.f32 %v5228, -0.28449672
        %v5237 = vadd.f32 %v5229, -0.28449672
        %v5238 = vadd.f32 %v5230, -0.28449672
        %v5239 = vadd.f32 %v5231, -0.28449672
        %v5240 = vadd.f32 %v5232, -0.28449672
        %v5241 = vmul.f32 %v5233, %v5178
        %v5242 = vmul.f32 %v5234, %v5180
        %v5243 = vmul.f32 %v5235, %v5182
        %v5244 = vmul.f32 %v5236, %v5184
        %v5245 = vmul.f32 %v5237, %v5186
        %v5246 = vmul.f32 %v5238, %v5188
        %v5247 = vmul.f32 %v5239, %v5190
        %v5248 = vmul.f32 %v5240, %v5192
        %v5249 = vadd.f32 %v5241, 0.2548296
        %v5250 = vadd.f32 %v5242, 0.2548296
        %v5251 = vadd.f32 %v5243, 0.2548296
        %v5252 = vadd.f32 %v5244, 0.2548296
        %v5253 = vadd.f32 %v5245, 0.2548296
        %v5254 = vadd.f32 %v5246, 0.2548296
        %v5255 = vadd.f32 %v5247, 0.2548296
        %v5256 = vadd.f32 %v5248, 0.2548296
        %v5257 = vmul.f32 %v5249, %v5178
        %v5258 = vmul.f32 %v5250, %v5180
        %v5259 = vmul.f32 %v5251, %v5182
        %v5260 = vmul.f32 %v5252, %v5184
        %v5261 = vmul.f32 %v5253, %v5186
        %v5262 = vmul.f32 %v5254, %v5188
        %v5263 = vmul.f32 %v5255, %v5190
        %v5264 = vmul.f32 %v5256, %v5192
        %v5265 = vsub.f32 0.0, %v5153
        %v5266 = vsub.f32 0.0, %v5154
        %v5267 = vsub.f32 0.0, %v5155
        %v5268 = vsub.f32 0.0, %v5156
        %v5269 = vsub.f32 0.0, %v5157
        %v5270 = vsub.f32 0.0, %v5158
        %v5271 = vsub.f32 0.0, %v5159
        %v5272 = vsub.f32 0.0, %v5160
        %v5273 = vmul.f32 %v5265, %v5153
        %v5274 = vmul.f32 %v5266, %v5154
        %v5275 = vmul.f32 %v5267, %v5155
        %v5276 = vmul.f32 %v5268, %v5156
        %v5277 = vmul.f32 %v5269, %v5157
        %v5278 = vmul.f32 %v5270, %v5158
        %v5279 = vmul.f32 %v5271, %v5159
        %v5280 = vmul.f32 %v5272, %v5160
        %v5281 = vmul.f32 %v5273, 1.442695
        %v5282 = vpow.pop %v5281
        %v5283 = vmul.f32 %v5274, 1.442695
        %v5284 = vpow.pop %v5283
        %v5285 = vmul.f32 %v5275, 1.442695
        %v5286 = vpow.pop %v5285
        %v5287 = vmul.f32 %v5276, 1.442695
        %v5288 = vpow.pop %v5287
        %v5289 = vmul.f32 %v5277, 1.442695
        %v5290 = vpow.pop %v5289
        %v5291 = vmul.f32 %v5278, 1.442695
        %v5292 = vpow.pop %v5291
        %v5293 = vmul.f32 %v5279, 1.442695
        %v5294 = vpow.pop %v5293
        %v5295 = vmul.f32 %v5280, 1.442695
        %v5296 = vpow.pop %v5295
        %v5297 = vmul.f32 %v5257, %v5282
        %v5298 = vmul.f32 %v5258, %v5284
        %v5299 = vmul.f32 %v5259, %v5286
        %v5300 = vmul.f32 %v5260, %v5288
        %v5301 = vmul.f32 %v5261, %v5290
        %v5302 = vmul.f32 %v5262, %v5292
        %v5303 = vmul.f32 %v5263, %v5294
        %v5304 = vmul.f32 %v5264, %v5296
        %v5305 = vsub.f32 1.0, %v5297
        %v5306 = vsub.f32 1.0, %v5298
        %v5307 = vsub.f32 1.0, %v5299
        %v5308 = vsub.f32 1.0, %v5300
        %v5309 = vsub.f32 1.0, %v5301
        %v5310 = vsub.f32 1.0, %v5302
        %v5311 = vsub.f32 1.0, %v5303
        %v5312 = vsub.f32 1.0, %v5304
        %vm5313 = vcmp.ge.f32.partialorder %v5145, 0.0
        %vm5314 = vcmp.ge.f32.partialorder %v5146, 0.0
        %vm5315 = vcmp.ge.f32.partialorder %v5147, 0.0
        %vm5316 = vcmp.ge.f32.partialorder %v5148, 0.0
        %vm5317 = vcmp.ge.f32.partialorder %v5149, 0.0
        %vm5318 = vcmp.ge.f32.partialorder %v5150, 0.0
        %vm5319 = vcmp.ge.f32.partialorder %v5151, 0.0
        %vm5320 = vcmp.ge.f32.partialorder %v5152, 0.0
        %v5321 = vsub.f32 0.0, %v5305
        %v5322 = vsub.f32 0.0, %v5306
        %v5323 = vsub.f32 0.0, %v5307
        %v5324 = vsub.f32 0.0, %v5308
        %v5325 = vsub.f32 0.0, %v5309
        %v5326 = vsub.f32 0.0, %v5310
        %v5327 = vsub.f32 0.0, %v5311
        %v5328 = vsub.f32 0.0, %v5312
        %v5329 = vsel %vm5313, %v5305, %v5321
        %v5330 = vsel %vm5314, %v5306, %v5322
        %v5331 = vsel %vm5315, %v5307, %v5323
        %v5332 = vsel %vm5316, %v5308, %v5324
        %v5333 = vsel %vm5317, %v5309, %v5325
        %v5334 = vsel %vm5318, %v5310, %v5326
        %v5335 = vsel %vm5319, %v5311, %v5327
        %v5336 = vsel %vm5320, %v5312, %v5328
        %v5337 = vmul.f32 %v5115, 0.5
        %v5338 = vmul.f32 %v5118, 0.5
        %v5339 = vmul.f32 %v5123, 0.5
        %v5340 = vmul.f32 %v5126, 0.5
        %v5341 = vmul.f32 %v5131, 0.5
        %v5342 = vmul.f32 %v5134, 0.5
        %v5343 = vmul.f32 %v5139, 0.5
        %v5344 = vmul.f32 %v5142, 0.5
        %v5345 = vadd.f32 %v5329, 1.0
        %v5346 = vadd.f32 %v5330, 1.0
        %v5347 = vadd.f32 %v5331, 1.0
        %v5348 = vadd.f32 %v5332, 1.0
        %v5349 = vadd.f32 %v5333, 1.0
        %v5350 = vadd.f32 %v5334, 1.0
        %v5351 = vadd.f32 %v5335, 1.0
        %v5352 = vadd.f32 %v5336, 1.0
        %v5353 = vmul.f32 %v5337, %v5345
        %v5354 = vmul.f32 %v5338, %v5346
        %v5355 = vmul.f32 %v5339, %v5347
        %v5356 = vmul.f32 %v5340, %v5348
        %v5357 = vmul.f32 %v5341, %v5349
        %v5358 = vmul.f32 %v5342, %v5350
        %v5359 = vmul.f32 %v5343, %v5351
        %v5360 = vmul.f32 %v5344, %v5352
        %v5361 = vpack.c.bf16 %v5354, %v5353
        %v5362 = vpack.c.bf16 %v5356, %v5355
        %v5363 = vpack.c.bf16 %v5358, %v5357
        %v5364 = vpack.c.bf16 %v5360, %v5359
        %s5365 = scalar_lea.vmem %s11, 64
        %v5366 = vld [vmem:[%s5365] sm:$0xf]
        %v5367 = vld [vmem:[%s5365 + $0x4] sm:$0xf]
        %v5368 = vld [vmem:[%s5365 + $0x8] sm:$0xf]
        %v5369 = vld [vmem:[%s5365 + $0xc] sm:$0xf]
        %v5370 = vld [vmem:[%s5365 + $0x10] sm:$0xf]
        %v5371 = vld [vmem:[%s5365 + $0x14] sm:$0xf]
        %v5372 = vld [vmem:[%s5365 + $0x18] sm:$0xf]
        %v5373 = vld [vmem:[%s5365 + $0x1c] sm:$0xf]
        %v5374 = vld [vmem:[%s5365 + $0x20] sm:$0xf]
        %v5375 = vld [vmem:[%s5365 + $0x24] sm:$0xf]
        %v5376 = vld [vmem:[%s5365 + $0x28] sm:$0xf]
        %v5377 = vld [vmem:[%s5365 + $0x2c] sm:$0xf]
        %v5378 = vld [vmem:[%s5365 + $0x30] sm:$0xf]
        %v5379 = vld [vmem:[%s5365 + $0x34] sm:$0xf]
        %v5380 = vld [vmem:[%s5365 + $0x38] sm:$0xf]
        %v5381 = vld [vmem:[%s5365 + $0x3c] sm:$0xf]
        %s5382 = scalar_lea.vmem %s12, 1
        %v5383 = vld [vmem:[%s5382] sm:$0x1]
        %v5385 = vlaneseq
        %v5386 = vshrl.u32 %v5385, 7
        %v5387 = vsub.s32 0, %v5386
        %v5388 = vrot.slane %v5383, %v5387
        %v5406 = vunpack.c.l.b16 %v5366
        %v5407 = vunpack.c.l.b16 %v5367
        %v5408 = vunpack.c.l.b16 %v5368
        %v5409 = vunpack.c.l.b16 %v5369
        %v5410 = vunpack.c.l.b16 %v5370
        %v5411 = vunpack.c.l.b16 %v5371
        %v5412 = vunpack.c.l.b16 %v5372
        %v5413 = vunpack.c.l.b16 %v5373
        %v5414 = vunpack.c.l.b16 %v5374
        %v5415 = vunpack.c.l.b16 %v5375
        %v5416 = vunpack.c.l.b16 %v5376
        %v5417 = vunpack.c.l.b16 %v5377
        %v5418 = vunpack.c.l.b16 %v5378
        %v5419 = vunpack.c.l.b16 %v5379
        %v5420 = vunpack.c.l.b16 %v5380
        %v5421 = vunpack.c.l.b16 %v5381
        %v5422 = vpack.c.b16 %v5407, %v5406
        %v5423 = vpack.c.b16 %v5409, %v5408
        %v5424 = vpack.c.b16 %v5411, %v5410
        %v5425 = vpack.c.b16 %v5413, %v5412
        %v5426 = vpack.c.b16 %v5415, %v5414
        %v5427 = vpack.c.b16 %v5417, %v5416
        %v5428 = vpack.c.b16 %v5419, %v5418
        %v5429 = vpack.c.b16 %v5421, %v5420
        %5438 = vmatprep.subr.bf16.mxu0 0
        %5439 = vmatpush1.bf16.msra.mxu0 %v5429
        %5440 = vmatprep.subr.bf16.mxu0 0
        %5441 = vmatpush1.bf16.msra.mxu0 %v5428
        %5442 = vmatprep.subr.bf16.mxu0 0
        %5443 = vmatpush1.bf16.msra.mxu0 %v5427
        %5444 = vmatprep.subr.bf16.mxu0 0
        %5445 = vmatpush1.bf16.msra.mxu0 %v5426
        %5446 = vmatprep.subr.bf16.mxu0 0
        %5447 = vmatpush1.bf16.msra.mxu0 %v5425
        %5448 = vmatprep.subr.bf16.mxu0 0
        %5449 = vmatpush1.bf16.msra.mxu0 %v5424
        %5450 = vmatprep.subr.bf16.mxu0 0
        %5451 = vmatpush1.bf16.msra.mxu0 %v5423
        %5452 = vmatprep.subr.bf16.mxu0 0
        %5453 = vmatpush1.bf16.msra.mxu0 %v5422
        %5454 = vmatprep.subr.bf16.mxu0 0
        %5455 = vmatpush2.bf16.msra.mxu0 0
        %5456 = vmatprep.subr.bf16.mxu0 0
        %5457 = vmatpush2.bf16.msra.mxu0 0
        %5458 = vmatprep.subr.bf16.mxu0 0
        %5459 = vmatpush2.bf16.msra.mxu0 0
        %5460 = vmatprep.subr.bf16.mxu0 0
        %5461 = vmatpush2.bf16.msra.mxu0 0
        %5462 = vmatprep.subr.bf16.mxu0 0
        %5463 = vmatpush2.bf16.msra.mxu0 0
        %5464 = vmatprep.subr.bf16.mxu0 0
        %5465 = vmatpush2.bf16.msra.mxu0 0
        %5466 = vmatprep.subr.bf16.mxu0 0
        %5467 = vmatpush2.bf16.msra.mxu0 0
        %5468 = vmatprep.subr.bf16.mxu0 0
        %5469 = vmatpush2.bf16.msra.mxu0 0
        %5470 = vmatprep.mubr.bf16.mxu0 0
        %5471 = vmatmul.mubr.bf16.gmra.mxu0 %v5361
        %v5472 = vpop.f32.mrf.mxu0
        %v5473 = vadd.f32 %v5388, %v5472
        %v5474 = vpop.f32.mrf.mxu0
        %v5475 = vpop.f32.mrf.mxu0
        %v5476 = vadd.f32 %v5388, %v5475
        %v5477 = vpop.f32.mrf.mxu0
        %5478 = vmatprep.mubr.bf16.mxu0 0
        %5479 = vmatmul.mubr.bf16.gmra.mxu0 %v5362
        %v5480 = vpop.f32.mrf.mxu0
        %v5481 = vadd.f32 %v5388, %v5480
        %v5482 = vpop.f32.mrf.mxu0
        %v5483 = vpop.f32.mrf.mxu0
        %v5484 = vadd.f32 %v5388, %v5483
        %v5485 = vpop.f32.mrf.mxu0
        %5486 = vmatprep.mubr.bf16.mxu0 0
        %5487 = vmatmul.mubr.bf16.gmra.mxu0 %v5363
        %v5488 = vpop.f32.mrf.mxu0
        %v5489 = vadd.f32 %v5388, %v5488
        %v5490 = vpop.f32.mrf.mxu0
        %v5491 = vpop.f32.mrf.mxu0
        %v5492 = vadd.f32 %v5388, %v5491
        %v5493 = vpop.f32.mrf.mxu0
        %5494 = vmatprep.mubr.bf16.mxu0 0
        %5495 = vmatmul.mubr.bf16.gmra.mxu0 %v5364
        %v5496 = vpop.f32.mrf.mxu0
        %v5497 = vadd.f32 %v5388, %v5496
        %v5498 = vpop.f32.mrf.mxu0
        %v5499 = vpop.f32.mrf.mxu0
        %v5500 = vadd.f32 %v5388, %v5499
        %v5501 = vpop.f32.mrf.mxu0
        %5502 = vdwg.mxu0
        %v5503 = vadd.f32 %v4895, %v5473
        %v5504 = vadd.f32 %v4896, %v5476
        %v5505 = vadd.f32 %v4897, %v5481
        %v5506 = vadd.f32 %v4898, %v5484
        %v5507 = vadd.f32 %v4899, %v5489
        %v5508 = vadd.f32 %v4900, %v5492
        %v5509 = vadd.f32 %v4901, %v5497
        %v5510 = vadd.f32 %v4902, %v5500
        %5511 = vst.msk [vmem:[%s482] sm:$0xff] %vm494, %v5503
        %5512 = vst.msk [vmem:[%s482 + $0x8] sm:$0xff] %vm494, %v5504
        %5513 = vst.msk [vmem:[%s482 + $0x10] sm:$0xff] %vm494, %v5505
        %5514 = vst.msk [vmem:[%s482 + $0x18] sm:$0xff] %vm494, %v5506
        %5515 = vst.msk [vmem:[%s482 + $0x20] sm:$0xff] %vm494, %v5507
        %5516 = vst.msk [vmem:[%s482 + $0x28] sm:$0xff] %vm494, %v5508
        %5517 = vst.msk [vmem:[%s482 + $0x30] sm:$0xff] %vm494, %v5509
        %5518 = vst.msk [vmem:[%s482 + $0x38] sm:$0xff] %vm494, %v5510
        %p5519 = scmp.lt.s32.totalorder %s26, 1
        %s5520 = scalar_select %p5519, %s26, 1
        %s5521 = smul.addr %s5520, 8
        %s5522 = smul.addr %s5521, 8
        %s5523 = scalar_lea.vmem %s14, %s5522
        // Predicated region
        $region81: #{basic_layer_forward.1} parent=75 // pred_check
          %p5524 = pneg %p343
        $region82: #{basic_layer_forward.1} parent=75 // pred_check_branch
          %5526 = sbr.rel (%p5524) target = $region84
        $region83: #{basic_layer_forward.1} parent=75 // pred_region
          _
        $region84: #{basic_layer_forward.1} parent=75 // pred_fallthru
          _
      $region76: #{basic_layer_forward.1} parent=5 // pred_fallthru
        _
      %p5527 = scmp.le.s32.totalorder 2, %s21
      // Predicated region
      $region85: #{basic_layer_forward.1} parent=5 // pred_check
        %p5528 = pneg %p5527
      $region86: #{basic_layer_forward.1} parent=5 // pred_check_branch
        %5530 = sbr.rel (%p5528) target = $region88
      $region87: #{basic_layer_forward.1} parent=5 // pred_region
        %s5531 = ssub.s32 %s21, 2
        // Predicated region
        $region89: #{basic_layer_forward.1} parent=87 // pred_check
          %p5532 = pneg %p349
        $region90: #{basic_layer_forward.1} parent=87 // pred_check_branch
          %5534 = sbr.rel (%p5532) target = $region92
        $region91: #{basic_layer_forward.1} parent=87 // pred_region
          %p5535 = scmp.lt.s32.totalorder %s27, 1
          %s5536 = scalar_select %p5535, %s27, 1
          %s5537 = smul.addr %s5536, 8
          %s5538 = smul.addr %s5537, 8
          %s5539 = scalar_lea.vmem %s14, %s5538
        $region92: #{basic_layer_forward.1} parent=87 // pred_fallthru
          _
      $region88: #{basic_layer_forward.1} parent=5 // pred_fallthru
        _
    $region6: #{basic_layer_forward.1} parent=1 // loop_footer
      %s25 = sadd.s32 1, %s21
    $region7: #{basic_layer_forward.1} parent=1 // loop_footer_branch
      %20 = sbr.rel target = $region3
    $region8: #{basic_layer_forward.1} parent=1 // loop_exit
      _
    %5540 = vsyncpa [#allocation4], 1
    %s5541 = scalar_lea.sflag [#allocation4], 1
    %5542 = vsyncpa %s5541, 1

</llo_original>
